<compile_context>
chip_gen: v7x
topology: tpu7x:2x2x1
jax: 0.10.0
libtpu: 0.0.40
codegen_flags: <defaults>
</compile_context>

<pallas_src>
import functools

import jax
import jax.numpy as jnp
import numpy as np
from jax import lax
from jax.experimental import pallas as pl
from jax.experimental.pallas import tpu as pltpu

EPS = 1e-5          # PyTorch nn.LayerNorm default
NEG_INF = -1e30     # additive/causal mask fill (f32-safe)


# -----------------------------------------------------------------------------
# Shared math helpers (used identically by the kernel and the JAX reference)
# -----------------------------------------------------------------------------
def _layernorm(x, w, b):
    mu = jnp.mean(x, axis=-1, keepdims=True)
    var = jnp.mean(jnp.square(x - mu), axis=-1, keepdims=True)
    return (x - mu) * lax.rsqrt(var + EPS) * w + b


def _quick_gelu(h):
    return h * (1.0 / (1.0 + jnp.exp(-1.702 * h)))


def _mm(a, w_bf16):
    """bf16 MXU matmul with f32 accumulation (weights stored bf16)."""
    return jnp.dot(a.astype(jnp.bfloat16), w_bf16,
                   preferred_element_type=jnp.float32)


# -----------------------------------------------------------------------------
# Fused kernel: grid step l == transformer layer l.  The (B*S, D) residual
# stream lives in the resident output block across layers; final LN fused on
# the last step.
# -----------------------------------------------------------------------------
def clip_stack_kernel(x_ref,
                      ln1_w, ln1_b, wq, bq, wk, bk, wv, bv, wo, bo,
                      ln2_w, ln2_b, w1, b1, w2, b2,
                      lnf_w, lnf_b,
                      o_ref, ctx_ref, *, num_heads, batch, seq):
    l = pl.program_id(0)

    @pl.when(l == 0)
    def _():
        o_ref[...] = x_ref[...]

    x = o_ref[...]                                  # (B*S, D) f32 residual
    BS, D = x.shape
    dh = D // num_heads
    scale = jnp.float32(1.0 / (dh ** 0.5))

    # In-kernel per-sequence causal mask (no (B*S, B*S) HBM mask).
    row = lax.broadcasted_iota(jnp.int32, (seq, seq), 0)
    col = lax.broadcasted_iota(jnp.int32, (seq, seq), 1)
    causal = col <= row

    # ---- attention block ----------------------------------------------------
    h = _layernorm(x, ln1_w[0], ln1_b[0]).astype(jnp.bfloat16)   # hoisted cast
    q = _mm(h, wq[0]) + bq[0]
    k = _mm(h, wk[0]) + bk[0]
    v = _mm(h, wv[0]) + bv[0]
    q_bf = q.astype(jnp.bfloat16)
    k_bf = k.astype(jnp.bfloat16)
    v_bf = v.astype(jnp.bfloat16)

    nt_dims = (((1,), (1,)), ((), ()))              # contract last dims: Q @ K^T
    for b in range(batch):                          # per-sequence scores only
        rs = slice(b * seq, (b + 1) * seq)
        for hd in range(num_heads):                 # static unroll over heads
            cs = slice(hd * dh, (hd + 1) * dh)
            s = lax.dot_general(q_bf[rs, cs], k_bf[rs, cs], nt_dims,
                                preferred_element_type=jnp.float32)
            s = jnp.where(causal, s * scale, NEG_INF)
            s = s - jnp.max(s, axis=-1, keepdims=True)
            p = jnp.exp(s)
            p = p / jnp.sum(p, axis=-1, keepdims=True)
            ctx_ref[rs, cs] = jnp.dot(p.astype(jnp.bfloat16), v_bf[rs, cs],
                                      preferred_element_type=jnp.float32)
    # Merged output projection: single (B*S,D)@(D,D) bf16 MXU matmul.
    x = x + _mm(ctx_ref[...], wo[0]) + bo[0]

    # ---- MLP block (quick-GELU) ---------------------------------------------
    h = _layernorm(x, ln2_w[0], ln2_b[0]).astype(jnp.bfloat16)
    h = _mm(h, w1[0]) + b1[0]
    h = _quick_gelu(h)
    x = x + _mm(h, w2[0]) + b2[0]

    o_ref[...] = x

    @pl.when(l == pl.num_programs(0) - 1)
    def _():
        o_ref[...] = _layernorm(x, lnf_w[...], lnf_b[...])


# -----------------------------------------------------------------------------
# Wrapper
# -----------------------------------------------------------------------------
_STACKED = ("ln1_w", "ln1_b", "wq", "bq", "wk", "bk", "wv", "bv",
            "wo", "bo", "ln2_w", "ln2_b", "w1", "b1", "w2", "b2")


def clip_layers_fused(x, params, num_heads):
    B, S, D = x.shape
    BS = B * S
    L = params["wq"].shape[0]

    x2 = x.reshape(BS, D).astype(jnp.float32)
    stacked = [params[n] for n in _STACKED]

    def layer_spec(arr):
        blk = (1,) + arr.shape[1:]
        nz = arr.ndim - 1
        return pl.BlockSpec(blk, lambda l, _nz=nz: (l,) + (0,) * _nz)

    def const_spec(arr):
        nd = arr.ndim
        return pl.BlockSpec(arr.shape, lambda l, _nd=nd: (0,) * _nd)

    in_specs = ([pl.BlockSpec((BS, D), lambda l: (0, 0))]      # x (resident)
                + [layer_spec(w) for w in stacked]
                + [const_spec(params["ln_f_w"]), const_spec(params["ln_f_b"])])

    out = pl.pallas_call(
        functools.partial(clip_stack_kernel, num_heads=num_heads,
                          batch=B, seq=S),
        out_shape=jax.ShapeDtypeStruct((BS, D), jnp.float32),
        grid=(L,),
        in_specs=in_specs,
        out_specs=pl.BlockSpec((BS, D), lambda l: (0, 0)),     # residual carrier
        scratch_shapes=[pltpu.VMEM((BS, D), jnp.float32)],     # per-head contexts
        compiler_params=pltpu.CompilerParams(
            dimension_semantics=("arbitrary",)),
    )(x2, *stacked, params["ln_f_w"], params["ln_f_b"])
    return out.reshape(B, S, D)


def clip_forward(tokens, params, num_heads):
    tokens = tokens.astype(jnp.int32)
    # TODO(synk): token-embedding gather stays in plain JAX (tiny; no clean
    # small-scale Pallas gather).  All layer compute + final LN is one fused
    # Pallas kernel.
    x = jnp.take(params["tok_emb"], tokens, axis=0) + params["pos_emb"][None]
    return clip_layers_fused(x.astype(jnp.float32), params, num_heads)


# -----------------------------------------------------------------------------
# Deterministic synthetic parameters (stacked per-layer weights, bf16 linears
# pre-transposed to (in, out))
# -----------------------------------------------------------------------------
def init_params(key, vocab, num_tokens, d, num_layers):
    f32, bf16 = jnp.float32, jnp.bfloat16
    L = num_layers

    def nrm(k, shape, s=0.02):
        return (s * jax.random.normal(k, shape)).astype(f32)

    keys = jax.random.split(key, 16)
    params = {
        "tok_emb": nrm(keys[0], (vocab, d)),
        "pos_emb": nrm(keys[1], (num_tokens, d)),
        "ln_f_w": 1.0 + nrm(keys[2], (1, d)),
        "ln_f_b": nrm(keys[3], (1, d)),
        "ln1_w": 1.0 + nrm(keys[4], (L, 1, d)),
        "ln1_b": nrm(keys[5], (L, 1, d)),
        "wq": nrm(keys[6], (L, d, d)).astype(bf16),
        "bq": nrm(keys[7], (L, 1, d)),
        "wk": nrm(keys[8], (L, d, d)).astype(bf16),
        "bk": nrm(keys[9], (L, 1, d)),
        "wv": nrm(keys[10], (L, d, d)).astype(bf16),
        "bv": nrm(keys[11], (L, 1, d)),
        "wo": nrm(keys[12], (L, d, d)).astype(bf16),
        "bo": nrm(keys[13], (L, 1, d)),
        "ln2_w": 1.0 + nrm(keys[14], (L, 1, d)),
        "ln2_b": nrm(keys[15], (L, 1, d)),
        "w1": nrm(jax.random.fold_in(key, 101), (L, d, 4 * d)).astype(bf16),
        "b1": nrm(jax.random.fold_in(key, 102), (L, 1, 4 * d)),
        "w2": nrm(jax.random.fold_in(key, 103), (L, 4 * d, d)).astype(bf16),
        "b2": nrm(jax.random.fold_in(key, 104), (L, 1, d)),
    }
    return params


# -----------------------------------------------------------------------------
# Pure-JAX reference: identical math (bf16 matmul operands, f32 accumulation,
# f32 LayerNorm / softmax / quick-GELU, exact softmax divide).
# -----------------------------------------------------------------------------
def clip_forward_ref(tokens, params, num_heads):
    x = jnp.take(params["tok_emb"], tokens.astype(jnp.int32), axis=0)
    x = (x + params["pos_emb"][None]).astype(jnp.float32)
    B, S, D = x.shape
    dh = D // num_heads
    scale = jnp.float32(1.0 / (dh ** 0.5))
    causal = jnp.tril(jnp.ones((S, S), dtype=bool))
    L = params["wq"].shape[0]
    x = x.reshape(B * S, D)
    for l in range(L):
        r = x
        h = _layernorm(x, params["ln1_w"][l], params["ln1_b"][l]).astype(jnp.bfloat16)
        q = _mm(h, params["wq"][l]) + params["bq"][l]
        k = _mm(h, params["wk"][l]) + params["bk"][l]
        v = _mm(h, params["wv"][l]) + params["bv"][l]
        qh = q.astype(jnp.bfloat16).reshape(B, S, num_heads, dh)
        kh = k.astype(jnp.bfloat16).reshape(B, S, num_heads, dh)
        vh = v.astype(jnp.bfloat16).reshape(B, S, num_heads, dh)
        s = jnp.einsum("bqhd,bkhd->bhqk", qh, kh,
                       preferred_element_type=jnp.float32)
        s = jnp.where(causal[None, None], s * scale, NEG_INF)
        s = s - jnp.max(s, axis=-1, keepdims=True)
        p = jnp.exp(s)
        p = p / jnp.sum(p, axis=-1, keepdims=True)
        o = jnp.einsum("bhqk,bkhd->bqhd", p.astype(jnp.bfloat16), vh,
                       preferred_element_type=jnp.float32).reshape(B * S, D)
        x = r + _mm(o, params["wo"][l]) + params["bo"][l]
        r = x
        h = _layernorm(x, params["ln2_w"][l], params["ln2_b"][l]).astype(jnp.bfloat16)
        h = _mm(h, params["w1"][l]) + params["b1"][l]
        h = _quick_gelu(h)
        x = r + _mm(h, params["w2"][l]) + params["b2"][l]
    x = _layernorm(x, params["ln_f_w"], params["ln_f_b"])
    return x.reshape(B, S, D)


if __name__ == "__main__":
    # Small shapes consistent with Clip(): vocab, seq(=num_tokens), d, heads, layers
    VOCAB, SEQ, D, HEADS, LAYERS, BATCH = 512, 16, 128, 4, 3, 2

    key = jax.random.PRNGKey(0)
    pkey, tkey = jax.random.split(key)
    params = init_params(pkey, VOCAB, SEQ, D, LAYERS)
    tokens = jax.random.randint(tkey, (BATCH, SEQ), 0, VOCAB, dtype=jnp.int32)

    out = jax.block_until_ready(clip_forward(tokens, params, HEADS))
    ref = jax.block_until_ready(clip_forward_ref(tokens, params, HEADS))

    # Kernel and reference now execute the same bf16-operand / f32-accumulate
    # math with an exact softmax divide -> comfortably within tolerance.
    np.testing.assert_allclose(np.asarray(out), np.asarray(ref),
                               rtol=5e-3, atol=5e-3)
    print("KERNEL_OK")
</pallas_src>

<mosaic_0001>
module attributes {stable_mosaic.version = 11 : i64} {
  func.func @clip_stack_kernel(%arg0: i32, %arg1: memref<32x128xf32, #tpu.memory_space<vmem>>, %arg2: memref<1x1x128xf32, #tpu.memory_space<vmem>>, %arg3: memref<1x1x128xf32, #tpu.memory_space<vmem>>, %arg4: memref<1x128x128xbf16, #tpu.memory_space<vmem>>, %arg5: memref<1x1x128xf32, #tpu.memory_space<vmem>>, %arg6: memref<1x128x128xbf16, #tpu.memory_space<vmem>>, %arg7: memref<1x1x128xf32, #tpu.memory_space<vmem>>, %arg8: memref<1x128x128xbf16, #tpu.memory_space<vmem>>, %arg9: memref<1x1x128xf32, #tpu.memory_space<vmem>>, %arg10: memref<1x128x128xbf16, #tpu.memory_space<vmem>>, %arg11: memref<1x1x128xf32, #tpu.memory_space<vmem>>, %arg12: memref<1x1x128xf32, #tpu.memory_space<vmem>>, %arg13: memref<1x1x128xf32, #tpu.memory_space<vmem>>, %arg14: memref<1x128x512xbf16, #tpu.memory_space<vmem>>, %arg15: memref<1x1x512xf32, #tpu.memory_space<vmem>>, %arg16: memref<1x512x128xbf16, #tpu.memory_space<vmem>>, %arg17: memref<1x1x128xf32, #tpu.memory_space<vmem>>, %arg18: memref<1x128xf32, #tpu.memory_space<vmem>>, %arg19: memref<1x128xf32, #tpu.memory_space<vmem>>, %arg20: memref<32x128xf32, #tpu.memory_space<vmem>>, %arg21: memref<32x128xf32, #tpu.memory_space<vmem>>) attributes {dimension_semantics = [#tpu.dimension_semantics<arbitrary>], iteration_bounds = array<i64: 3>, scalar_prefetch = 0 : i64, scratch_operands = 1 : i64, tpu.core_type = #tpu.core_type<tc>, window_params = [{pipeline_mode = #tpu.pipeline_mode<synchronous>, transform_indices = @transform_0, window_bounds = array<i64: 32, 128>}, {transform_indices = @transform_1, window_bounds = array<i64: 1, 1, 128>}, {transform_indices = @transform_2, window_bounds = array<i64: 1, 1, 128>}, {transform_indices = @transform_3, window_bounds = array<i64: 1, 128, 128>}, {transform_indices = @transform_4, window_bounds = array<i64: 1, 1, 128>}, {transform_indices = @transform_5, window_bounds = array<i64: 1, 128, 128>}, {transform_indices = @transform_6, window_bounds = array<i64: 1, 1, 128>}, {transform_indices = @transform_7, window_bounds = array<i64: 1, 128, 128>}, {transform_indices = @transform_8, window_bounds = array<i64: 1, 1, 128>}, {transform_indices = @transform_9, window_bounds = array<i64: 1, 128, 128>}, {transform_indices = @transform_10, window_bounds = array<i64: 1, 1, 128>}, {transform_indices = @transform_11, window_bounds = array<i64: 1, 1, 128>}, {transform_indices = @transform_12, window_bounds = array<i64: 1, 1, 128>}, {transform_indices = @transform_13, window_bounds = array<i64: 1, 128, 512>}, {transform_indices = @transform_14, window_bounds = array<i64: 1, 1, 512>}, {transform_indices = @transform_15, window_bounds = array<i64: 1, 512, 128>}, {transform_indices = @transform_16, window_bounds = array<i64: 1, 1, 128>}, {pipeline_mode = #tpu.pipeline_mode<synchronous>, transform_indices = @transform_17, window_bounds = array<i64: 1, 128>}, {pipeline_mode = #tpu.pipeline_mode<synchronous>, transform_indices = @transform_18, window_bounds = array<i64: 1, 128>}, {pipeline_mode = #tpu.pipeline_mode<synchronous>, transform_indices = @transform_19, window_bounds = array<i64: 32, 128>}]} {
    %c0_i32 = arith.constant 0 : i32
    %0 = arith.cmpi eq, %arg0, %c0_i32 : i32
    %1 = arith.extui %0 : i1 to i32
    %c0_i32_0 = arith.constant 0 : i32
    %2 = arith.cmpi ne, %1, %c0_i32_0 : i32
    scf.if %2 {
      %c0_133 = arith.constant 0 : index
      %c0_134 = arith.constant 0 : index
      %283 = vector.load %arg1[%c0_133, %c0_134] : memref<32x128xf32, #tpu.memory_space<vmem>>, vector<32x128xf32>
      %c0_135 = arith.constant 0 : index
      %c0_136 = arith.constant 0 : index
      %284 = vector.load %arg20[%c0_135, %c0_136] : memref<32x128xf32, #tpu.memory_space<vmem>>, vector<32x128xf32>
      tpu.vector_store %arg20[%c0_135, %c0_136], %283 {strides = array<i32>} : memref<32x128xf32, #tpu.memory_space<vmem>>, vector<32x128xf32>,
    } else {
    }
    %c0 = arith.constant 0 : index
    %c0_1 = arith.constant 0 : index
    %3 = vector.load %arg20[%c0, %c0_1] : memref<32x128xf32, #tpu.memory_space<vmem>>, vector<32x128xf32>
    %4 = tpu.iota {dimensions = array<i32: 0>} : vector<16x16xi32>
    %5 = tpu.iota {dimensions = array<i32: 1>} : vector<16x16xi32>
    %6 = arith.cmpi sle, %5, %4 : vector<16x16xi32>
    %c0_2 = arith.constant 0 : index
    %c0_3 = arith.constant 0 : index
    %c0_4 = arith.constant 0 : index
    %7 = vector.load %arg2[%c0_2, %c0_3, %c0_4] : memref<1x1x128xf32, #tpu.memory_space<vmem>>, vector<1x1x128xf32>
    %8 = vector.shape_cast %7 : vector<1x1x128xf32> to vector<1x128xf32>
    %c0_5 = arith.constant 0 : index
    %c0_6 = arith.constant 0 : index
    %c0_7 = arith.constant 0 : index
    %9 = vector.load %arg3[%c0_5, %c0_6, %c0_7] : memref<1x1x128xf32, #tpu.memory_space<vmem>>, vector<1x1x128xf32>
    %10 = vector.shape_cast %9 : vector<1x1x128xf32> to vector<1x128xf32>
    %cst = arith.constant dense<0.000000e+00> : vector<32xf32>
    %11 = vector.multi_reduction <add>, %3, %cst [1] : vector<32x128xf32> to vector<32xf32>
    %12 = vector.shape_cast %11 : vector<32xf32> to vector<32x1xf32>
    %cst_8 = arith.constant 1.280000e+02 : f32
    %13 = vector.broadcast %cst_8 : f32 to vector<32x1xf32>
    %14 = arith.divf %12, %13 : vector<32x1xf32>
    %15 = vector.broadcast %14 : vector<32x1xf32> to vector<32x128xf32>
    %16 = arith.subf %3, %15 : vector<32x128xf32>
    %17 = arith.mulf %16, %16 : vector<32x128xf32>
    %cst_9 = arith.constant dense<0.000000e+00> : vector<32xf32>
    %18 = vector.multi_reduction <add>, %17, %cst_9 [1] : vector<32x128xf32> to vector<32xf32>
    %19 = vector.shape_cast %18 : vector<32xf32> to vector<32x1xf32>
    %cst_10 = arith.constant 1.280000e+02 : f32
    %20 = vector.broadcast %cst_10 : f32 to vector<32x1xf32>
    %21 = arith.divf %19, %20 : vector<32x1xf32>
    %22 = vector.broadcast %14 : vector<32x1xf32> to vector<32x128xf32>
    %23 = arith.subf %3, %22 : vector<32x128xf32>
    %cst_11 = arith.constant 9.99999974E-6 : f32
    %24 = vector.broadcast %cst_11 : f32 to vector<32x1xf32>
    %25 = arith.addf %21, %24 : vector<32x1xf32>
    %26 = math.rsqrt %25 : vector<32x1xf32>
    %27 = vector.broadcast %26 : vector<32x1xf32> to vector<32x128xf32>
    %28 = arith.mulf %23, %27 : vector<32x128xf32>
    %29 = vector.broadcast %8 : vector<1x128xf32> to vector<32x128xf32>
    %30 = arith.mulf %28, %29 : vector<32x128xf32>
    %31 = vector.broadcast %10 : vector<1x128xf32> to vector<32x128xf32>
    %32 = arith.addf %30, %31 : vector<32x128xf32>
    %33 = arith.truncf %32 : vector<32x128xf32> to vector<32x128xbf16>
    %c0_12 = arith.constant 0 : index
    %c0_13 = arith.constant 0 : index
    %c0_14 = arith.constant 0 : index
    %34 = vector.load %arg4[%c0_12, %c0_13, %c0_14] : memref<1x128x128xbf16, #tpu.memory_space<vmem>>, vector<1x128x128xbf16>
    %35 = vector.shape_cast %34 : vector<1x128x128xbf16> to vector<128x128xbf16>
    %cst_15 = arith.constant dense<0.000000e+00> : vector<32x128xf32>
    %36 = tpu.matmul %33, %35, %cst_15 {dimension_numbers = #tpu.dot_dimension_numbers<[1], [0], [0], [1], [0, 0, 1, 1], [], []>} : vector<32x128xbf16>, vector<128x128xbf16>, vector<32x128xf32> -> vector<32x128xf32>
    %c0_16 = arith.constant 0 : index
    %c0_17 = arith.constant 0 : index
    %c0_18 = arith.constant 0 : index
    %37 = vector.load %arg5[%c0_16, %c0_17, %c0_18] : memref<1x1x128xf32, #tpu.memory_space<vmem>>, vector<1x1x128xf32>
    %38 = vector.shape_cast %37 : vector<1x1x128xf32> to vector<1x128xf32>
    %39 = vector.broadcast %38 : vector<1x128xf32> to vector<32x128xf32>
    %40 = arith.addf %36, %39 : vector<32x128xf32>
    %c0_19 = arith.constant 0 : index
    %c0_20 = arith.constant 0 : index
    %c0_21 = arith.constant 0 : index
    %41 = vector.load %arg6[%c0_19, %c0_20, %c0_21] : memref<1x128x128xbf16, #tpu.memory_space<vmem>>, vector<1x128x128xbf16>
    %42 = vector.shape_cast %41 : vector<1x128x128xbf16> to vector<128x128xbf16>
    %cst_22 = arith.constant dense<0.000000e+00> : vector<32x128xf32>
    %43 = tpu.matmul %33, %42, %cst_22 {dimension_numbers = #tpu.dot_dimension_numbers<[1], [0], [0], [1], [0, 0, 1, 1], [], []>} : vector<32x128xbf16>, vector<128x128xbf16>, vector<32x128xf32> -> vector<32x128xf32>
    %c0_23 = arith.constant 0 : index
    %c0_24 = arith.constant 0 : index
    %c0_25 = arith.constant 0 : index
    %44 = vector.load %arg7[%c0_23, %c0_24, %c0_25] : memref<1x1x128xf32, #tpu.memory_space<vmem>>, vector<1x1x128xf32>
    %45 = vector.shape_cast %44 : vector<1x1x128xf32> to vector<1x128xf32>
    %46 = vector.broadcast %45 : vector<1x128xf32> to vector<32x128xf32>
    %47 = arith.addf %43, %46 : vector<32x128xf32>
    %c0_26 = arith.constant 0 : index
    %c0_27 = arith.constant 0 : index
    %c0_28 = arith.constant 0 : index
    %48 = vector.load %arg8[%c0_26, %c0_27, %c0_28] : memref<1x128x128xbf16, #tpu.memory_space<vmem>>, vector<1x128x128xbf16>
    %49 = vector.shape_cast %48 : vector<1x128x128xbf16> to vector<128x128xbf16>
    %cst_29 = arith.constant dense<0.000000e+00> : vector<32x128xf32>
    %50 = tpu.matmul %33, %49, %cst_29 {dimension_numbers = #tpu.dot_dimension_numbers<[1], [0], [0], [1], [0, 0, 1, 1], [], []>} : vector<32x128xbf16>, vector<128x128xbf16>, vector<32x128xf32> -> vector<32x128xf32>
    %c0_30 = arith.constant 0 : index
    %c0_31 = arith.constant 0 : index
    %c0_32 = arith.constant 0 : index
    %51 = vector.load %arg9[%c0_30, %c0_31, %c0_32] : memref<1x1x128xf32, #tpu.memory_space<vmem>>, vector<1x1x128xf32>
    %52 = vector.shape_cast %51 : vector<1x1x128xf32> to vector<1x128xf32>
    %53 = vector.broadcast %52 : vector<1x128xf32> to vector<32x128xf32>
    %54 = arith.addf %50, %53 : vector<32x128xf32>
    %55 = arith.truncf %40 : vector<32x128xf32> to vector<32x128xbf16>
    %56 = arith.truncf %47 : vector<32x128xf32> to vector<32x128xbf16>
    %57 = arith.truncf %54 : vector<32x128xf32> to vector<32x128xbf16>
    %58 = vector.extract_strided_slice %55 {offsets = [0, 0], sizes = [16, 32], strides = [1, 1]} : vector<32x128xbf16> to vector<16x32xbf16>
    %59 = vector.extract_strided_slice %56 {offsets = [0, 0], sizes = [16, 32], strides = [1, 1]} : vector<32x128xbf16> to vector<16x32xbf16>
    %cst_33 = arith.constant dense<0.000000e+00> : vector<16x16xf32>
    %60 = tpu.matmul %58, %59, %cst_33 {dimension_numbers = #tpu.dot_dimension_numbers<[1], [1], [0], [0], [0, 0, 1, 0], [], []>} : vector<16x32xbf16>, vector<16x32xbf16>, vector<16x16xf32> -> vector<16x16xf32>
    %cst_34 = arith.constant 0.176776692 : f32
    %61 = vector.broadcast %cst_34 : f32 to vector<16x16xf32>
    %62 = arith.mulf %60, %61 : vector<16x16xf32>
    %cst_35 = arith.constant -1.000000e+30 : f32
    %63 = vector.broadcast %cst_35 : f32 to vector<16x16xf32>
    %64 = arith.select %6, %62, %63 : vector<16x16xi1>, vector<16x16xf32>
    %cst_36 = arith.constant dense<0xFF800000> : vector<16xf32>
    %65 = vector.multi_reduction <maximumf>, %64, %cst_36 [1] : vector<16x16xf32> to vector<16xf32>
    %66 = vector.shape_cast %65 : vector<16xf32> to vector<16x1xf32>
    %67 = vector.broadcast %66 : vector<16x1xf32> to vector<16x16xf32>
    %68 = arith.subf %64, %67 : vector<16x16xf32>
    %69 = math.exp %68 : vector<16x16xf32>
    %cst_37 = arith.constant dense<0.000000e+00> : vector<16xf32>
    %70 = vector.multi_reduction <add>, %69, %cst_37 [1] : vector<16x16xf32> to vector<16xf32>
    %71 = vector.shape_cast %70 : vector<16xf32> to vector<16x1xf32>
    %72 = vector.broadcast %71 : vector<16x1xf32> to vector<16x16xf32>
    %73 = arith.divf %69, %72 : vector<16x16xf32>
    %74 = arith.truncf %73 : vector<16x16xf32> to vector<16x16xbf16>
    %75 = vector.extract_strided_slice %57 {offsets = [0, 0], sizes = [16, 32], strides = [1, 1]} : vector<32x128xbf16> to vector<16x32xbf16>
    %cst_38 = arith.constant dense<0.000000e+00> : vector<16x32xf32>
    %76 = tpu.matmul %74, %75, %cst_38 {dimension_numbers = #tpu.dot_dimension_numbers<[1], [0], [0], [1], [0, 0, 1, 1], [], []>} : vector<16x16xbf16>, vector<16x32xbf16>, vector<16x32xf32> -> vector<16x32xf32>
    %c0_39 = arith.constant 0 : index
    %c0_40 = arith.constant 0 : index
    %77 = vector.load %arg21[%c0_39, %c0_40] : memref<32x128xf32, #tpu.memory_space<vmem>>, vector<16x32xf32>
    tpu.vector_store %arg21[%c0_39, %c0_40], %76 {strides = array<i32>} : memref<32x128xf32, #tpu.memory_space<vmem>>, vector<16x32xf32>,
    %78 = vector.extract_strided_slice %55 {offsets = [0, 32], sizes = [16, 32], strides = [1, 1]} : vector<32x128xbf16> to vector<16x32xbf16>
    %79 = vector.extract_strided_slice %56 {offsets = [0, 32], sizes = [16, 32], strides = [1, 1]} : vector<32x128xbf16> to vector<16x32xbf16>
    %cst_41 = arith.constant dense<0.000000e+00> : vector<16x16xf32>
    %80 = tpu.matmul %78, %79, %cst_41 {dimension_numbers = #tpu.dot_dimension_numbers<[1], [1], [0], [0], [0, 0, 1, 0], [], []>} : vector<16x32xbf16>, vector<16x32xbf16>, vector<16x16xf32> -> vector<16x16xf32>
    %cst_42 = arith.constant 0.176776692 : f32
    %81 = vector.broadcast %cst_42 : f32 to vector<16x16xf32>
    %82 = arith.mulf %80, %81 : vector<16x16xf32>
    %cst_43 = arith.constant -1.000000e+30 : f32
    %83 = vector.broadcast %cst_43 : f32 to vector<16x16xf32>
    %84 = arith.select %6, %82, %83 : vector<16x16xi1>, vector<16x16xf32>
    %cst_44 = arith.constant dense<0xFF800000> : vector<16xf32>
    %85 = vector.multi_reduction <maximumf>, %84, %cst_44 [1] : vector<16x16xf32> to vector<16xf32>
    %86 = vector.shape_cast %85 : vector<16xf32> to vector<16x1xf32>
    %87 = vector.broadcast %86 : vector<16x1xf32> to vector<16x16xf32>
    %88 = arith.subf %84, %87 : vector<16x16xf32>
    %89 = math.exp %88 : vector<16x16xf32>
    %cst_45 = arith.constant dense<0.000000e+00> : vector<16xf32>
    %90 = vector.multi_reduction <add>, %89, %cst_45 [1] : vector<16x16xf32> to vector<16xf32>
    %91 = vector.shape_cast %90 : vector<16xf32> to vector<16x1xf32>
    %92 = vector.broadcast %91 : vector<16x1xf32> to vector<16x16xf32>
    %93 = arith.divf %89, %92 : vector<16x16xf32>
    %94 = arith.truncf %93 : vector<16x16xf32> to vector<16x16xbf16>
    %95 = vector.extract_strided_slice %57 {offsets = [0, 32], sizes = [16, 32], strides = [1, 1]} : vector<32x128xbf16> to vector<16x32xbf16>
    %cst_46 = arith.constant dense<0.000000e+00> : vector<16x32xf32>
    %96 = tpu.matmul %94, %95, %cst_46 {dimension_numbers = #tpu.dot_dimension_numbers<[1], [0], [0], [1], [0, 0, 1, 1], [], []>} : vector<16x16xbf16>, vector<16x32xbf16>, vector<16x32xf32> -> vector<16x32xf32>
    %c0_47 = arith.constant 0 : index
    %c32 = arith.constant 32 : index
    %97 = vector.load %arg21[%c0_47, %c32] : memref<32x128xf32, #tpu.memory_space<vmem>>, vector<16x32xf32>
    tpu.vector_store %arg21[%c0_47, %c32], %96 {strides = array<i32>} : memref<32x128xf32, #tpu.memory_space<vmem>>, vector<16x32xf32>,
    %98 = vector.extract_strided_slice %55 {offsets = [0, 64], sizes = [16, 32], strides = [1, 1]} : vector<32x128xbf16> to vector<16x32xbf16>
    %99 = vector.extract_strided_slice %56 {offsets = [0, 64], sizes = [16, 32], strides = [1, 1]} : vector<32x128xbf16> to vector<16x32xbf16>
    %cst_48 = arith.constant dense<0.000000e+00> : vector<16x16xf32>
    %100 = tpu.matmul %98, %99, %cst_48 {dimension_numbers = #tpu.dot_dimension_numbers<[1], [1], [0], [0], [0, 0, 1, 0], [], []>} : vector<16x32xbf16>, vector<16x32xbf16>, vector<16x16xf32> -> vector<16x16xf32>
    %cst_49 = arith.constant 0.176776692 : f32
    %101 = vector.broadcast %cst_49 : f32 to vector<16x16xf32>
    %102 = arith.mulf %100, %101 : vector<16x16xf32>
    %cst_50 = arith.constant -1.000000e+30 : f32
    %103 = vector.broadcast %cst_50 : f32 to vector<16x16xf32>
    %104 = arith.select %6, %102, %103 : vector<16x16xi1>, vector<16x16xf32>
    %cst_51 = arith.constant dense<0xFF800000> : vector<16xf32>
    %105 = vector.multi_reduction <maximumf>, %104, %cst_51 [1] : vector<16x16xf32> to vector<16xf32>
    %106 = vector.shape_cast %105 : vector<16xf32> to vector<16x1xf32>
    %107 = vector.broadcast %106 : vector<16x1xf32> to vector<16x16xf32>
    %108 = arith.subf %104, %107 : vector<16x16xf32>
    %109 = math.exp %108 : vector<16x16xf32>
    %cst_52 = arith.constant dense<0.000000e+00> : vector<16xf32>
    %110 = vector.multi_reduction <add>, %109, %cst_52 [1] : vector<16x16xf32> to vector<16xf32>
    %111 = vector.shape_cast %110 : vector<16xf32> to vector<16x1xf32>
    %112 = vector.broadcast %111 : vector<16x1xf32> to vector<16x16xf32>
    %113 = arith.divf %109, %112 : vector<16x16xf32>
    %114 = arith.truncf %113 : vector<16x16xf32> to vector<16x16xbf16>
    %115 = vector.extract_strided_slice %57 {offsets = [0, 64], sizes = [16, 32], strides = [1, 1]} : vector<32x128xbf16> to vector<16x32xbf16>
    %cst_53 = arith.constant dense<0.000000e+00> : vector<16x32xf32>
    %116 = tpu.matmul %114, %115, %cst_53 {dimension_numbers = #tpu.dot_dimension_numbers<[1], [0], [0], [1], [0, 0, 1, 1], [], []>} : vector<16x16xbf16>, vector<16x32xbf16>, vector<16x32xf32> -> vector<16x32xf32>
    %c0_54 = arith.constant 0 : index
    %c64 = arith.constant 64 : index
    %117 = vector.load %arg21[%c0_54, %c64] : memref<32x128xf32, #tpu.memory_space<vmem>>, vector<16x32xf32>
    tpu.vector_store %arg21[%c0_54, %c64], %116 {strides = array<i32>} : memref<32x128xf32, #tpu.memory_space<vmem>>, vector<16x32xf32>,
    %118 = vector.extract_strided_slice %55 {offsets = [0, 96], sizes = [16, 32], strides = [1, 1]} : vector<32x128xbf16> to vector<16x32xbf16>
    %119 = vector.extract_strided_slice %56 {offsets = [0, 96], sizes = [16, 32], strides = [1, 1]} : vector<32x128xbf16> to vector<16x32xbf16>
    %cst_55 = arith.constant dense<0.000000e+00> : vector<16x16xf32>
    %120 = tpu.matmul %118, %119, %cst_55 {dimension_numbers = #tpu.dot_dimension_numbers<[1], [1], [0], [0], [0, 0, 1, 0], [], []>} : vector<16x32xbf16>, vector<16x32xbf16>, vector<16x16xf32> -> vector<16x16xf32>
    %cst_56 = arith.constant 0.176776692 : f32
    %121 = vector.broadcast %cst_56 : f32 to vector<16x16xf32>
    %122 = arith.mulf %120, %121 : vector<16x16xf32>
    %cst_57 = arith.constant -1.000000e+30 : f32
    %123 = vector.broadcast %cst_57 : f32 to vector<16x16xf32>
    %124 = arith.select %6, %122, %123 : vector<16x16xi1>, vector<16x16xf32>
    %cst_58 = arith.constant dense<0xFF800000> : vector<16xf32>
    %125 = vector.multi_reduction <maximumf>, %124, %cst_58 [1] : vector<16x16xf32> to vector<16xf32>
    %126 = vector.shape_cast %125 : vector<16xf32> to vector<16x1xf32>
    %127 = vector.broadcast %126 : vector<16x1xf32> to vector<16x16xf32>
    %128 = arith.subf %124, %127 : vector<16x16xf32>
    %129 = math.exp %128 : vector<16x16xf32>
    %cst_59 = arith.constant dense<0.000000e+00> : vector<16xf32>
    %130 = vector.multi_reduction <add>, %129, %cst_59 [1] : vector<16x16xf32> to vector<16xf32>
    %131 = vector.shape_cast %130 : vector<16xf32> to vector<16x1xf32>
    %132 = vector.broadcast %131 : vector<16x1xf32> to vector<16x16xf32>
    %133 = arith.divf %129, %132 : vector<16x16xf32>
    %134 = arith.truncf %133 : vector<16x16xf32> to vector<16x16xbf16>
    %135 = vector.extract_strided_slice %57 {offsets = [0, 96], sizes = [16, 32], strides = [1, 1]} : vector<32x128xbf16> to vector<16x32xbf16>
    %cst_60 = arith.constant dense<0.000000e+00> : vector<16x32xf32>
    %136 = tpu.matmul %134, %135, %cst_60 {dimension_numbers = #tpu.dot_dimension_numbers<[1], [0], [0], [1], [0, 0, 1, 1], [], []>} : vector<16x16xbf16>, vector<16x32xbf16>, vector<16x32xf32> -> vector<16x32xf32>
    %c0_61 = arith.constant 0 : index
    %c96 = arith.constant 96 : index
    %137 = vector.load %arg21[%c0_61, %c96] : memref<32x128xf32, #tpu.memory_space<vmem>>, vector<16x32xf32>
    tpu.vector_store %arg21[%c0_61, %c96], %136 {strides = array<i32>} : memref<32x128xf32, #tpu.memory_space<vmem>>, vector<16x32xf32>,
    %138 = vector.extract_strided_slice %55 {offsets = [16, 0], sizes = [16, 32], strides = [1, 1]} : vector<32x128xbf16> to vector<16x32xbf16>
    %139 = vector.extract_strided_slice %56 {offsets = [16, 0], sizes = [16, 32], strides = [1, 1]} : vector<32x128xbf16> to vector<16x32xbf16>
    %cst_62 = arith.constant dense<0.000000e+00> : vector<16x16xf32>
    %140 = tpu.matmul %138, %139, %cst_62 {dimension_numbers = #tpu.dot_dimension_numbers<[1], [1], [0], [0], [0, 0, 1, 0], [], []>} : vector<16x32xbf16>, vector<16x32xbf16>, vector<16x16xf32> -> vector<16x16xf32>
    %cst_63 = arith.constant 0.176776692 : f32
    %141 = vector.broadcast %cst_63 : f32 to vector<16x16xf32>
    %142 = arith.mulf %140, %141 : vector<16x16xf32>
    %cst_64 = arith.constant -1.000000e+30 : f32
    %143 = vector.broadcast %cst_64 : f32 to vector<16x16xf32>
    %144 = arith.select %6, %142, %143 : vector<16x16xi1>, vector<16x16xf32>
    %cst_65 = arith.constant dense<0xFF800000> : vector<16xf32>
    %145 = vector.multi_reduction <maximumf>, %144, %cst_65 [1] : vector<16x16xf32> to vector<16xf32>
    %146 = vector.shape_cast %145 : vector<16xf32> to vector<16x1xf32>
    %147 = vector.broadcast %146 : vector<16x1xf32> to vector<16x16xf32>
    %148 = arith.subf %144, %147 : vector<16x16xf32>
    %149 = math.exp %148 : vector<16x16xf32>
    %cst_66 = arith.constant dense<0.000000e+00> : vector<16xf32>
    %150 = vector.multi_reduction <add>, %149, %cst_66 [1] : vector<16x16xf32> to vector<16xf32>
    %151 = vector.shape_cast %150 : vector<16xf32> to vector<16x1xf32>
    %152 = vector.broadcast %151 : vector<16x1xf32> to vector<16x16xf32>
    %153 = arith.divf %149, %152 : vector<16x16xf32>
    %154 = arith.truncf %153 : vector<16x16xf32> to vector<16x16xbf16>
    %155 = vector.extract_strided_slice %57 {offsets = [16, 0], sizes = [16, 32], strides = [1, 1]} : vector<32x128xbf16> to vector<16x32xbf16>
    %cst_67 = arith.constant dense<0.000000e+00> : vector<16x32xf32>
    %156 = tpu.matmul %154, %155, %cst_67 {dimension_numbers = #tpu.dot_dimension_numbers<[1], [0], [0], [1], [0, 0, 1, 1], [], []>} : vector<16x16xbf16>, vector<16x32xbf16>, vector<16x32xf32> -> vector<16x32xf32>
    %c16 = arith.constant 16 : index
    %c0_68 = arith.constant 0 : index
    %157 = vector.load %arg21[%c16, %c0_68] : memref<32x128xf32, #tpu.memory_space<vmem>>, vector<16x32xf32>
    tpu.vector_store %arg21[%c16, %c0_68], %156 {strides = array<i32>} : memref<32x128xf32, #tpu.memory_space<vmem>>, vector<16x32xf32>,
    %158 = vector.extract_strided_slice %55 {offsets = [16, 32], sizes = [16, 32], strides = [1, 1]} : vector<32x128xbf16> to vector<16x32xbf16>
    %159 = vector.extract_strided_slice %56 {offsets = [16, 32], sizes = [16, 32], strides = [1, 1]} : vector<32x128xbf16> to vector<16x32xbf16>
    %cst_69 = arith.constant dense<0.000000e+00> : vector<16x16xf32>
    %160 = tpu.matmul %158, %159, %cst_69 {dimension_numbers = #tpu.dot_dimension_numbers<[1], [1], [0], [0], [0, 0, 1, 0], [], []>} : vector<16x32xbf16>, vector<16x32xbf16>, vector<16x16xf32> -> vector<16x16xf32>
    %cst_70 = arith.constant 0.176776692 : f32
    %161 = vector.broadcast %cst_70 : f32 to vector<16x16xf32>
    %162 = arith.mulf %160, %161 : vector<16x16xf32>
    %cst_71 = arith.constant -1.000000e+30 : f32
    %163 = vector.broadcast %cst_71 : f32 to vector<16x16xf32>
    %164 = arith.select %6, %162, %163 : vector<16x16xi1>, vector<16x16xf32>
    %cst_72 = arith.constant dense<0xFF800000> : vector<16xf32>
    %165 = vector.multi_reduction <maximumf>, %164, %cst_72 [1] : vector<16x16xf32> to vector<16xf32>
    %166 = vector.shape_cast %165 : vector<16xf32> to vector<16x1xf32>
    %167 = vector.broadcast %166 : vector<16x1xf32> to vector<16x16xf32>
    %168 = arith.subf %164, %167 : vector<16x16xf32>
    %169 = math.exp %168 : vector<16x16xf32>
    %cst_73 = arith.constant dense<0.000000e+00> : vector<16xf32>
    %170 = vector.multi_reduction <add>, %169, %cst_73 [1] : vector<16x16xf32> to vector<16xf32>
    %171 = vector.shape_cast %170 : vector<16xf32> to vector<16x1xf32>
    %172 = vector.broadcast %171 : vector<16x1xf32> to vector<16x16xf32>
    %173 = arith.divf %169, %172 : vector<16x16xf32>
    %174 = arith.truncf %173 : vector<16x16xf32> to vector<16x16xbf16>
    %175 = vector.extract_strided_slice %57 {offsets = [16, 32], sizes = [16, 32], strides = [1, 1]} : vector<32x128xbf16> to vector<16x32xbf16>
    %cst_74 = arith.constant dense<0.000000e+00> : vector<16x32xf32>
    %176 = tpu.matmul %174, %175, %cst_74 {dimension_numbers = #tpu.dot_dimension_numbers<[1], [0], [0], [1], [0, 0, 1, 1], [], []>} : vector<16x16xbf16>, vector<16x32xbf16>, vector<16x32xf32> -> vector<16x32xf32>
    %c16_75 = arith.constant 16 : index
    %c32_76 = arith.constant 32 : index
    %177 = vector.load %arg21[%c16_75, %c32_76] : memref<32x128xf32, #tpu.memory_space<vmem>>, vector<16x32xf32>
    tpu.vector_store %arg21[%c16_75, %c32_76], %176 {strides = array<i32>} : memref<32x128xf32, #tpu.memory_space<vmem>>, vector<16x32xf32>,
    %178 = vector.extract_strided_slice %55 {offsets = [16, 64], sizes = [16, 32], strides = [1, 1]} : vector<32x128xbf16> to vector<16x32xbf16>
    %179 = vector.extract_strided_slice %56 {offsets = [16, 64], sizes = [16, 32], strides = [1, 1]} : vector<32x128xbf16> to vector<16x32xbf16>
    %cst_77 = arith.constant dense<0.000000e+00> : vector<16x16xf32>
    %180 = tpu.matmul %178, %179, %cst_77 {dimension_numbers = #tpu.dot_dimension_numbers<[1], [1], [0], [0], [0, 0, 1, 0], [], []>} : vector<16x32xbf16>, vector<16x32xbf16>, vector<16x16xf32> -> vector<16x16xf32>
    %cst_78 = arith.constant 0.176776692 : f32
    %181 = vector.broadcast %cst_78 : f32 to vector<16x16xf32>
    %182 = arith.mulf %180, %181 : vector<16x16xf32>
    %cst_79 = arith.constant -1.000000e+30 : f32
    %183 = vector.broadcast %cst_79 : f32 to vector<16x16xf32>
    %184 = arith.select %6, %182, %183 : vector<16x16xi1>, vector<16x16xf32>
    %cst_80 = arith.constant dense<0xFF800000> : vector<16xf32>
    %185 = vector.multi_reduction <maximumf>, %184, %cst_80 [1] : vector<16x16xf32> to vector<16xf32>
    %186 = vector.shape_cast %185 : vector<16xf32> to vector<16x1xf32>
    %187 = vector.broadcast %186 : vector<16x1xf32> to vector<16x16xf32>
    %188 = arith.subf %184, %187 : vector<16x16xf32>
    %189 = math.exp %188 : vector<16x16xf32>
    %cst_81 = arith.constant dense<0.000000e+00> : vector<16xf32>
    %190 = vector.multi_reduction <add>, %189, %cst_81 [1] : vector<16x16xf32> to vector<16xf32>
    %191 = vector.shape_cast %190 : vector<16xf32> to vector<16x1xf32>
    %192 = vector.broadcast %191 : vector<16x1xf32> to vector<16x16xf32>
    %193 = arith.divf %189, %192 : vector<16x16xf32>
    %194 = arith.truncf %193 : vector<16x16xf32> to vector<16x16xbf16>
    %195 = vector.extract_strided_slice %57 {offsets = [16, 64], sizes = [16, 32], strides = [1, 1]} : vector<32x128xbf16> to vector<16x32xbf16>
    %cst_82 = arith.constant dense<0.000000e+00> : vector<16x32xf32>
    %196 = tpu.matmul %194, %195, %cst_82 {dimension_numbers = #tpu.dot_dimension_numbers<[1], [0], [0], [1], [0, 0, 1, 1], [], []>} : vector<16x16xbf16>, vector<16x32xbf16>, vector<16x32xf32> -> vector<16x32xf32>
    %c16_83 = arith.constant 16 : index
    %c64_84 = arith.constant 64 : index
    %197 = vector.load %arg21[%c16_83, %c64_84] : memref<32x128xf32, #tpu.memory_space<vmem>>, vector<16x32xf32>
    tpu.vector_store %arg21[%c16_83, %c64_84], %196 {strides = array<i32>} : memref<32x128xf32, #tpu.memory_space<vmem>>, vector<16x32xf32>,
    %198 = vector.extract_strided_slice %55 {offsets = [16, 96], sizes = [16, 32], strides = [1, 1]} : vector<32x128xbf16> to vector<16x32xbf16>
    %199 = vector.extract_strided_slice %56 {offsets = [16, 96], sizes = [16, 32], strides = [1, 1]} : vector<32x128xbf16> to vector<16x32xbf16>
    %cst_85 = arith.constant dense<0.000000e+00> : vector<16x16xf32>
    %200 = tpu.matmul %198, %199, %cst_85 {dimension_numbers = #tpu.dot_dimension_numbers<[1], [1], [0], [0], [0, 0, 1, 0], [], []>} : vector<16x32xbf16>, vector<16x32xbf16>, vector<16x16xf32> -> vector<16x16xf32>
    %cst_86 = arith.constant 0.176776692 : f32
    %201 = vector.broadcast %cst_86 : f32 to vector<16x16xf32>
    %202 = arith.mulf %200, %201 : vector<16x16xf32>
    %cst_87 = arith.constant -1.000000e+30 : f32
    %203 = vector.broadcast %cst_87 : f32 to vector<16x16xf32>
    %204 = arith.select %6, %202, %203 : vector<16x16xi1>, vector<16x16xf32>
    %cst_88 = arith.constant dense<0xFF800000> : vector<16xf32>
    %205 = vector.multi_reduction <maximumf>, %204, %cst_88 [1] : vector<16x16xf32> to vector<16xf32>
    %206 = vector.shape_cast %205 : vector<16xf32> to vector<16x1xf32>
    %207 = vector.broadcast %206 : vector<16x1xf32> to vector<16x16xf32>
    %208 = arith.subf %204, %207 : vector<16x16xf32>
    %209 = math.exp %208 : vector<16x16xf32>
    %cst_89 = arith.constant dense<0.000000e+00> : vector<16xf32>
    %210 = vector.multi_reduction <add>, %209, %cst_89 [1] : vector<16x16xf32> to vector<16xf32>
    %211 = vector.shape_cast %210 : vector<16xf32> to vector<16x1xf32>
    %212 = vector.broadcast %211 : vector<16x1xf32> to vector<16x16xf32>
    %213 = arith.divf %209, %212 : vector<16x16xf32>
    %214 = arith.truncf %213 : vector<16x16xf32> to vector<16x16xbf16>
    %215 = vector.extract_strided_slice %57 {offsets = [16, 96], sizes = [16, 32], strides = [1, 1]} : vector<32x128xbf16> to vector<16x32xbf16>
    %cst_90 = arith.constant dense<0.000000e+00> : vector<16x32xf32>
    %216 = tpu.matmul %214, %215, %cst_90 {dimension_numbers = #tpu.dot_dimension_numbers<[1], [0], [0], [1], [0, 0, 1, 1], [], []>} : vector<16x16xbf16>, vector<16x32xbf16>, vector<16x32xf32> -> vector<16x32xf32>
    %c16_91 = arith.constant 16 : index
    %c96_92 = arith.constant 96 : index
    %217 = vector.load %arg21[%c16_91, %c96_92] : memref<32x128xf32, #tpu.memory_space<vmem>>, vector<16x32xf32>
    tpu.vector_store %arg21[%c16_91, %c96_92], %216 {strides = array<i32>} : memref<32x128xf32, #tpu.memory_space<vmem>>, vector<16x32xf32>,
    %c0_93 = arith.constant 0 : index
    %c0_94 = arith.constant 0 : index
    %218 = vector.load %arg21[%c0_93, %c0_94] : memref<32x128xf32, #tpu.memory_space<vmem>>, vector<32x128xf32>
    %c0_95 = arith.constant 0 : index
    %c0_96 = arith.constant 0 : index
    %c0_97 = arith.constant 0 : index
    %219 = vector.load %arg10[%c0_95, %c0_96, %c0_97] : memref<1x128x128xbf16, #tpu.memory_space<vmem>>, vector<1x128x128xbf16>
    %220 = vector.shape_cast %219 : vector<1x128x128xbf16> to vector<128x128xbf16>
    %221 = arith.truncf %218 : vector<32x128xf32> to vector<32x128xbf16>
    %cst_98 = arith.constant dense<0.000000e+00> : vector<32x128xf32>
    %222 = tpu.matmul %221, %220, %cst_98 {dimension_numbers = #tpu.dot_dimension_numbers<[1], [0], [0], [1], [0, 0, 1, 1], [], []>} : vector<32x128xbf16>, vector<128x128xbf16>, vector<32x128xf32> -> vector<32x128xf32>
    %223 = arith.addf %3, %222 : vector<32x128xf32>
    %c0_99 = arith.constant 0 : index
    %c0_100 = arith.constant 0 : index
    %c0_101 = arith.constant 0 : index
    %224 = vector.load %arg11[%c0_99, %c0_100, %c0_101] : memref<1x1x128xf32, #tpu.memory_space<vmem>>, vector<1x1x128xf32>
    %225 = vector.shape_cast %224 : vector<1x1x128xf32> to vector<1x128xf32>
    %226 = vector.broadcast %225 : vector<1x128xf32> to vector<32x128xf32>
    %227 = arith.addf %223, %226 : vector<32x128xf32>
    %c0_102 = arith.constant 0 : index
    %c0_103 = arith.constant 0 : index
    %c0_104 = arith.constant 0 : index
    %228 = vector.load %arg12[%c0_102, %c0_103, %c0_104] : memref<1x1x128xf32, #tpu.memory_space<vmem>>, vector<1x1x128xf32>
    %229 = vector.shape_cast %228 : vector<1x1x128xf32> to vector<1x128xf32>
    %c0_105 = arith.constant 0 : index
    %c0_106 = arith.constant 0 : index
    %c0_107 = arith.constant 0 : index
    %230 = vector.load %arg13[%c0_105, %c0_106, %c0_107] : memref<1x1x128xf32, #tpu.memory_space<vmem>>, vector<1x1x128xf32>
    %231 = vector.shape_cast %230 : vector<1x1x128xf32> to vector<1x128xf32>
    %cst_108 = arith.constant dense<0.000000e+00> : vector<32xf32>
    %232 = vector.multi_reduction <add>, %227, %cst_108 [1] : vector<32x128xf32> to vector<32xf32>
    %233 = vector.shape_cast %232 : vector<32xf32> to vector<32x1xf32>
    %cst_109 = arith.constant 1.280000e+02 : f32
    %234 = vector.broadcast %cst_109 : f32 to vector<32x1xf32>
    %235 = arith.divf %233, %234 : vector<32x1xf32>
    %236 = vector.broadcast %235 : vector<32x1xf32> to vector<32x128xf32>
    %237 = arith.subf %227, %236 : vector<32x128xf32>
    %238 = arith.mulf %237, %237 : vector<32x128xf32>
    %cst_110 = arith.constant dense<0.000000e+00> : vector<32xf32>
    %239 = vector.multi_reduction <add>, %238, %cst_110 [1] : vector<32x128xf32> to vector<32xf32>
    %240 = vector.shape_cast %239 : vector<32xf32> to vector<32x1xf32>
    %cst_111 = arith.constant 1.280000e+02 : f32
    %241 = vector.broadcast %cst_111 : f32 to vector<32x1xf32>
    %242 = arith.divf %240, %241 : vector<32x1xf32>
    %243 = vector.broadcast %235 : vector<32x1xf32> to vector<32x128xf32>
    %244 = arith.subf %227, %243 : vector<32x128xf32>
    %cst_112 = arith.constant 9.99999974E-6 : f32
    %245 = vector.broadcast %cst_112 : f32 to vector<32x1xf32>
    %246 = arith.addf %242, %245 : vector<32x1xf32>
    %247 = math.rsqrt %246 : vector<32x1xf32>
    %248 = vector.broadcast %247 : vector<32x1xf32> to vector<32x128xf32>
    %249 = arith.mulf %244, %248 : vector<32x128xf32>
    %250 = vector.broadcast %229 : vector<1x128xf32> to vector<32x128xf32>
    %251 = arith.mulf %249, %250 : vector<32x128xf32>
    %252 = vector.broadcast %231 : vector<1x128xf32> to vector<32x128xf32>
    %253 = arith.addf %251, %252 : vector<32x128xf32>
    %254 = arith.truncf %253 : vector<32x128xf32> to vector<32x128xbf16>
    %c0_113 = arith.constant 0 : index
    %c0_114 = arith.constant 0 : index
    %c0_115 = arith.constant 0 : index
    %255 = vector.load %arg14[%c0_113, %c0_114, %c0_115] : memref<1x128x512xbf16, #tpu.memory_space<vmem>>, vector<1x128x512xbf16>
    %256 = vector.shape_cast %255 : vector<1x128x512xbf16> to vector<128x512xbf16>
    %cst_116 = arith.constant dense<0.000000e+00> : vector<32x512xf32>
    %257 = tpu.matmul %254, %256, %cst_116 {dimension_numbers = #tpu.dot_dimension_numbers<[1], [0], [0], [1], [0, 0, 1, 1], [], []>} : vector<32x128xbf16>, vector<128x512xbf16>, vector<32x512xf32> -> vector<32x512xf32>
    %c0_117 = arith.constant 0 : index
    %c0_118 = arith.constant 0 : index
    %c0_119 = arith.constant 0 : index
    %258 = vector.load %arg15[%c0_117, %c0_118, %c0_119] : memref<1x1x512xf32, #tpu.memory_space<vmem>>, vector<1x1x512xf32>
    %259 = vector.shape_cast %258 : vector<1x1x512xf32> to vector<1x512xf32>
    %260 = vector.broadcast %259 : vector<1x512xf32> to vector<32x512xf32>
    %261 = arith.addf %257, %260 : vector<32x512xf32>
    %cst_120 = arith.constant -1.702000e+00 : f32
    %262 = vector.broadcast %cst_120 : f32 to vector<32x512xf32>
    %263 = arith.mulf %262, %261 : vector<32x512xf32>
    %264 = math.exp %263 : vector<32x512xf32>
    %cst_121 = arith.constant 1.000000e+00 : f32
    %265 = vector.broadcast %cst_121 : f32 to vector<32x512xf32>
    %266 = arith.addf %265, %264 : vector<32x512xf32>
    %cst_122 = arith.constant 1.000000e+00 : f32
    %267 = vector.broadcast %cst_122 : f32 to vector<32x512xf32>
    %268 = arith.divf %267, %266 : vector<32x512xf32>
    %269 = arith.mulf %261, %268 : vector<32x512xf32>
    %c0_123 = arith.constant 0 : index
    %c0_124 = arith.constant 0 : index
    %c0_125 = arith.constant 0 : index
    %270 = vector.load %arg16[%c0_123, %c0_124, %c0_125] : memref<1x512x128xbf16, #tpu.memory_space<vmem>>, vector<1x512x128xbf16>
    %271 = vector.shape_cast %270 : vector<1x512x128xbf16> to vector<512x128xbf16>
    %272 = arith.truncf %269 : vector<32x512xf32> to vector<32x512xbf16>
    %cst_126 = arith.constant dense<0.000000e+00> : vector<32x128xf32>
    %273 = tpu.matmul %272, %271, %cst_126 {dimension_numbers = #tpu.dot_dimension_numbers<[1], [0], [0], [1], [0, 0, 1, 1], [], []>} : vector<32x512xbf16>, vector<512x128xbf16>, vector<32x128xf32> -> vector<32x128xf32>
    %274 = arith.addf %227, %273 : vector<32x128xf32>
    %c0_127 = arith.constant 0 : index
    %c0_128 = arith.constant 0 : index
    %c0_129 = arith.constant 0 : index
    %275 = vector.load %arg17[%c0_127, %c0_128, %c0_129] : memref<1x1x128xf32, #tpu.memory_space<vmem>>, vector<1x1x128xf32>
    %276 = vector.shape_cast %275 : vector<1x1x128xf32> to vector<1x128xf32>
    %277 = vector.broadcast %276 : vector<1x128xf32> to vector<32x128xf32>
    %278 = arith.addf %274, %277 : vector<32x128xf32>
    %c0_130 = arith.constant 0 : index
    %c0_131 = arith.constant 0 : index
    %279 = vector.load %arg20[%c0_130, %c0_131] : memref<32x128xf32, #tpu.memory_space<vmem>>, vector<32x128xf32>
    tpu.vector_store %arg20[%c0_130, %c0_131], %278 {strides = array<i32>} : memref<32x128xf32, #tpu.memory_space<vmem>>, vector<32x128xf32>,
    %c2_i32 = arith.constant 2 : i32
    %280 = arith.cmpi eq, %arg0, %c2_i32 : i32
    %281 = arith.extui %280 : i1 to i32
    %c0_i32_132 = arith.constant 0 : i32
    %282 = arith.cmpi ne, %281, %c0_i32_132 : i32
    scf.if %282 {
      %c0_133 = arith.constant 0 : index
      %c0_134 = arith.constant 0 : index
      %283 = vector.load %arg18[%c0_133, %c0_134] : memref<1x128xf32, #tpu.memory_space<vmem>>, vector<1x128xf32>
      %c0_135 = arith.constant 0 : index
      %c0_136 = arith.constant 0 : index
      %284 = vector.load %arg19[%c0_135, %c0_136] : memref<1x128xf32, #tpu.memory_space<vmem>>, vector<1x128xf32>
      %cst_137 = arith.constant dense<0.000000e+00> : vector<32xf32>
      %285 = vector.multi_reduction <add>, %278, %cst_137 [1] : vector<32x128xf32> to vector<32xf32>
      %286 = vector.shape_cast %285 : vector<32xf32> to vector<32x1xf32>
      %cst_138 = arith.constant 1.280000e+02 : f32
      %287 = vector.broadcast %cst_138 : f32 to vector<32x1xf32>
      %288 = arith.divf %286, %287 : vector<32x1xf32>
      %289 = vector.broadcast %288 : vector<32x1xf32> to vector<32x128xf32>
      %290 = arith.subf %278, %289 : vector<32x128xf32>
      %291 = arith.mulf %290, %290 : vector<32x128xf32>
      %cst_139 = arith.constant dense<0.000000e+00> : vector<32xf32>
      %292 = vector.multi_reduction <add>, %291, %cst_139 [1] : vector<32x128xf32> to vector<32xf32>
      %293 = vector.shape_cast %292 : vector<32xf32> to vector<32x1xf32>
      %cst_140 = arith.constant 1.280000e+02 : f32
      %294 = vector.broadcast %cst_140 : f32 to vector<32x1xf32>
      %295 = arith.divf %293, %294 : vector<32x1xf32>
      %296 = vector.broadcast %288 : vector<32x1xf32> to vector<32x128xf32>
      %297 = arith.subf %278, %296 : vector<32x128xf32>
      %cst_141 = arith.constant 9.99999974E-6 : f32
      %298 = vector.broadcast %cst_141 : f32 to vector<32x1xf32>
      %299 = arith.addf %295, %298 : vector<32x1xf32>
      %300 = math.rsqrt %299 : vector<32x1xf32>
      %301 = vector.broadcast %300 : vector<32x1xf32> to vector<32x128xf32>
      %302 = arith.mulf %297, %301 : vector<32x128xf32>
      %303 = vector.broadcast %283 : vector<1x128xf32> to vector<32x128xf32>
      %304 = arith.mulf %302, %303 : vector<32x128xf32>
      %305 = vector.broadcast %284 : vector<1x128xf32> to vector<32x128xf32>
      %306 = arith.addf %304, %305 : vector<32x128xf32>
      %c0_142 = arith.constant 0 : index
      %c0_143 = arith.constant 0 : index
      %307 = vector.load %arg20[%c0_142, %c0_143] : memref<32x128xf32, #tpu.memory_space<vmem>>, vector<32x128xf32>
      tpu.vector_store %arg20[%c0_142, %c0_143], %306 {strides = array<i32>} : memref<32x128xf32, #tpu.memory_space<vmem>>, vector<32x128xf32>,
    } else {
    }
    return
  }
  func.func @transform_0(%arg0: i32) -> (i32, i32) {
    %c0_i32 = arith.constant 0 : i32
    %c0_i32_0 = arith.constant 0 : i32
    %c0_i32_1 = arith.constant 0 : i32
    return %c0_i32, %c0_i32_0 : i32, i32
  }
  func.func @transform_1(%arg0: i32) -> (i32, i32, i32) {
    %c0_i32 = arith.constant 0 : i32
    %c0_i32_0 = arith.constant 0 : i32
    %c0_i32_1 = arith.constant 0 : i32
    return %arg0, %c0_i32, %c0_i32_0 : i32, i32, i32
  }
  func.func @transform_2(%arg0: i32) -> (i32, i32, i32) {
    %c0_i32 = arith.constant 0 : i32
    %c0_i32_0 = arith.constant 0 : i32
    %c0_i32_1 = arith.constant 0 : i32
    return %arg0, %c0_i32, %c0_i32_0 : i32, i32, i32
  }
  func.func @transform_3(%arg0: i32) -> (i32, i32, i32) {
    %c0_i32 = arith.constant 0 : i32
    %c0_i32_0 = arith.constant 0 : i32
    %c0_i32_1 = arith.constant 0 : i32
    return %arg0, %c0_i32, %c0_i32_0 : i32, i32, i32
  }
  func.func @transform_4(%arg0: i32) -> (i32, i32, i32) {
    %c0_i32 = arith.constant 0 : i32
    %c0_i32_0 = arith.constant 0 : i32
    %c0_i32_1 = arith.constant 0 : i32
    return %arg0, %c0_i32, %c0_i32_0 : i32, i32, i32
  }
  func.func @transform_5(%arg0: i32) -> (i32, i32, i32) {
    %c0_i32 = arith.constant 0 : i32
    %c0_i32_0 = arith.constant 0 : i32
    %c0_i32_1 = arith.constant 0 : i32
    return %arg0, %c0_i32, %c0_i32_0 : i32, i32, i32
  }
  func.func @transform_6(%arg0: i32) -> (i32, i32, i32) {
    %c0_i32 = arith.constant 0 : i32
    %c0_i32_0 = arith.constant 0 : i32
    %c0_i32_1 = arith.constant 0 : i32
    return %arg0, %c0_i32, %c0_i32_0 : i32, i32, i32
  }
  func.func @transform_7(%arg0: i32) -> (i32, i32, i32) {
    %c0_i32 = arith.constant 0 : i32
    %c0_i32_0 = arith.constant 0 : i32
    %c0_i32_1 = arith.constant 0 : i32
    return %arg0, %c0_i32, %c0_i32_0 : i32, i32, i32
  }
  func.func @transform_8(%arg0: i32) -> (i32, i32, i32) {
    %c0_i32 = arith.constant 0 : i32
    %c0_i32_0 = arith.constant 0 : i32
    %c0_i32_1 = arith.constant 0 : i32
    return %arg0, %c0_i32, %c0_i32_0 : i32, i32, i32
  }
  func.func @transform_9(%arg0: i32) -> (i32, i32, i32) {
    %c0_i32 = arith.constant 0 : i32
    %c0_i32_0 = arith.constant 0 : i32
    %c0_i32_1 = arith.constant 0 : i32
    return %arg0, %c0_i32, %c0_i32_0 : i32, i32, i32
  }
  func.func @transform_10(%arg0: i32) -> (i32, i32, i32) {
    %c0_i32 = arith.constant 0 : i32
    %c0_i32_0 = arith.constant 0 : i32
    %c0_i32_1 = arith.constant 0 : i32
    return %arg0, %c0_i32, %c0_i32_0 : i32, i32, i32
  }
  func.func @transform_11(%arg0: i32) -> (i32, i32, i32) {
    %c0_i32 = arith.constant 0 : i32
    %c0_i32_0 = arith.constant 0 : i32
    %c0_i32_1 = arith.constant 0 : i32
    return %arg0, %c0_i32, %c0_i32_0 : i32, i32, i32
  }
  func.func @transform_12(%arg0: i32) -> (i32, i32, i32) {
    %c0_i32 = arith.constant 0 : i32
    %c0_i32_0 = arith.constant 0 : i32
    %c0_i32_1 = arith.constant 0 : i32
    return %arg0, %c0_i32, %c0_i32_0 : i32, i32, i32
  }
  func.func @transform_13(%arg0: i32) -> (i32, i32, i32) {
    %c0_i32 = arith.constant 0 : i32
    %c0_i32_0 = arith.constant 0 : i32
    %c0_i32_1 = arith.constant 0 : i32
    return %arg0, %c0_i32, %c0_i32_0 : i32, i32, i32
  }
  func.func @transform_14(%arg0: i32) -> (i32, i32, i32) {
    %c0_i32 = arith.constant 0 : i32
    %c0_i32_0 = arith.constant 0 : i32
    %c0_i32_1 = arith.constant 0 : i32
    return %arg0, %c0_i32, %c0_i32_0 : i32, i32, i32
  }
  func.func @transform_15(%arg0: i32) -> (i32, i32, i32) {
    %c0_i32 = arith.constant 0 : i32
    %c0_i32_0 = arith.constant 0 : i32
    %c0_i32_1 = arith.constant 0 : i32
    return %arg0, %c0_i32, %c0_i32_0 : i32, i32, i32
  }
  func.func @transform_16(%arg0: i32) -> (i32, i32, i32) {
    %c0_i32 = arith.constant 0 : i32
    %c0_i32_0 = arith.constant 0 : i32
    %c0_i32_1 = arith.constant 0 : i32
    return %arg0, %c0_i32, %c0_i32_0 : i32, i32, i32
  }
  func.func @transform_17(%arg0: i32) -> (i32, i32) {
    %c0_i32 = arith.constant 0 : i32
    %c0_i32_0 = arith.constant 0 : i32
    %c0_i32_1 = arith.constant 0 : i32
    return %c0_i32, %c0_i32_0 : i32, i32
  }
  func.func @transform_18(%arg0: i32) -> (i32, i32) {
    %c0_i32 = arith.constant 0 : i32
    %c0_i32_0 = arith.constant 0 : i32
    %c0_i32_1 = arith.constant 0 : i32
    return %c0_i32, %c0_i32_0 : i32, i32
  }
  func.func @transform_19(%arg0: i32) -> (i32, i32) {
    %c0_i32 = arith.constant 0 : i32
    %c0_i32_0 = arith.constant 0 : i32
    %c0_i32_1 = arith.constant 0 : i32
    return %c0_i32, %c0_i32_0 : i32, i32
  }
}

</mosaic_0001>

<llo_original>
// kernel: tpu_custom_call.1
$region0: #{tpu_custom_call.1}
  #allocation0 [shape = 'u32[]', space=smem, size = 0x4, offset = 0x4, fixed_abs, tag = 'smem constant byte address 0x4 - core index']
  #allocation1 [shape = 'u32[144,128]{1,0:T(1,128)}', space=vmem, size = 0x12000, scoped, tag = 'internal scratch']
  #allocation2 [shape = 'f32[32,128]{1,0:T(8,128)}', space=vmem, size = 0x4000, scoped, tag = 'scratch operand']
  %s0 = inlined_call_operand.hbm [shape: f32[32,128], index: 0, kind: input, shape index: {}]
  %s1 = inlined_call_operand.vmem [shape: f32[3,1,128], index: 1, kind: input, shape index: {}]
  %s2 = inlined_call_operand.vmem [shape: f32[3,1,128], index: 2, kind: input, shape index: {}]
  %s3 = inlined_call_operand.hbm [shape: bf16[3,128,128], index: 3, kind: input, shape index: {}]
  %s4 = inlined_call_operand.vmem [shape: f32[3,1,128], index: 4, kind: input, shape index: {}]
  %s5 = inlined_call_operand.hbm [shape: bf16[3,128,128], index: 5, kind: input, shape index: {}]
  %s6 = inlined_call_operand.hbm [shape: f32[3,1,128], index: 6, kind: input, shape index: {}]
  %s7 = inlined_call_operand.hbm [shape: bf16[3,128,128], index: 7, kind: input, shape index: {}]
  %s8 = inlined_call_operand.vmem [shape: f32[3,1,128], index: 8, kind: input, shape index: {}]
  %s9 = inlined_call_operand.hbm [shape: bf16[3,128,128], index: 9, kind: input, shape index: {}]
  %s10 = inlined_call_operand.vmem [shape: f32[3,1,128], index: 10, kind: input, shape index: {}]
  %s11 = inlined_call_operand.vmem [shape: f32[3,1,128], index: 11, kind: input, shape index: {}]
  %s12 = inlined_call_operand.vmem [shape: f32[3,1,128], index: 12, kind: input, shape index: {}]
  %s13 = inlined_call_operand.hbm [shape: bf16[3,128,512], index: 13, kind: input, shape index: {}]
  %s14 = inlined_call_operand.vmem [shape: f32[3,1,512], index: 14, kind: input, shape index: {}]
  %s15 = inlined_call_operand.hbm [shape: bf16[3,512,128], index: 15, kind: input, shape index: {}]
  %s16 = inlined_call_operand.vmem [shape: f32[3,1,128], index: 16, kind: input, shape index: {}]
  %s17 = inlined_call_operand.vmem [shape: f32[1,128], index: 17, kind: input, shape index: {}]
  %s18 = inlined_call_operand.vmem [shape: f32[1,128], index: 18, kind: input, shape index: {}]
  %s19 = inlined_call_operand.hbm [shape: f32[32,128], index: 19, kind: output, shape index: {}]
  %s20 = sld [smem:[#allocation0]]
  $region149: #{tpu_custom_call.1} parent=0
    _
  %s22 = ssub.s32 1, %s20
  %s23 = scalar_select 0, %s22, %s20
  $region1: #{tpu_custom_call.1} parent=0
    #allocation3 [shape = 'u8[16384]{0}', space=vmem, size = 0x4000, scoped, tag = 'input window, operand 0, single buffered']
    #allocation4 [shape = 's32[2]{0}', space=sflag, size = 0x8, scoped, tag = 'scoped memory for tpu_custom_call.1']
    #allocation5 [shape = 's32[2]{0}', space=sflag, size = 0x8, scoped, tag = 'scoped memory for tpu_custom_call.1']
    #allocation6 [shape = 'u8[65536]{0}', space=vmem, size = 0x10000, scoped, tag = 'input window, operand 3']
    #allocation7 [shape = 's32[2]{0}', space=sflag, size = 0x8, scoped, tag = 'scoped memory for tpu_custom_call.1']
    #allocation8 [shape = 'u8[65536]{0}', space=vmem, size = 0x10000, scoped, tag = 'input window, operand 5']
    #allocation9 [shape = 'u8[1024]{0}', space=vmem, size = 0x400, scoped, tag = 'input window, operand 6']
    #allocation10 [shape = 's32[2]{0}', space=sflag, size = 0x8, scoped, tag = 'scoped memory for tpu_custom_call.1']
    #allocation11 [shape = 'u8[65536]{0}', space=vmem, size = 0x10000, scoped, tag = 'input window, operand 7']
    #allocation12 [shape = 'u8[65536]{0}', space=vmem, size = 0x10000, scoped, tag = 'input window, operand 9']
    #allocation13 [shape = 's32[2]{0}', space=sflag, size = 0x8, scoped, tag = 'scoped memory for tpu_custom_call.1']
    #allocation14 [shape = 'u8[262144]{0}', space=vmem, size = 0x40000, scoped, tag = 'input window, operand 13']
    #allocation15 [shape = 'u8[262144]{0}', space=vmem, size = 0x40000, scoped, tag = 'input window, operand 15']
    #allocation16 [shape = 's32[2]{0}', space=sflag, size = 0x8, scoped, tag = 'scoped memory for tpu_custom_call.1']
    #allocation17 [shape = 'u8[16384]{0}', space=vmem, size = 0x4000, scoped, tag = 'output window, operand 0, single buffered']
    %24 = vsyncpa [#allocation4], 0
    %25 = vsyncpa [#allocation7], 0
    %s26 = scalar_lea.sflag [#allocation7], 1
    %27 = vsyncpa %s26, 0
    %28 = vsyncpa [#allocation10], 0
    %s29 = scalar_lea.sflag [#allocation10], 1
    %30 = vsyncpa %s29, 0
    %31 = vsyncpa [#allocation13], 0
    %s32 = scalar_lea.sflag [#allocation13], 1
    %33 = vsyncpa %s32, 0
    %34 = vsyncpa [#allocation16], 0
    %s35 = scalar_lea.sflag [#allocation16], 1
    %36 = vsyncpa %s35, 0
    %37 = vsyncpa [#allocation5], 0
    loop: start=0, step=1, limit=5
    $region2: #{tpu_custom_call.1} parent=1 // loop_pre_header
      _
    $region3: #{tpu_custom_call.1} parent=1 // loop_header
      %s39 = sphi 0, %s43
      %p40 = scmp.ge.s32.totalorder %s39, 5
      %s47 = sphi 0, %s47
      %s49 = sphi 0, %s47
      %s50 = sphi 0, %s49
      %s64 = sphi 0, %s50
      %s70 = sphi 0, %s72
      %s73 = sphi 0, %s70
      %s74 = sphi 0, %s73
      %s90 = sphi 0, %s74
      %s96 = sphi 0, %s98
      %s99 = sphi 0, %s96
      %s100 = sphi 0, %s99
      %s116 = sphi 0, %s100
      %s122 = sphi 0, %s124
      %s125 = sphi 0, %s122
      %s126 = sphi 0, %s125
      %s142 = sphi 0, %s126
      %s148 = sphi 0, %s150
      %s151 = sphi 0, %s148
      %s152 = sphi 0, %s151
      %s168 = sphi 0, %s152
      %s174 = sphi 0, %s176
      %s177 = sphi 0, %s174
      %s178 = sphi 0, %s177
      %s194 = sphi 0, %s178
      %s200 = sphi 0, %s202
      %s203 = sphi 0, %s200
      %s204 = sphi 0, %s203
      %s220 = sphi 0, %s204
      %s226 = sphi 0, %s228
      %s229 = sphi 0, %s226
      %s230 = sphi 0, %s229
      %s246 = sphi 0, %s230
      %s252 = sphi 0, %s254
      %s255 = sphi 0, %s252
      %s256 = sphi 0, %s255
      %s272 = sphi 0, %s256
      %s278 = sphi 0, %s280
      %s281 = sphi 0, %s278
      %s282 = sphi 0, %s281
      %s298 = sphi 0, %s282
      %s304 = sphi 0, %s306
      %s307 = sphi 0, %s304
      %s308 = sphi 0, %s307
      %s324 = sphi 0, %s308
      %s330 = sphi 0, %s332
      %s333 = sphi 0, %s330
      %s334 = sphi 0, %s333
      %s350 = sphi 0, %s334
      %s356 = sphi 0, %s358
      %s359 = sphi 0, %s356
      %s360 = sphi 0, %s359
      %s376 = sphi 0, %s360
      %s382 = sphi 0, %s384
      %s385 = sphi 0, %s382
      %s386 = sphi 0, %s385
      %s402 = sphi 0, %s386
      %s408 = sphi 0, %s410
      %s411 = sphi 0, %s408
      %s412 = sphi 0, %s411
      %s428 = sphi 0, %s412
      %s434 = sphi 0, %s436
      %s437 = sphi 0, %s434
      %s438 = sphi 0, %s437
      %s454 = sphi 0, %s438
      %s460 = sphi 0, %s462
      %s463 = sphi 0, %s460
      %s464 = sphi 0, %s463
      %s480 = sphi 0, %s464
      %s484 = sphi 0, %s484
      %s486 = sphi 0, %s484
      %s487 = sphi 0, %s486
      %s501 = sphi 0, %s487
      %s505 = sphi 0, %s505
      %s507 = sphi 0, %s505
      %s508 = sphi 0, %s507
      %s522 = sphi 0, %s508
      %s526 = sphi 0, %s526
      %s528 = sphi 0, %s526
      %s529 = sphi 0, %s528
      %s543 = sphi 0, %s529
    $region4: #{tpu_custom_call.1} parent=1 // loop_header_branch
      %42 = sbr.rel (%p40) target = $region8
    $region5: #{tpu_custom_call.1} parent=1 // loop_body
      %s44 = ssub.s32 %s39, 1
      %s45 = ssub.s32 %s39, 2
      %s46 = sadd.s32 %s39, 1
      %s48 = sadd.s32 %s47, 1
      %p51 = scmp.eq.s32.totalorder %s39, 2
      %p52 = scmp.ne.s32.totalorder %s47, %s49
      %p53 = scmp.eq.s32.totalorder %s39, 0
      %p54 = por %p52, %p53
      %p55 = scmp.ne.s32.totalorder %s47, %s49
      %p56 = scmp.eq.s32.totalorder %s44, 2
      %p57 = por %p55, %p56
      %p58 = scmp.ne.s32.totalorder %s49, %s50
      %p59 = scmp.eq.s32.totalorder %s44, 0
      %p60 = por %p58, %p59
      %p61 = scmp.ne.s32.totalorder %s49, %s50
      %p62 = scmp.eq.s32.totalorder %s45, 2
      %p63 = por %p61, %p62
      %p65 = scmp.ne.s32.totalorder %s50, %s64
      %p66 = scmp.eq.s32.totalorder %s45, 0
      %p67 = por %p65, %p66
      %s68 = ssub.s32 %s39, %s46
      %p69 = scmp.eq.s32.totalorder %s68, 0
      %s71 = sadd.s32 %s70, 1
      %s72 = scalar_select %p69, %s70, %s71
      %p75 = pneg %p69
      %p76 = scmp.eq.s32.totalorder %s39, 2
      %p77 = por %p75, %p76
      %p78 = scmp.ne.s32.totalorder %s70, %s73
      %p79 = scmp.eq.s32.totalorder %s39, 0
      %p80 = por %p78, %p79
      %p81 = scmp.ne.s32.totalorder %s70, %s73
      %p82 = scmp.eq.s32.totalorder %s44, 2
      %p83 = por %p81, %p82
      %p84 = scmp.ne.s32.totalorder %s73, %s74
      %p85 = scmp.eq.s32.totalorder %s44, 0
      %p86 = por %p84, %p85
      %p87 = scmp.ne.s32.totalorder %s73, %s74
      %p88 = scmp.eq.s32.totalorder %s45, 2
      %p89 = por %p87, %p88
      %p91 = scmp.ne.s32.totalorder %s74, %s90
      %p92 = scmp.eq.s32.totalorder %s45, 0
      %p93 = por %p91, %p92
      %s94 = ssub.s32 %s39, %s46
      %p95 = scmp.eq.s32.totalorder %s94, 0
      %s97 = sadd.s32 %s96, 1
      %s98 = scalar_select %p95, %s96, %s97
      %p101 = pneg %p95
      %p102 = scmp.eq.s32.totalorder %s39, 2
      %p103 = por %p101, %p102
      %p104 = scmp.ne.s32.totalorder %s96, %s99
      %p105 = scmp.eq.s32.totalorder %s39, 0
      %p106 = por %p104, %p105
      %p107 = scmp.ne.s32.totalorder %s96, %s99
      %p108 = scmp.eq.s32.totalorder %s44, 2
      %p109 = por %p107, %p108
      %p110 = scmp.ne.s32.totalorder %s99, %s100
      %p111 = scmp.eq.s32.totalorder %s44, 0
      %p112 = por %p110, %p111
      %p113 = scmp.ne.s32.totalorder %s99, %s100
      %p114 = scmp.eq.s32.totalorder %s45, 2
      %p115 = por %p113, %p114
      %p117 = scmp.ne.s32.totalorder %s100, %s116
      %p118 = scmp.eq.s32.totalorder %s45, 0
      %p119 = por %p117, %p118
      %s120 = ssub.s32 %s39, %s46
      %p121 = scmp.eq.s32.totalorder %s120, 0
      %s123 = sadd.s32 %s122, 1
      %s124 = scalar_select %p121, %s122, %s123
      %p127 = pneg %p121
      %p128 = scmp.eq.s32.totalorder %s39, 2
      %p129 = por %p127, %p128
      %p130 = scmp.ne.s32.totalorder %s122, %s125
      %p131 = scmp.eq.s32.totalorder %s39, 0
      %p132 = por %p130, %p131
      %p133 = scmp.ne.s32.totalorder %s122, %s125
      %p134 = scmp.eq.s32.totalorder %s44, 2
      %p135 = por %p133, %p134
      %p136 = scmp.ne.s32.totalorder %s125, %s126
      %p137 = scmp.eq.s32.totalorder %s44, 0
      %p138 = por %p136, %p137
      %p139 = scmp.ne.s32.totalorder %s125, %s126
      %p140 = scmp.eq.s32.totalorder %s45, 2
      %p141 = por %p139, %p140
      %p143 = scmp.ne.s32.totalorder %s126, %s142
      %p144 = scmp.eq.s32.totalorder %s45, 0
      %p145 = por %p143, %p144
      %s146 = ssub.s32 %s39, %s46
      %p147 = scmp.eq.s32.totalorder %s146, 0
      %s149 = sadd.s32 %s148, 1
      %s150 = scalar_select %p147, %s148, %s149
      %p153 = pneg %p147
      %p154 = scmp.eq.s32.totalorder %s39, 2
      %p155 = por %p153, %p154
      %p156 = scmp.ne.s32.totalorder %s148, %s151
      %p157 = scmp.eq.s32.totalorder %s39, 0
      %p158 = por %p156, %p157
      %p159 = scmp.ne.s32.totalorder %s148, %s151
      %p160 = scmp.eq.s32.totalorder %s44, 2
      %p161 = por %p159, %p160
      %p162 = scmp.ne.s32.totalorder %s151, %s152
      %p163 = scmp.eq.s32.totalorder %s44, 0
      %p164 = por %p162, %p163
      %p165 = scmp.ne.s32.totalorder %s151, %s152
      %p166 = scmp.eq.s32.totalorder %s45, 2
      %p167 = por %p165, %p166
      %p169 = scmp.ne.s32.totalorder %s152, %s168
      %p170 = scmp.eq.s32.totalorder %s45, 0
      %p171 = por %p169, %p170
      %s172 = ssub.s32 %s39, %s46
      %p173 = scmp.eq.s32.totalorder %s172, 0
      %s175 = sadd.s32 %s174, 1
      %s176 = scalar_select %p173, %s174, %s175
      %p179 = pneg %p173
      %p180 = scmp.eq.s32.totalorder %s39, 2
      %p181 = por %p179, %p180
      %p182 = scmp.ne.s32.totalorder %s174, %s177
      %p183 = scmp.eq.s32.totalorder %s39, 0
      %p184 = por %p182, %p183
      %p185 = scmp.ne.s32.totalorder %s174, %s177
      %p186 = scmp.eq.s32.totalorder %s44, 2
      %p187 = por %p185, %p186
      %p188 = scmp.ne.s32.totalorder %s177, %s178
      %p189 = scmp.eq.s32.totalorder %s44, 0
      %p190 = por %p188, %p189
      %p191 = scmp.ne.s32.totalorder %s177, %s178
      %p192 = scmp.eq.s32.totalorder %s45, 2
      %p193 = por %p191, %p192
      %p195 = scmp.ne.s32.totalorder %s178, %s194
      %p196 = scmp.eq.s32.totalorder %s45, 0
      %p197 = por %p195, %p196
      %s198 = ssub.s32 %s39, %s46
      %p199 = scmp.eq.s32.totalorder %s198, 0
      %s201 = sadd.s32 %s200, 1
      %s202 = scalar_select %p199, %s200, %s201
      %p205 = pneg %p199
      %p206 = scmp.eq.s32.totalorder %s39, 2
      %p207 = por %p205, %p206
      %p208 = scmp.ne.s32.totalorder %s200, %s203
      %p209 = scmp.eq.s32.totalorder %s39, 0
      %p210 = por %p208, %p209
      %p211 = scmp.ne.s32.totalorder %s200, %s203
      %p212 = scmp.eq.s32.totalorder %s44, 2
      %p213 = por %p211, %p212
      %p214 = scmp.ne.s32.totalorder %s203, %s204
      %p215 = scmp.eq.s32.totalorder %s44, 0
      %p216 = por %p214, %p215
      %p217 = scmp.ne.s32.totalorder %s203, %s204
      %p218 = scmp.eq.s32.totalorder %s45, 2
      %p219 = por %p217, %p218
      %p221 = scmp.ne.s32.totalorder %s204, %s220
      %p222 = scmp.eq.s32.totalorder %s45, 0
      %p223 = por %p221, %p222
      %s224 = ssub.s32 %s39, %s46
      %p225 = scmp.eq.s32.totalorder %s224, 0
      %s227 = sadd.s32 %s226, 1
      %s228 = scalar_select %p225, %s226, %s227
      %p231 = pneg %p225
      %p232 = scmp.eq.s32.totalorder %s39, 2
      %p233 = por %p231, %p232
      %p234 = scmp.ne.s32.totalorder %s226, %s229
      %p235 = scmp.eq.s32.totalorder %s39, 0
      %p236 = por %p234, %p235
      %p237 = scmp.ne.s32.totalorder %s226, %s229
      %p238 = scmp.eq.s32.totalorder %s44, 2
      %p239 = por %p237, %p238
      %p240 = scmp.ne.s32.totalorder %s229, %s230
      %p241 = scmp.eq.s32.totalorder %s44, 0
      %p242 = por %p240, %p241
      %p243 = scmp.ne.s32.totalorder %s229, %s230
      %p244 = scmp.eq.s32.totalorder %s45, 2
      %p245 = por %p243, %p244
      %p247 = scmp.ne.s32.totalorder %s230, %s246
      %p248 = scmp.eq.s32.totalorder %s45, 0
      %p249 = por %p247, %p248
      %s250 = ssub.s32 %s39, %s46
      %p251 = scmp.eq.s32.totalorder %s250, 0
      %s253 = sadd.s32 %s252, 1
      %s254 = scalar_select %p251, %s252, %s253
      %p257 = pneg %p251
      %p258 = scmp.eq.s32.totalorder %s39, 2
      %p259 = por %p257, %p258
      %p260 = scmp.ne.s32.totalorder %s252, %s255
      %p261 = scmp.eq.s32.totalorder %s39, 0
      %p262 = por %p260, %p261
      %p263 = scmp.ne.s32.totalorder %s252, %s255
      %p264 = scmp.eq.s32.totalorder %s44, 2
      %p265 = por %p263, %p264
      %p266 = scmp.ne.s32.totalorder %s255, %s256
      %p267 = scmp.eq.s32.totalorder %s44, 0
      %p268 = por %p266, %p267
      %p269 = scmp.ne.s32.totalorder %s255, %s256
      %p270 = scmp.eq.s32.totalorder %s45, 2
      %p271 = por %p269, %p270
      %p273 = scmp.ne.s32.totalorder %s256, %s272
      %p274 = scmp.eq.s32.totalorder %s45, 0
      %p275 = por %p273, %p274
      %s276 = ssub.s32 %s39, %s46
      %p277 = scmp.eq.s32.totalorder %s276, 0
      %s279 = sadd.s32 %s278, 1
      %s280 = scalar_select %p277, %s278, %s279
      %p283 = pneg %p277
      %p284 = scmp.eq.s32.totalorder %s39, 2
      %p285 = por %p283, %p284
      %p286 = scmp.ne.s32.totalorder %s278, %s281
      %p287 = scmp.eq.s32.totalorder %s39, 0
      %p288 = por %p286, %p287
      %p289 = scmp.ne.s32.totalorder %s278, %s281
      %p290 = scmp.eq.s32.totalorder %s44, 2
      %p291 = por %p289, %p290
      %p292 = scmp.ne.s32.totalorder %s281, %s282
      %p293 = scmp.eq.s32.totalorder %s44, 0
      %p294 = por %p292, %p293
      %p295 = scmp.ne.s32.totalorder %s281, %s282
      %p296 = scmp.eq.s32.totalorder %s45, 2
      %p297 = por %p295, %p296
      %p299 = scmp.ne.s32.totalorder %s282, %s298
      %p300 = scmp.eq.s32.totalorder %s45, 0
      %p301 = por %p299, %p300
      %s302 = ssub.s32 %s39, %s46
      %p303 = scmp.eq.s32.totalorder %s302, 0
      %s305 = sadd.s32 %s304, 1
      %s306 = scalar_select %p303, %s304, %s305
      %p309 = pneg %p303
      %p310 = scmp.eq.s32.totalorder %s39, 2
      %p311 = por %p309, %p310
      %p312 = scmp.ne.s32.totalorder %s304, %s307
      %p313 = scmp.eq.s32.totalorder %s39, 0
      %p314 = por %p312, %p313
      %p315 = scmp.ne.s32.totalorder %s304, %s307
      %p316 = scmp.eq.s32.totalorder %s44, 2
      %p317 = por %p315, %p316
      %p318 = scmp.ne.s32.totalorder %s307, %s308
      %p319 = scmp.eq.s32.totalorder %s44, 0
      %p320 = por %p318, %p319
      %p321 = scmp.ne.s32.totalorder %s307, %s308
      %p322 = scmp.eq.s32.totalorder %s45, 2
      %p323 = por %p321, %p322
      %p325 = scmp.ne.s32.totalorder %s308, %s324
      %p326 = scmp.eq.s32.totalorder %s45, 0
      %p327 = por %p325, %p326
      %s328 = ssub.s32 %s39, %s46
      %p329 = scmp.eq.s32.totalorder %s328, 0
      %s331 = sadd.s32 %s330, 1
      %s332 = scalar_select %p329, %s330, %s331
      %p335 = pneg %p329
      %p336 = scmp.eq.s32.totalorder %s39, 2
      %p337 = por %p335, %p336
      %p338 = scmp.ne.s32.totalorder %s330, %s333
      %p339 = scmp.eq.s32.totalorder %s39, 0
      %p340 = por %p338, %p339
      %p341 = scmp.ne.s32.totalorder %s330, %s333
      %p342 = scmp.eq.s32.totalorder %s44, 2
      %p343 = por %p341, %p342
      %p344 = scmp.ne.s32.totalorder %s333, %s334
      %p345 = scmp.eq.s32.totalorder %s44, 0
      %p346 = por %p344, %p345
      %p347 = scmp.ne.s32.totalorder %s333, %s334
      %p348 = scmp.eq.s32.totalorder %s45, 2
      %p349 = por %p347, %p348
      %p351 = scmp.ne.s32.totalorder %s334, %s350
      %p352 = scmp.eq.s32.totalorder %s45, 0
      %p353 = por %p351, %p352
      %s354 = ssub.s32 %s39, %s46
      %p355 = scmp.eq.s32.totalorder %s354, 0
      %s357 = sadd.s32 %s356, 1
      %s358 = scalar_select %p355, %s356, %s357
      %p361 = pneg %p355
      %p362 = scmp.eq.s32.totalorder %s39, 2
      %p363 = por %p361, %p362
      %p364 = scmp.ne.s32.totalorder %s356, %s359
      %p365 = scmp.eq.s32.totalorder %s39, 0
      %p366 = por %p364, %p365
      %p367 = scmp.ne.s32.totalorder %s356, %s359
      %p368 = scmp.eq.s32.totalorder %s44, 2
      %p369 = por %p367, %p368
      %p370 = scmp.ne.s32.totalorder %s359, %s360
      %p371 = scmp.eq.s32.totalorder %s44, 0
      %p372 = por %p370, %p371
      %p373 = scmp.ne.s32.totalorder %s359, %s360
      %p374 = scmp.eq.s32.totalorder %s45, 2
      %p375 = por %p373, %p374
      %p377 = scmp.ne.s32.totalorder %s360, %s376
      %p378 = scmp.eq.s32.totalorder %s45, 0
      %p379 = por %p377, %p378
      %s380 = ssub.s32 %s39, %s46
      %p381 = scmp.eq.s32.totalorder %s380, 0
      %s383 = sadd.s32 %s382, 1
      %s384 = scalar_select %p381, %s382, %s383
      %p387 = pneg %p381
      %p388 = scmp.eq.s32.totalorder %s39, 2
      %p389 = por %p387, %p388
      %p390 = scmp.ne.s32.totalorder %s382, %s385
      %p391 = scmp.eq.s32.totalorder %s39, 0
      %p392 = por %p390, %p391
      %p393 = scmp.ne.s32.totalorder %s382, %s385
      %p394 = scmp.eq.s32.totalorder %s44, 2
      %p395 = por %p393, %p394
      %p396 = scmp.ne.s32.totalorder %s385, %s386
      %p397 = scmp.eq.s32.totalorder %s44, 0
      %p398 = por %p396, %p397
      %p399 = scmp.ne.s32.totalorder %s385, %s386
      %p400 = scmp.eq.s32.totalorder %s45, 2
      %p401 = por %p399, %p400
      %p403 = scmp.ne.s32.totalorder %s386, %s402
      %p404 = scmp.eq.s32.totalorder %s45, 0
      %p405 = por %p403, %p404
      %s406 = ssub.s32 %s39, %s46
      %p407 = scmp.eq.s32.totalorder %s406, 0
      %s409 = sadd.s32 %s408, 1
      %s410 = scalar_select %p407, %s408, %s409
      %p413 = pneg %p407
      %p414 = scmp.eq.s32.totalorder %s39, 2
      %p415 = por %p413, %p414
      %p416 = scmp.ne.s32.totalorder %s408, %s411
      %p417 = scmp.eq.s32.totalorder %s39, 0
      %p418 = por %p416, %p417
      %p419 = scmp.ne.s32.totalorder %s408, %s411
      %p420 = scmp.eq.s32.totalorder %s44, 2
      %p421 = por %p419, %p420
      %p422 = scmp.ne.s32.totalorder %s411, %s412
      %p423 = scmp.eq.s32.totalorder %s44, 0
      %p424 = por %p422, %p423
      %p425 = scmp.ne.s32.totalorder %s411, %s412
      %p426 = scmp.eq.s32.totalorder %s45, 2
      %p427 = por %p425, %p426
      %p429 = scmp.ne.s32.totalorder %s412, %s428
      %p430 = scmp.eq.s32.totalorder %s45, 0
      %p431 = por %p429, %p430
      %s432 = ssub.s32 %s39, %s46
      %p433 = scmp.eq.s32.totalorder %s432, 0
      %s435 = sadd.s32 %s434, 1
      %s436 = scalar_select %p433, %s434, %s435
      %p439 = pneg %p433
      %p440 = scmp.eq.s32.totalorder %s39, 2
      %p441 = por %p439, %p440
      %p442 = scmp.ne.s32.totalorder %s434, %s437
      %p443 = scmp.eq.s32.totalorder %s39, 0
      %p444 = por %p442, %p443
      %p445 = scmp.ne.s32.totalorder %s434, %s437
      %p446 = scmp.eq.s32.totalorder %s44, 2
      %p447 = por %p445, %p446
      %p448 = scmp.ne.s32.totalorder %s437, %s438
      %p449 = scmp.eq.s32.totalorder %s44, 0
      %p450 = por %p448, %p449
      %p451 = scmp.ne.s32.totalorder %s437, %s438
      %p452 = scmp.eq.s32.totalorder %s45, 2
      %p453 = por %p451, %p452
      %p455 = scmp.ne.s32.totalorder %s438, %s454
      %p456 = scmp.eq.s32.totalorder %s45, 0
      %p457 = por %p455, %p456
      %s458 = ssub.s32 %s39, %s46
      %p459 = scmp.eq.s32.totalorder %s458, 0
      %s461 = sadd.s32 %s460, 1
      %s462 = scalar_select %p459, %s460, %s461
      %p465 = pneg %p459
      %p466 = scmp.eq.s32.totalorder %s39, 2
      %p467 = por %p465, %p466
      %p468 = scmp.ne.s32.totalorder %s460, %s463
      %p469 = scmp.eq.s32.totalorder %s39, 0
      %p470 = por %p468, %p469
      %p471 = scmp.ne.s32.totalorder %s460, %s463
      %p472 = scmp.eq.s32.totalorder %s44, 2
      %p473 = por %p471, %p472
      %p474 = scmp.ne.s32.totalorder %s463, %s464
      %p475 = scmp.eq.s32.totalorder %s44, 0
      %p476 = por %p474, %p475
      %p477 = scmp.ne.s32.totalorder %s463, %s464
      %p478 = scmp.eq.s32.totalorder %s45, 2
      %p479 = por %p477, %p478
      %p481 = scmp.ne.s32.totalorder %s464, %s480
      %p482 = scmp.eq.s32.totalorder %s45, 0
      %p483 = por %p481, %p482
      %s485 = sadd.s32 %s484, 1
      %p488 = scmp.eq.s32.totalorder %s39, 2
      %p489 = scmp.ne.s32.totalorder %s484, %s486
      %p490 = scmp.eq.s32.totalorder %s39, 0
      %p491 = por %p489, %p490
      %p492 = scmp.ne.s32.totalorder %s484, %s486
      %p493 = scmp.eq.s32.totalorder %s44, 2
      %p494 = por %p492, %p493
      %p495 = scmp.ne.s32.totalorder %s486, %s487
      %p496 = scmp.eq.s32.totalorder %s44, 0
      %p497 = por %p495, %p496
      %p498 = scmp.ne.s32.totalorder %s486, %s487
      %p499 = scmp.eq.s32.totalorder %s45, 2
      %p500 = por %p498, %p499
      %p502 = scmp.ne.s32.totalorder %s487, %s501
      %p503 = scmp.eq.s32.totalorder %s45, 0
      %p504 = por %p502, %p503
      %s506 = sadd.s32 %s505, 1
      %p509 = scmp.eq.s32.totalorder %s39, 2
      %p510 = scmp.ne.s32.totalorder %s505, %s507
      %p511 = scmp.eq.s32.totalorder %s39, 0
      %p512 = por %p510, %p511
      %p513 = scmp.ne.s32.totalorder %s505, %s507
      %p514 = scmp.eq.s32.totalorder %s44, 2
      %p515 = por %p513, %p514
      %p516 = scmp.ne.s32.totalorder %s507, %s508
      %p517 = scmp.eq.s32.totalorder %s44, 0
      %p518 = por %p516, %p517
      %p519 = scmp.ne.s32.totalorder %s507, %s508
      %p520 = scmp.eq.s32.totalorder %s45, 2
      %p521 = por %p519, %p520
      %p523 = scmp.ne.s32.totalorder %s508, %s522
      %p524 = scmp.eq.s32.totalorder %s45, 0
      %p525 = por %p523, %p524
      %s527 = sadd.s32 %s526, 1
      %p530 = scmp.eq.s32.totalorder %s39, 2
      %p531 = scmp.ne.s32.totalorder %s526, %s528
      %p532 = scmp.eq.s32.totalorder %s39, 0
      %p533 = por %p531, %p532
      %p534 = scmp.ne.s32.totalorder %s526, %s528
      %p535 = scmp.eq.s32.totalorder %s44, 2
      %p536 = por %p534, %p535
      %p537 = scmp.ne.s32.totalorder %s528, %s529
      %p538 = scmp.eq.s32.totalorder %s44, 0
      %p539 = por %p537, %p538
      %p540 = scmp.ne.s32.totalorder %s528, %s529
      %p541 = scmp.eq.s32.totalorder %s45, 2
      %p542 = por %p540, %p541
      %p544 = scmp.ne.s32.totalorder %s529, %s543
      %p545 = scmp.eq.s32.totalorder %s45, 0
      %p546 = por %p544, %p545
      %p547 = scmp.le.s32.totalorder 1, %s39
      %p548 = scmp.lt.s32.totalorder %s39, 4
      %p549 = pnand %p547, %p548
      %p550 = pneg %p549
      // Predicated region
      $region9: #{tpu_custom_call.1} parent=5 // pred_check
        _
      $region10: #{tpu_custom_call.1} parent=5 // pred_check_branch
        %552 = sbr.rel (%p549) target = $region12
      $region11: #{tpu_custom_call.1} parent=5 // pred_region
        %s553 = ssub.s32 %s39, 1
        // Predicated region
        $region13: #{tpu_custom_call.1} parent=11 // pred_check
          %p554 = pneg %p60
        $region14: #{tpu_custom_call.1} parent=11 // pred_check_branch
          %556 = sbr.rel (%p554) target = $region16
        $region15: #{tpu_custom_call.1} parent=11 // pred_region
          %s558 = ssub.s32 512, 512
          %559 = vsyncadd [#allocation4], %s558
          %s560 = sshll.u32 [#allocation3], 4
          %s561 = int_to_ptr.vmem [resolvable:$true] %s560
          %566 = dma.hbm_to_vmem [thread:$0]  %s0, 512, %s561, [#allocation4], 128, 128, 8
        $region16: #{tpu_custom_call.1} parent=11 // pred_fallthru
          _
        // Predicated region
        $region17: #{tpu_custom_call.1} parent=11 // pred_check
          %p567 = pneg %p497
        $region18: #{tpu_custom_call.1} parent=11 // pred_check_branch
          %569 = sbr.rel (%p567) target = $region20
        $region19: #{tpu_custom_call.1} parent=11 // pred_region
          _
        $region20: #{tpu_custom_call.1} parent=11 // pred_fallthru
          _
        // Predicated region
        $region21: #{tpu_custom_call.1} parent=11 // pred_check
          %p570 = pneg %p518
        $region22: #{tpu_custom_call.1} parent=11 // pred_check_branch
          %572 = sbr.rel (%p570) target = $region24
        $region23: #{tpu_custom_call.1} parent=11 // pred_region
          _
        $region24: #{tpu_custom_call.1} parent=11 // pred_fallthru
          _
      $region12: #{tpu_custom_call.1} parent=5 // pred_fallthru
        _
      %p573 = scmp.lt.s32.totalorder %s39, 3
      // Predicated region
      $region25: #{tpu_custom_call.1} parent=5 // pred_check
        %p574 = pneg %p573
      $region26: #{tpu_custom_call.1} parent=5 // pred_check_branch
        %576 = sbr.rel (%p574) target = $region28
      $region27: #{tpu_custom_call.1} parent=5 // pred_region
        // Predicated region
        $region29: #{tpu_custom_call.1} parent=27 // pred_check
          %p577 = pneg %p80
        $region30: #{tpu_custom_call.1} parent=27 // pred_check_branch
          %579 = sbr.rel (%p577) target = $region32
        $region31: #{tpu_custom_call.1} parent=27 // pred_region
          %p580 = scmp.lt.s32.totalorder %s39, 2
          %s581 = scalar_select %p580, %s39, 2
          %s582 = scalar_lea.vmem %s1, %s581
        $region32: #{tpu_custom_call.1} parent=27 // pred_fallthru
          _
        // Predicated region
        $region33: #{tpu_custom_call.1} parent=27 // pred_check
          %p583 = pneg %p106
        $region34: #{tpu_custom_call.1} parent=27 // pred_check_branch
          %585 = sbr.rel (%p583) target = $region36
        $region35: #{tpu_custom_call.1} parent=27 // pred_region
          %p586 = scmp.lt.s32.totalorder %s39, 2
          %s587 = scalar_select %p586, %s39, 2
          %s588 = scalar_lea.vmem %s2, %s587
        $region36: #{tpu_custom_call.1} parent=27 // pred_fallthru
          _
        // Predicated region
        $region37: #{tpu_custom_call.1} parent=27 // pred_check
          %p589 = pneg %p132
        $region38: #{tpu_custom_call.1} parent=27 // pred_check_branch
          %591 = sbr.rel (%p589) target = $region40
        $region39: #{tpu_custom_call.1} parent=27 // pred_region
          %s592 = sand.u32 %s39, 1
          %s593 = scalar_lea.sflag [#allocation7], %s592
          %s594 = sand.u32 %s122, 1
          %s595 = smul.addr %s594, 64
          %s596 = scalar_lea.vmem [#allocation6], %s595
          %s598 = ssub.s32 1024, 1024
          %599 = vsyncadd %s593, %s598
          %s600 = smul.addr %s39, 16
          %s601 = smul.addr %s600, 64
          %s602 = scalar_lea.hbm %s3, %s601
          %s603 = sshll.u32 %s596, 4
          %s604 = int_to_ptr.vmem [resolvable:$true] %s603
          %609 = dma.hbm_to_vmem [thread:$0]  %s602, 1024, %s604, %s593, 64, 64, 4
        $region40: #{tpu_custom_call.1} parent=27 // pred_fallthru
          _
        // Predicated region
        $region41: #{tpu_custom_call.1} parent=27 // pred_check
          %p610 = pneg %p158
        $region42: #{tpu_custom_call.1} parent=27 // pred_check_branch
          %612 = sbr.rel (%p610) target = $region44
        $region43: #{tpu_custom_call.1} parent=27 // pred_region
          %p613 = scmp.lt.s32.totalorder %s39, 2
          %s614 = scalar_select %p613, %s39, 2
          %s615 = scalar_lea.vmem %s4, %s614
        $region44: #{tpu_custom_call.1} parent=27 // pred_fallthru
          _
        // Predicated region
        $region45: #{tpu_custom_call.1} parent=27 // pred_check
          %p616 = pneg %p184
        $region46: #{tpu_custom_call.1} parent=27 // pred_check_branch
          %618 = sbr.rel (%p616) target = $region48
        $region47: #{tpu_custom_call.1} parent=27 // pred_region
          %s619 = sand.u32 %s39, 1
          %s620 = scalar_lea.sflag [#allocation7], %s619
          %s621 = sand.u32 %s174, 1
          %s622 = smul.addr %s621, 64
          %s623 = scalar_lea.vmem [#allocation8], %s622
          %s625 = ssub.s32 1024, 1024
          %626 = vsyncadd %s620, %s625
          %s627 = smul.addr %s39, 16
          %s628 = smul.addr %s627, 64
          %s629 = scalar_lea.hbm %s5, %s628
          %s630 = sshll.u32 %s623, 4
          %s631 = int_to_ptr.vmem [resolvable:$true] %s630
          %636 = dma.hbm_to_vmem [thread:$0]  %s629, 1024, %s631, %s620, 64, 64, 4
        $region48: #{tpu_custom_call.1} parent=27 // pred_fallthru
          _
        // Predicated region
        $region49: #{tpu_custom_call.1} parent=27 // pred_check
          %p637 = pneg %p210
        $region50: #{tpu_custom_call.1} parent=27 // pred_check_branch
          %639 = sbr.rel (%p637) target = $region52
        $region51: #{tpu_custom_call.1} parent=27 // pred_region
          %s640 = sand.u32 %s39, 1
          %s641 = scalar_lea.sflag [#allocation10], %s640
          %s642 = sand.u32 %s200, 1
          %s643 = scalar_lea.vmem [#allocation9], %s642
          %s645 = ssub.s32 16, 16
          %646 = vsyncadd %s641, %s645
          %s647 = smul.addr %s39, 16
          %s648 = scalar_lea.hbm %s6, %s647
          %s650 = sshll.u32 %s643, 4
          %s651 = int_to_ptr.vmem [resolvable:$true] %s650
          %653 = dma.hbm_to_vmem [thread:$0]  %s648, 16, %s651, %s641
        $region52: #{tpu_custom_call.1} parent=27 // pred_fallthru
          _
        // Predicated region
        $region53: #{tpu_custom_call.1} parent=27 // pred_check
          %p654 = pneg %p236
        $region54: #{tpu_custom_call.1} parent=27 // pred_check_branch
          %656 = sbr.rel (%p654) target = $region56
        $region55: #{tpu_custom_call.1} parent=27 // pred_region
          %s657 = sand.u32 %s39, 1
          %s658 = scalar_lea.sflag [#allocation10], %s657
          %s659 = sand.u32 %s226, 1
          %s660 = smul.addr %s659, 64
          %s661 = scalar_lea.vmem [#allocation11], %s660
          %s663 = ssub.s32 1024, 1024
          %664 = vsyncadd %s658, %s663
          %s665 = smul.addr %s39, 16
          %s666 = smul.addr %s665, 64
          %s667 = scalar_lea.hbm %s7, %s666
          %s668 = sshll.u32 %s661, 4
          %s669 = int_to_ptr.vmem [resolvable:$true] %s668
          %674 = dma.hbm_to_vmem [thread:$0]  %s667, 1024, %s669, %s658, 64, 64, 4
        $region56: #{tpu_custom_call.1} parent=27 // pred_fallthru
          _
        // Predicated region
        $region57: #{tpu_custom_call.1} parent=27 // pred_check
          %p675 = pneg %p262
        $region58: #{tpu_custom_call.1} parent=27 // pred_check_branch
          %677 = sbr.rel (%p675) target = $region60
        $region59: #{tpu_custom_call.1} parent=27 // pred_region
          %p678 = scmp.lt.s32.totalorder %s39, 2
          %s679 = scalar_select %p678, %s39, 2
          %s680 = scalar_lea.vmem %s8, %s679
        $region60: #{tpu_custom_call.1} parent=27 // pred_fallthru
          _
        // Predicated region
        $region61: #{tpu_custom_call.1} parent=27 // pred_check
          %p681 = pneg %p288
        $region62: #{tpu_custom_call.1} parent=27 // pred_check_branch
          %683 = sbr.rel (%p681) target = $region64
        $region63: #{tpu_custom_call.1} parent=27 // pred_region
          %s684 = sand.u32 %s39, 1
          %s685 = scalar_lea.sflag [#allocation13], %s684
          %s686 = sand.u32 %s278, 1
          %s687 = smul.addr %s686, 64
          %s688 = scalar_lea.vmem [#allocation12], %s687
          %s690 = ssub.s32 1024, 1024
          %691 = vsyncadd %s685, %s690
          %s692 = smul.addr %s39, 16
          %s693 = smul.addr %s692, 64
          %s694 = scalar_lea.hbm %s9, %s693
          %s695 = sshll.u32 %s688, 4
          %s696 = int_to_ptr.vmem [resolvable:$true] %s695
          %701 = dma.hbm_to_vmem [thread:$0]  %s694, 1024, %s696, %s685, 64, 64, 4
        $region64: #{tpu_custom_call.1} parent=27 // pred_fallthru
          _
        // Predicated region
        $region65: #{tpu_custom_call.1} parent=27 // pred_check
          %p702 = pneg %p314
        $region66: #{tpu_custom_call.1} parent=27 // pred_check_branch
          %704 = sbr.rel (%p702) target = $region68
        $region67: #{tpu_custom_call.1} parent=27 // pred_region
          %p705 = scmp.lt.s32.totalorder %s39, 2
          %s706 = scalar_select %p705, %s39, 2
          %s707 = scalar_lea.vmem %s10, %s706
        $region68: #{tpu_custom_call.1} parent=27 // pred_fallthru
          _
        // Predicated region
        $region69: #{tpu_custom_call.1} parent=27 // pred_check
          %p708 = pneg %p340
        $region70: #{tpu_custom_call.1} parent=27 // pred_check_branch
          %710 = sbr.rel (%p708) target = $region72
        $region71: #{tpu_custom_call.1} parent=27 // pred_region
          %p711 = scmp.lt.s32.totalorder %s39, 2
          %s712 = scalar_select %p711, %s39, 2
          %s713 = scalar_lea.vmem %s11, %s712
        $region72: #{tpu_custom_call.1} parent=27 // pred_fallthru
          _
        // Predicated region
        $region73: #{tpu_custom_call.1} parent=27 // pred_check
          %p714 = pneg %p366
        $region74: #{tpu_custom_call.1} parent=27 // pred_check_branch
          %716 = sbr.rel (%p714) target = $region76
        $region75: #{tpu_custom_call.1} parent=27 // pred_region
          %p717 = scmp.lt.s32.totalorder %s39, 2
          %s718 = scalar_select %p717, %s39, 2
          %s719 = scalar_lea.vmem %s12, %s718
        $region76: #{tpu_custom_call.1} parent=27 // pred_fallthru
          _
        // Predicated region
        $region77: #{tpu_custom_call.1} parent=27 // pred_check
          %p720 = pneg %p392
        $region78: #{tpu_custom_call.1} parent=27 // pred_check_branch
          %722 = sbr.rel (%p720) target = $region80
        $region79: #{tpu_custom_call.1} parent=27 // pred_region
          %s723 = sand.u32 %s39, 1
          %s724 = scalar_lea.sflag [#allocation13], %s723
          %s725 = sand.u32 %s382, 1
          %s726 = smul.addr %s725, 256
          %s727 = scalar_lea.vmem [#allocation14], %s726
          %s729 = ssub.s32 4096, 4096
          %730 = vsyncadd %s724, %s729
          %s731 = smul.addr %s39, 64
          %s732 = smul.addr %s731, 64
          %s733 = scalar_lea.hbm %s13, %s732
          %s734 = sshll.u32 %s727, 4
          %s735 = int_to_ptr.vmem [resolvable:$true] %s734
          %740 = dma.hbm_to_vmem [thread:$0]  %s733, 4096, %s735, %s724, 256, 256, 16
        $region80: #{tpu_custom_call.1} parent=27 // pred_fallthru
          _
        // Predicated region
        $region81: #{tpu_custom_call.1} parent=27 // pred_check
          %p741 = pneg %p418
        $region82: #{tpu_custom_call.1} parent=27 // pred_check_branch
          %743 = sbr.rel (%p741) target = $region84
        $region83: #{tpu_custom_call.1} parent=27 // pred_region
          %p744 = scmp.lt.s32.totalorder %s39, 2
          %s745 = scalar_select %p744, %s39, 2
          %s746 = smul.addr %s745, 4
          %s747 = scalar_lea.vmem %s14, %s746
        $region84: #{tpu_custom_call.1} parent=27 // pred_fallthru
          _
        // Predicated region
        $region85: #{tpu_custom_call.1} parent=27 // pred_check
          %p748 = pneg %p444
        $region86: #{tpu_custom_call.1} parent=27 // pred_check_branch
          %750 = sbr.rel (%p748) target = $region88
        $region87: #{tpu_custom_call.1} parent=27 // pred_region
          %s751 = sand.u32 %s434, 1
          %s752 = scalar_lea.sflag [#allocation16], %s751
          %s753 = sand.u32 %s434, 1
          %s754 = smul.addr %s753, 256
          %s755 = scalar_lea.vmem [#allocation15], %s754
          %s757 = ssub.s32 4096, 4096
          %758 = vsyncadd %s752, %s757
          %s759 = smul.addr %s39, 64
          %s760 = smul.addr %s759, 64
          %s761 = scalar_lea.hbm %s15, %s760
          %s762 = sshll.u32 %s755, 4
          %s763 = int_to_ptr.vmem [resolvable:$true] %s762
          %768 = dma.hbm_to_vmem [thread:$0]  %s761, 4096, %s763, %s752, 64, 64, 4
        $region88: #{tpu_custom_call.1} parent=27 // pred_fallthru
          _
        // Predicated region
        $region89: #{tpu_custom_call.1} parent=27 // pred_check
          %p769 = pneg %p470
        $region90: #{tpu_custom_call.1} parent=27 // pred_check_branch
          %771 = sbr.rel (%p769) target = $region92
        $region91: #{tpu_custom_call.1} parent=27 // pred_region
          %p772 = scmp.lt.s32.totalorder %s39, 2
          %s773 = scalar_select %p772, %s39, 2
          %s774 = scalar_lea.vmem %s16, %s773
        $region92: #{tpu_custom_call.1} parent=27 // pred_fallthru
          _
      $region28: #{tpu_custom_call.1} parent=5 // pred_fallthru
        _
      %p775 = scmp.le.s32.totalorder 1, %s39
      %p776 = scmp.lt.s32.totalorder %s39, 4
      %p777 = pnand %p775, %p776
      %p778 = pneg %p777
      // Predicated region
      $region93: #{tpu_custom_call.1} parent=5 // pred_check
        _
      $region94: #{tpu_custom_call.1} parent=5 // pred_check_branch
        %780 = sbr.rel (%p777) target = $region96
      $region95: #{tpu_custom_call.1} parent=5 // pred_region
        %s781 = ssub.s32 %s39, 1
        // Predicated region
        $region97: #{tpu_custom_call.1} parent=95 // pred_check
          %p782 = pneg %p60
        $region98: #{tpu_custom_call.1} parent=95 // pred_check_branch
          %784 = sbr.rel (%p782) target = $region100
        $region99: #{tpu_custom_call.1} parent=95 // pred_region
          %785 = dma.done [#allocation4], 512
        $region100: #{tpu_custom_call.1} parent=95 // pred_fallthru
          _
        %s786 = sand.u32 %s44, 1
        %s787 = scalar_lea.sflag [#allocation7], %s786
        %s788 = sand.u32 %s125, 1
        %s789 = smul.addr %s788, 64
        %s790 = scalar_lea.vmem [#allocation6], %s789
        // Predicated region
        $region101: #{tpu_custom_call.1} parent=95 // pred_check
          %p791 = pneg %p138
        $region102: #{tpu_custom_call.1} parent=95 // pred_check_branch
          %793 = sbr.rel (%p791) target = $region104
        $region103: #{tpu_custom_call.1} parent=95 // pred_region
          %794 = dma.done %s787, 1024
        $region104: #{tpu_custom_call.1} parent=95 // pred_fallthru
          _
        %s795 = sand.u32 %s44, 1
        %s796 = scalar_lea.sflag [#allocation7], %s795
        %s797 = sand.u32 %s177, 1
        %s798 = smul.addr %s797, 64
        %s799 = scalar_lea.vmem [#allocation8], %s798
        // Predicated region
        $region105: #{tpu_custom_call.1} parent=95 // pred_check
          %p800 = pneg %p190
        $region106: #{tpu_custom_call.1} parent=95 // pred_check_branch
          %802 = sbr.rel (%p800) target = $region108
        $region107: #{tpu_custom_call.1} parent=95 // pred_region
          %803 = dma.done %s796, 1024
        $region108: #{tpu_custom_call.1} parent=95 // pred_fallthru
          _
        %s804 = sand.u32 %s44, 1
        %s805 = scalar_lea.sflag [#allocation10], %s804
        %s806 = sand.u32 %s203, 1
        %s807 = scalar_lea.vmem [#allocation9], %s806
        // Predicated region
        $region109: #{tpu_custom_call.1} parent=95 // pred_check
          %p808 = pneg %p216
        $region110: #{tpu_custom_call.1} parent=95 // pred_check_branch
          %810 = sbr.rel (%p808) target = $region112
        $region111: #{tpu_custom_call.1} parent=95 // pred_region
          %811 = dma.done %s805, 16
        $region112: #{tpu_custom_call.1} parent=95 // pred_fallthru
          _
        %s812 = sand.u32 %s44, 1
        %s813 = scalar_lea.sflag [#allocation10], %s812
        %s814 = sand.u32 %s229, 1
        %s815 = smul.addr %s814, 64
        %s816 = scalar_lea.vmem [#allocation11], %s815
        // Predicated region
        $region113: #{tpu_custom_call.1} parent=95 // pred_check
          %p817 = pneg %p242
        $region114: #{tpu_custom_call.1} parent=95 // pred_check_branch
          %819 = sbr.rel (%p817) target = $region116
        $region115: #{tpu_custom_call.1} parent=95 // pred_region
          %820 = dma.done %s813, 1024
        $region116: #{tpu_custom_call.1} parent=95 // pred_fallthru
          _
        %s821 = sand.u32 %s44, 1
        %s822 = scalar_lea.sflag [#allocation13], %s821
        %s823 = sand.u32 %s281, 1
        %s824 = smul.addr %s823, 64
        %s825 = scalar_lea.vmem [#allocation12], %s824
        // Predicated region
        $region117: #{tpu_custom_call.1} parent=95 // pred_check
          %p826 = pneg %p294
        $region118: #{tpu_custom_call.1} parent=95 // pred_check_branch
          %828 = sbr.rel (%p826) target = $region120
        $region119: #{tpu_custom_call.1} parent=95 // pred_region
          %829 = dma.done %s822, 1024
        $region120: #{tpu_custom_call.1} parent=95 // pred_fallthru
          _
        %s830 = sand.u32 %s44, 1
        %s831 = scalar_lea.sflag [#allocation13], %s830
        %s832 = sand.u32 %s385, 1
        %s833 = smul.addr %s832, 256
        %s834 = scalar_lea.vmem [#allocation14], %s833
        // Predicated region
        $region121: #{tpu_custom_call.1} parent=95 // pred_check
          %p835 = pneg %p398
        $region122: #{tpu_custom_call.1} parent=95 // pred_check_branch
          %837 = sbr.rel (%p835) target = $region124
        $region123: #{tpu_custom_call.1} parent=95 // pred_region
          %838 = dma.done %s831, 4096
        $region124: #{tpu_custom_call.1} parent=95 // pred_fallthru
          _
        %s839 = sand.u32 %s437, 1
        %s840 = scalar_lea.sflag [#allocation16], %s839
        %s841 = sand.u32 %s437, 1
        %s842 = smul.addr %s841, 256
        %s843 = scalar_lea.vmem [#allocation15], %s842
        // Predicated region
        $region125: #{tpu_custom_call.1} parent=95 // pred_check
          %p844 = pneg %p450
        $region126: #{tpu_custom_call.1} parent=95 // pred_check_branch
          %846 = sbr.rel (%p844) target = $region128
        $region127: #{tpu_custom_call.1} parent=95 // pred_region
          %847 = dma.done %s840, 4096
        $region128: #{tpu_custom_call.1} parent=95 // pred_fallthru
          _
        %p848 = pneg %p60
        %p849 = pneg %p57
        %p850 = scmp.lt.s32.totalorder %s44, 2
        %s851 = scalar_select %p850, %s44, 2
        %s852 = scalar_lea.vmem %s1, %s851
        %p853 = pneg %p86
        %p854 = pneg %p83
        %p855 = scmp.lt.s32.totalorder %s44, 2
        %s856 = scalar_select %p855, %s44, 2
        %s857 = scalar_lea.vmem %s2, %s856
        %p858 = pneg %p112
        %p859 = pneg %p109
        %s860 = sand.u32 %s44, 1
        %s861 = scalar_lea.sflag [#allocation7], %s860
        %s862 = sand.u32 %s125, 1
        %s863 = smul.addr %s862, 64
        %s864 = scalar_lea.vmem [#allocation6], %s863
        %p865 = pneg %p138
        %p866 = pneg %p135
        %p867 = scmp.lt.s32.totalorder %s44, 2
        %s868 = scalar_select %p867, %s44, 2
        %s869 = scalar_lea.vmem %s4, %s868
        %p870 = pneg %p164
        %p871 = pneg %p161
        %s872 = sand.u32 %s44, 1
        %s873 = scalar_lea.sflag [#allocation7], %s872
        %s874 = sand.u32 %s177, 1
        %s875 = smul.addr %s874, 64
        %s876 = scalar_lea.vmem [#allocation8], %s875
        %p877 = pneg %p190
        %p878 = pneg %p187
        %s879 = sand.u32 %s44, 1
        %s880 = scalar_lea.sflag [#allocation10], %s879
        %s881 = sand.u32 %s203, 1
        %s882 = scalar_lea.vmem [#allocation9], %s881
        %p883 = pneg %p216
        %p884 = pneg %p213
        %s885 = sand.u32 %s44, 1
        %s886 = scalar_lea.sflag [#allocation10], %s885
        %s887 = sand.u32 %s229, 1
        %s888 = smul.addr %s887, 64
        %s889 = scalar_lea.vmem [#allocation11], %s888
        %p890 = pneg %p242
        %p891 = pneg %p239
        %p892 = scmp.lt.s32.totalorder %s44, 2
        %s893 = scalar_select %p892, %s44, 2
        %s894 = scalar_lea.vmem %s8, %s893
        %p895 = pneg %p268
        %p896 = pneg %p265
        %s897 = sand.u32 %s44, 1
        %s898 = scalar_lea.sflag [#allocation13], %s897
        %s899 = sand.u32 %s281, 1
        %s900 = smul.addr %s899, 64
        %s901 = scalar_lea.vmem [#allocation12], %s900
        %p902 = pneg %p294
        %p903 = pneg %p291
        %p904 = scmp.lt.s32.totalorder %s44, 2
        %s905 = scalar_select %p904, %s44, 2
        %s906 = scalar_lea.vmem %s10, %s905
        %p907 = pneg %p320
        %p908 = pneg %p317
        %p909 = scmp.lt.s32.totalorder %s44, 2
        %s910 = scalar_select %p909, %s44, 2
        %s911 = scalar_lea.vmem %s11, %s910
        %p912 = pneg %p346
        %p913 = pneg %p343
        %p914 = scmp.lt.s32.totalorder %s44, 2
        %s915 = scalar_select %p914, %s44, 2
        %s916 = scalar_lea.vmem %s12, %s915
        %p917 = pneg %p372
        %p918 = pneg %p369
        %s919 = sand.u32 %s44, 1
        %s920 = scalar_lea.sflag [#allocation13], %s919
        %s921 = sand.u32 %s385, 1
        %s922 = smul.addr %s921, 256
        %s923 = scalar_lea.vmem [#allocation14], %s922
        %p924 = pneg %p398
        %p925 = pneg %p395
        %p926 = scmp.lt.s32.totalorder %s44, 2
        %s927 = scalar_select %p926, %s44, 2
        %s928 = smul.addr %s927, 4
        %s929 = scalar_lea.vmem %s14, %s928
        %p930 = pneg %p424
        %p931 = pneg %p421
        %s932 = sand.u32 %s437, 1
        %s933 = scalar_lea.sflag [#allocation16], %s932
        %s934 = sand.u32 %s437, 1
        %s935 = smul.addr %s934, 256
        %s936 = scalar_lea.vmem [#allocation15], %s935
        %p937 = pneg %p450
        %p938 = pneg %p447
        %p939 = scmp.lt.s32.totalorder %s44, 2
        %s940 = scalar_select %p939, %s44, 2
        %s941 = scalar_lea.vmem %s16, %s940
        %p942 = pneg %p476
        %p943 = pneg %p473
        %p944 = pneg %p497
        %p945 = pneg %p494
        %p946 = pneg %p518
        %p947 = pneg %p515
        %p948 = pneg %p539
        %p949 = pneg %p536
        %p950 = scmp.lt.s32.totalorder %s44, 2
        %s951 = scalar_select %p950, %s44, 2
        %s952 = scalar_lea.vmem %s1, %s951
        %p953 = scmp.lt.s32.totalorder %s44, 2
        %s954 = scalar_select %p953, %s44, 2
        %s955 = scalar_lea.vmem %s2, %s954
        %p956 = scmp.lt.s32.totalorder %s44, 2
        %s957 = scalar_select %p956, %s44, 2
        %s958 = scalar_lea.vmem %s4, %s957
        %p959 = scmp.lt.s32.totalorder %s44, 2
        %s960 = scalar_select %p959, %s44, 2
        %s961 = scalar_lea.vmem %s8, %s960
        %p962 = scmp.lt.s32.totalorder %s44, 2
        %s963 = scalar_select %p962, %s44, 2
        %s964 = scalar_lea.vmem %s10, %s963
        %p965 = scmp.lt.s32.totalorder %s44, 2
        %s966 = scalar_select %p965, %s44, 2
        %s967 = scalar_lea.vmem %s11, %s966
        %p968 = scmp.lt.s32.totalorder %s44, 2
        %s969 = scalar_select %p968, %s44, 2
        %s970 = scalar_lea.vmem %s12, %s969
        %p971 = scmp.lt.s32.totalorder %s44, 2
        %s972 = scalar_select %p971, %s44, 2
        %s973 = smul.addr %s972, 4
        %s974 = scalar_lea.vmem %s14, %s973
        %p975 = scmp.lt.s32.totalorder %s44, 2
        %s976 = scalar_select %p975, %s44, 2
        %s977 = scalar_lea.vmem %s16, %s976
        %p979 = scmp.eq.s32.totalorder %s44, 0
        // Predicated region
        $region129: #{tpu_custom_call.1} parent=95 // pred_check
          %p980 = pneg %p979
        $region130: #{tpu_custom_call.1} parent=95 // pred_check_branch
          %982 = sbr.rel (%p980) target = $region132
        $region131: #{tpu_custom_call.1} parent=95 // pred_region
          %v983 = vld [vmem:[#allocation3] sm:$0xff]
          %v984 = vld [vmem:[#allocation3 + $0x8] sm:$0xff]
          %v985 = vld [vmem:[#allocation3 + $0x10] sm:$0xff]
          %v986 = vld [vmem:[#allocation3 + $0x18] sm:$0xff]
          %987 = vst [vmem:[#allocation17] sm:$0xff] %v983
          %988 = vst [vmem:[#allocation17 + $0x8] sm:$0xff] %v984
          %989 = vst [vmem:[#allocation17 + $0x10] sm:$0xff] %v985
          %990 = vst [vmem:[#allocation17 + $0x18] sm:$0xff] %v986
        $region132: #{tpu_custom_call.1} parent=95 // pred_fallthru
          _
        %v991 = vld [vmem:[#allocation17] sm:$0xff]
        %v992 = vld [vmem:[#allocation17 + $0x8] sm:$0xff]
        %v993 = vld [vmem:[#allocation17 + $0x10] sm:$0xff]
        %v994 = vld [vmem:[#allocation17 + $0x18] sm:$0xff]
        %v995 = vlaneseq
        %v996 = vshrl.u32 %v995, 7
        %v997 = vadd.s32 %v996, 8
        %v998 = vlaneseq
        %v999 = vand.u32 %v998, 127
        %vm1000 = vcmp.le.s32.totalorder %v999, %v996
        %vm1001 = vcmp.le.s32.totalorder %v999, %v997
        %v1002 = vld [vmem:[%s952] sm:$0x1]
        %v1003 = vld [vmem:[%s955] sm:$0x1]
        %1004 = vadd.xlane.f32.xlu0 %v991
        %v1005 = vpop.xlane.xlu0 %1004
        %1006 = vadd.xlane.f32.xlu0 %v992
        %v1007 = vpop.xlane.xlu0 %1006
        %1008 = vadd.xlane.f32.xlu0 %v993
        %v1009 = vpop.xlane.xlu0 %1008
        %1010 = vadd.xlane.f32.xlu0 %v994
        %v1011 = vpop.xlane.xlu0 %1010
        %v1012 = vrcp.pop 128.0
        %v1013 = vmul.f32 %v1005, %v1012
        %v1014 = vmul.f32 %v1007, %v1012
        %v1015 = vmul.f32 %v1009, %v1012
        %v1016 = vmul.f32 %v1011, %v1012
        %v1017 = vsub.f32 %v991, %v1013
        %v1018 = vsub.f32 %v992, %v1014
        %v1019 = vsub.f32 %v993, %v1015
        %v1020 = vsub.f32 %v994, %v1016
        %v1021 = vmul.f32 %v1017, %v1017
        %v1022 = vmul.f32 %v1018, %v1018
        %v1023 = vmul.f32 %v1019, %v1019
        %v1024 = vmul.f32 %v1020, %v1020
        %1025 = vadd.xlane.f32.xlu0 %v1021
        %v1026 = vpop.xlane.xlu0 %1025
        %1027 = vadd.xlane.f32.xlu0 %v1022
        %v1028 = vpop.xlane.xlu0 %1027
        %1029 = vadd.xlane.f32.xlu0 %v1023
        %v1030 = vpop.xlane.xlu0 %1029
        %1031 = vadd.xlane.f32.xlu0 %v1024
        %v1032 = vpop.xlane.xlu0 %1031
        %v1033 = vmul.f32 %v1026, %v1012
        %v1034 = vmul.f32 %v1028, %v1012
        %v1035 = vmul.f32 %v1030, %v1012
        %v1036 = vmul.f32 %v1032, %v1012
        %v1037 = vadd.f32 %v1033, 1e-05
        %v1038 = vadd.f32 %v1034, 1e-05
        %v1039 = vadd.f32 %v1035, 1e-05
        %v1040 = vadd.f32 %v1036, 1e-05
        %v1041 = vrsqrt.pop %v1037
        %v1042 = vrsqrt.pop %v1038
        %v1043 = vrsqrt.pop %v1039
        %v1044 = vrsqrt.pop %v1040
        %v1045 = vmul.f32 %v1017, %v1041
        %v1046 = vmul.f32 %v1018, %v1042
        %v1047 = vmul.f32 %v1019, %v1043
        %v1048 = vmul.f32 %v1020, %v1044
        %v1050 = vlaneseq
        %v1051 = vshrl.u32 %v1050, 7
        %v1052 = vsub.s32 0, %v1051
        %v1053 = vrot.slane %v1002, %v1052
        %v1055 = vmul.f32 %v1045, %v1053
        %v1056 = vmul.f32 %v1046, %v1053
        %v1057 = vmul.f32 %v1047, %v1053
        %v1058 = vmul.f32 %v1048, %v1053
        %v1060 = vlaneseq
        %v1061 = vshrl.u32 %v1060, 7
        %v1062 = vsub.s32 0, %v1061
        %v1063 = vrot.slane %v1003, %v1062
        %v1065 = vadd.f32 %v1055, %v1063
        %v1066 = vadd.f32 %v1056, %v1063
        %v1067 = vadd.f32 %v1057, %v1063
        %v1068 = vadd.f32 %v1058, %v1063
        %v1069 = vpack.c.bf16 %v1066, %v1065
        %v1070 = vpack.c.bf16 %v1068, %v1067
        %v1071 = vld [vmem:[%s790] sm:$0xf]
        %v1072 = vld [vmem:[%s790 + $0x4] sm:$0xf]
        %v1073 = vld [vmem:[%s790 + $0x8] sm:$0xf]
        %v1074 = vld [vmem:[%s790 + $0xc] sm:$0xf]
        %v1075 = vld [vmem:[%s790 + $0x10] sm:$0xf]
        %v1076 = vld [vmem:[%s790 + $0x14] sm:$0xf]
        %v1077 = vld [vmem:[%s790 + $0x18] sm:$0xf]
        %v1078 = vld [vmem:[%s790 + $0x1c] sm:$0xf]
        %v1079 = vld [vmem:[%s790 + $0x20] sm:$0xf]
        %v1080 = vld [vmem:[%s790 + $0x24] sm:$0xf]
        %v1081 = vld [vmem:[%s790 + $0x28] sm:$0xf]
        %v1082 = vld [vmem:[%s790 + $0x2c] sm:$0xf]
        %v1083 = vld [vmem:[%s790 + $0x30] sm:$0xf]
        %v1084 = vld [vmem:[%s790 + $0x34] sm:$0xf]
        %v1085 = vld [vmem:[%s790 + $0x38] sm:$0xf]
        %v1086 = vld [vmem:[%s790 + $0x3c] sm:$0xf]
        %v1087 = vld [vmem:[%s958] sm:$0x1]
        %v1089 = vlaneseq
        %v1090 = vshrl.u32 %v1089, 7
        %v1091 = vsub.s32 0, %v1090
        %v1092 = vrot.slane %v1087, %v1091
        %v1110 = vunpack.c.l.b16 %v1071
        %v1111 = vunpack.c.l.b16 %v1072
        %v1112 = vunpack.c.l.b16 %v1073
        %v1113 = vunpack.c.l.b16 %v1074
        %v1114 = vunpack.c.l.b16 %v1075
        %v1115 = vunpack.c.l.b16 %v1076
        %v1116 = vunpack.c.l.b16 %v1077
        %v1117 = vunpack.c.l.b16 %v1078
        %v1118 = vunpack.c.l.b16 %v1079
        %v1119 = vunpack.c.l.b16 %v1080
        %v1120 = vunpack.c.l.b16 %v1081
        %v1121 = vunpack.c.l.b16 %v1082
        %v1122 = vunpack.c.l.b16 %v1083
        %v1123 = vunpack.c.l.b16 %v1084
        %v1124 = vunpack.c.l.b16 %v1085
        %v1125 = vunpack.c.l.b16 %v1086
        %v1126 = vpack.c.b16 %v1111, %v1110
        %v1127 = vpack.c.b16 %v1113, %v1112
        %v1128 = vpack.c.b16 %v1115, %v1114
        %v1129 = vpack.c.b16 %v1117, %v1116
        %v1130 = vpack.c.b16 %v1119, %v1118
        %v1131 = vpack.c.b16 %v1121, %v1120
        %v1132 = vpack.c.b16 %v1123, %v1122
        %v1133 = vpack.c.b16 %v1125, %v1124
        %1142 = vmatprep.subr.bf16.mxu0 0
        %1143 = vmatpush1.bf16.msra.mxu0 %v1126
        %1144 = vmatprep.subr.bf16.mxu0 0
        %1145 = vmatpush1.bf16.msra.mxu0 %v1127
        %1146 = vmatprep.subr.bf16.mxu0 0
        %1147 = vmatpush1.bf16.msra.mxu0 %v1128
        %1148 = vmatprep.subr.bf16.mxu0 0
        %1149 = vmatpush1.bf16.msra.mxu0 %v1129
        %1150 = vmatprep.subr.bf16.mxu0 0
        %1151 = vmatpush1.bf16.msra.mxu0 %v1130
        %1152 = vmatprep.subr.bf16.mxu0 0
        %1153 = vmatpush1.bf16.msra.mxu0 %v1131
        %1154 = vmatprep.subr.bf16.mxu0 0
        %1155 = vmatpush1.bf16.msra.mxu0 %v1132
        %1156 = vmatprep.subr.bf16.mxu0 0
        %1157 = vmatpush1.bf16.msra.mxu0 %v1133
        %1158 = vmatprep.subr.bf16.mxu0 0
        %1159 = vmatpush1.bf16.msra.mxu0 0
        %1160 = vmatprep.subr.bf16.mxu0 0
        %1161 = vmatpush1.bf16.msra.mxu0 0
        %1162 = vmatprep.subr.bf16.mxu0 0
        %1163 = vmatpush1.bf16.msra.mxu0 0
        %1164 = vmatprep.subr.bf16.mxu0 0
        %1165 = vmatpush1.bf16.msra.mxu0 0
        %1166 = vmatprep.subr.bf16.mxu0 0
        %1167 = vmatpush1.bf16.msra.mxu0 0
        %1168 = vmatprep.subr.bf16.mxu0 0
        %1169 = vmatpush1.bf16.msra.mxu0 0
        %1170 = vmatprep.subr.bf16.mxu0 0
        %1171 = vmatpush1.bf16.msra.mxu0 0
        %1172 = vmatprep.subr.bf16.mxu0 0
        %1173 = vmatpush1.bf16.msra.mxu0 0
        %1174 = vmatprep.mubr.bf16.mxu0 0
        %1175 = vmatmul.mubr.bf16.gmra.mrb[0].mxu0 %v1069
        %v1176 = vpop.f32.mrb[0].mxu0
        %v1177 = vadd.f32 %v1092, %v1176
        %v1178 = vpop.f32.mrb[0].mxu0
        %v1179 = vpop.f32.mrb[0].mxu0
        %v1180 = vadd.f32 %v1092, %v1179
        %v1181 = vpop.f32.mrb[0].mxu0
        %1182 = vmatprep.mubr.bf16.mxu0 0
        %1183 = vmatmul.mubr.bf16.gmra.mrb[0].mxu0 %v1070
        %v1184 = vpop.f32.mrb[0].mxu0
        %v1185 = vadd.f32 %v1092, %v1184
        %v1186 = vpop.f32.mrb[0].mxu0
        %v1187 = vpop.f32.mrb[0].mxu0
        %v1188 = vadd.f32 %v1092, %v1187
        %v1189 = vpop.f32.mrb[0].mxu0
        %1190 = vdwg.mxu0
        %v1191 = vld [vmem:[%s799] sm:$0xf]
        %v1192 = vld [vmem:[%s799 + $0x4] sm:$0xf]
        %v1193 = vld [vmem:[%s799 + $0x8] sm:$0xf]
        %v1194 = vld [vmem:[%s799 + $0xc] sm:$0xf]
        %v1195 = vld [vmem:[%s799 + $0x10] sm:$0xf]
        %v1196 = vld [vmem:[%s799 + $0x14] sm:$0xf]
        %v1197 = vld [vmem:[%s799 + $0x18] sm:$0xf]
        %v1198 = vld [vmem:[%s799 + $0x1c] sm:$0xf]
        %v1199 = vld [vmem:[%s799 + $0x20] sm:$0xf]
        %v1200 = vld [vmem:[%s799 + $0x24] sm:$0xf]
        %v1201 = vld [vmem:[%s799 + $0x28] sm:$0xf]
        %v1202 = vld [vmem:[%s799 + $0x2c] sm:$0xf]
        %v1203 = vld [vmem:[%s799 + $0x30] sm:$0xf]
        %v1204 = vld [vmem:[%s799 + $0x34] sm:$0xf]
        %v1205 = vld [vmem:[%s799 + $0x38] sm:$0xf]
        %v1206 = vld [vmem:[%s799 + $0x3c] sm:$0xf]
        %v1207 = vld [vmem:[%s807] sm:$0x1]
        %v1209 = vlaneseq
        %v1210 = vshrl.u32 %v1209, 7
        %v1211 = vsub.s32 0, %v1210
        %v1212 = vrot.slane %v1207, %v1211
        %v1230 = vunpack.c.l.b16 %v1191
        %v1231 = vunpack.c.l.b16 %v1192
        %v1232 = vunpack.c.l.b16 %v1193
        %v1233 = vunpack.c.l.b16 %v1194
        %v1234 = vunpack.c.l.b16 %v1195
        %v1235 = vunpack.c.l.b16 %v1196
        %v1236 = vunpack.c.l.b16 %v1197
        %v1237 = vunpack.c.l.b16 %v1198
        %v1238 = vunpack.c.l.b16 %v1199
        %v1239 = vunpack.c.l.b16 %v1200
        %v1240 = vunpack.c.l.b16 %v1201
        %v1241 = vunpack.c.l.b16 %v1202
        %v1242 = vunpack.c.l.b16 %v1203
        %v1243 = vunpack.c.l.b16 %v1204
        %v1244 = vunpack.c.l.b16 %v1205
        %v1245 = vunpack.c.l.b16 %v1206
        %v1246 = vpack.c.b16 %v1231, %v1230
        %v1247 = vpack.c.b16 %v1233, %v1232
        %v1248 = vpack.c.b16 %v1235, %v1234
        %v1249 = vpack.c.b16 %v1237, %v1236
        %v1250 = vpack.c.b16 %v1239, %v1238
        %v1251 = vpack.c.b16 %v1241, %v1240
        %v1252 = vpack.c.b16 %v1243, %v1242
        %v1253 = vpack.c.b16 %v1245, %v1244
        %1262 = vmatprep.subr.bf16.mxu0 0
        %1263 = vmatpush1.bf16.msra.mxu0 %v1246
        %1264 = vmatprep.subr.bf16.mxu0 0
        %1265 = vmatpush1.bf16.msra.mxu0 %v1247
        %1266 = vmatprep.subr.bf16.mxu0 0
        %1267 = vmatpush1.bf16.msra.mxu0 %v1248
        %1268 = vmatprep.subr.bf16.mxu0 0
        %1269 = vmatpush1.bf16.msra.mxu0 %v1249
        %1270 = vmatprep.subr.bf16.mxu0 0
        %1271 = vmatpush1.bf16.msra.mxu0 %v1250
        %1272 = vmatprep.subr.bf16.mxu0 0
        %1273 = vmatpush1.bf16.msra.mxu0 %v1251
        %1274 = vmatprep.subr.bf16.mxu0 0
        %1275 = vmatpush1.bf16.msra.mxu0 %v1252
        %1276 = vmatprep.subr.bf16.mxu0 0
        %1277 = vmatpush1.bf16.msra.mxu0 %v1253
        %1278 = vmatprep.subr.bf16.mxu0 0
        %1279 = vmatpush1.bf16.msra.mxu0 0
        %1280 = vmatprep.subr.bf16.mxu0 0
        %1281 = vmatpush1.bf16.msra.mxu0 0
        %1282 = vmatprep.subr.bf16.mxu0 0
        %1283 = vmatpush1.bf16.msra.mxu0 0
        %1284 = vmatprep.subr.bf16.mxu0 0
        %1285 = vmatpush1.bf16.msra.mxu0 0
        %1286 = vmatprep.subr.bf16.mxu0 0
        %1287 = vmatpush1.bf16.msra.mxu0 0
        %1288 = vmatprep.subr.bf16.mxu0 0
        %1289 = vmatpush1.bf16.msra.mxu0 0
        %1290 = vmatprep.subr.bf16.mxu0 0
        %1291 = vmatpush1.bf16.msra.mxu0 0
        %1292 = vmatprep.subr.bf16.mxu0 0
        %1293 = vmatpush1.bf16.msra.mxu0 0
        %1294 = vmatprep.mubr.bf16.mxu0 0
        %1295 = vmatmul.mubr.bf16.gmra.mrb[0].mxu0 %v1069
        %v1296 = vpop.f32.mrb[0].mxu0
        %v1297 = vadd.f32 %v1212, %v1296
        %v1298 = vpop.f32.mrb[0].mxu0
        %v1299 = vpop.f32.mrb[0].mxu0
        %v1300 = vadd.f32 %v1212, %v1299
        %v1301 = vpop.f32.mrb[0].mxu0
        %1302 = vmatprep.mubr.bf16.mxu0 0
        %1303 = vmatmul.mubr.bf16.gmra.mrb[0].mxu0 %v1070
        %v1304 = vpop.f32.mrb[0].mxu0
        %v1305 = vadd.f32 %v1212, %v1304
        %v1306 = vpop.f32.mrb[0].mxu0
        %v1307 = vpop.f32.mrb[0].mxu0
        %v1308 = vadd.f32 %v1212, %v1307
        %v1309 = vpop.f32.mrb[0].mxu0
        %1310 = vdwg.mxu0
        %v1311 = vld [vmem:[%s816] sm:$0xf]
        %v1312 = vld [vmem:[%s816 + $0x4] sm:$0xf]
        %v1313 = vld [vmem:[%s816 + $0x8] sm:$0xf]
        %v1314 = vld [vmem:[%s816 + $0xc] sm:$0xf]
        %v1315 = vld [vmem:[%s816 + $0x10] sm:$0xf]
        %v1316 = vld [vmem:[%s816 + $0x14] sm:$0xf]
        %v1317 = vld [vmem:[%s816 + $0x18] sm:$0xf]
        %v1318 = vld [vmem:[%s816 + $0x1c] sm:$0xf]
        %v1319 = vld [vmem:[%s816 + $0x20] sm:$0xf]
        %v1320 = vld [vmem:[%s816 + $0x24] sm:$0xf]
        %v1321 = vld [vmem:[%s816 + $0x28] sm:$0xf]
        %v1322 = vld [vmem:[%s816 + $0x2c] sm:$0xf]
        %v1323 = vld [vmem:[%s816 + $0x30] sm:$0xf]
        %v1324 = vld [vmem:[%s816 + $0x34] sm:$0xf]
        %v1325 = vld [vmem:[%s816 + $0x38] sm:$0xf]
        %v1326 = vld [vmem:[%s816 + $0x3c] sm:$0xf]
        %v1327 = vld [vmem:[%s961] sm:$0x1]
        %v1329 = vlaneseq
        %v1330 = vshrl.u32 %v1329, 7
        %v1331 = vsub.s32 0, %v1330
        %v1332 = vrot.slane %v1327, %v1331
        %v1350 = vunpack.c.l.b16 %v1311
        %v1351 = vunpack.c.l.b16 %v1312
        %v1352 = vunpack.c.l.b16 %v1313
        %v1353 = vunpack.c.l.b16 %v1314
        %v1354 = vunpack.c.l.b16 %v1315
        %v1355 = vunpack.c.l.b16 %v1316
        %v1356 = vunpack.c.l.b16 %v1317
        %v1357 = vunpack.c.l.b16 %v1318
        %v1358 = vunpack.c.l.b16 %v1319
        %v1359 = vunpack.c.l.b16 %v1320
        %v1360 = vunpack.c.l.b16 %v1321
        %v1361 = vunpack.c.l.b16 %v1322
        %v1362 = vunpack.c.l.b16 %v1323
        %v1363 = vunpack.c.l.b16 %v1324
        %v1364 = vunpack.c.l.b16 %v1325
        %v1365 = vunpack.c.l.b16 %v1326
        %v1366 = vpack.c.b16 %v1351, %v1350
        %v1367 = vpack.c.b16 %v1353, %v1352
        %v1368 = vpack.c.b16 %v1355, %v1354
        %v1369 = vpack.c.b16 %v1357, %v1356
        %v1370 = vpack.c.b16 %v1359, %v1358
        %v1371 = vpack.c.b16 %v1361, %v1360
        %v1372 = vpack.c.b16 %v1363, %v1362
        %v1373 = vpack.c.b16 %v1365, %v1364
        %1382 = vmatprep.subr.bf16.mxu0 0
        %1383 = vmatpush1.bf16.msra.mxu0 %v1366
        %1384 = vmatprep.subr.bf16.mxu0 0
        %1385 = vmatpush1.bf16.msra.mxu0 %v1367
        %1386 = vmatprep.subr.bf16.mxu0 0
        %1387 = vmatpush1.bf16.msra.mxu0 %v1368
        %1388 = vmatprep.subr.bf16.mxu0 0
        %1389 = vmatpush1.bf16.msra.mxu0 %v1369
        %1390 = vmatprep.subr.bf16.mxu0 0
        %1391 = vmatpush1.bf16.msra.mxu0 %v1370
        %1392 = vmatprep.subr.bf16.mxu0 0
        %1393 = vmatpush1.bf16.msra.mxu0 %v1371
        %1394 = vmatprep.subr.bf16.mxu0 0
        %1395 = vmatpush1.bf16.msra.mxu0 %v1372
        %1396 = vmatprep.subr.bf16.mxu0 0
        %1397 = vmatpush1.bf16.msra.mxu0 %v1373
        %1398 = vmatprep.subr.bf16.mxu0 0
        %1399 = vmatpush1.bf16.msra.mxu0 0
        %1400 = vmatprep.subr.bf16.mxu0 0
        %1401 = vmatpush1.bf16.msra.mxu0 0
        %1402 = vmatprep.subr.bf16.mxu0 0
        %1403 = vmatpush1.bf16.msra.mxu0 0
        %1404 = vmatprep.subr.bf16.mxu0 0
        %1405 = vmatpush1.bf16.msra.mxu0 0
        %1406 = vmatprep.subr.bf16.mxu0 0
        %1407 = vmatpush1.bf16.msra.mxu0 0
        %1408 = vmatprep.subr.bf16.mxu0 0
        %1409 = vmatpush1.bf16.msra.mxu0 0
        %1410 = vmatprep.subr.bf16.mxu0 0
        %1411 = vmatpush1.bf16.msra.mxu0 0
        %1412 = vmatprep.subr.bf16.mxu0 0
        %1413 = vmatpush1.bf16.msra.mxu0 0
        %1414 = vmatprep.mubr.bf16.mxu0 0
        %1415 = vmatmul.mubr.bf16.gmra.mrb[0].mxu0 %v1069
        %v1416 = vpop.f32.mrb[0].mxu0
        %v1417 = vadd.f32 %v1332, %v1416
        %v1418 = vpop.f32.mrb[0].mxu0
        %v1419 = vpop.f32.mrb[0].mxu0
        %v1420 = vadd.f32 %v1332, %v1419
        %v1421 = vpop.f32.mrb[0].mxu0
        %1422 = vmatprep.mubr.bf16.mxu0 0
        %1423 = vmatmul.mubr.bf16.gmra.mrb[0].mxu0 %v1070
        %v1424 = vpop.f32.mrb[0].mxu0
        %v1425 = vadd.f32 %v1332, %v1424
        %v1426 = vpop.f32.mrb[0].mxu0
        %v1427 = vpop.f32.mrb[0].mxu0
        %v1428 = vadd.f32 %v1332, %v1427
        %v1429 = vpop.f32.mrb[0].mxu0
        %1430 = vdwg.mxu0
        %v1431 = vpack.c.bf16 %v1180, %v1177
        %v1432 = vpack.c.bf16 %v1188, %v1185
        %v1433 = vpack.c.bf16 %v1300, %v1297
        %v1434 = vpack.c.bf16 %v1308, %v1305
        %v1435 = vpack.c.bf16 %v1420, %v1417
        %v1436 = vpack.c.bf16 %v1428, %v1425
        %vm1437 = vcmask 261120
        %v1439 = vsel %vm1437, %v1431, 0
        %v1442 = vsel %vm1437, %v1433, 0
        %1444 = vmatprep.subr.bf16.mxu0 0
        %1445 = vmatpush1.bf16.xpose.msra.mxu0 %v1442
        %1446 = vmatprep.subr.bf16.mxu0 0
        %1447 = vmatpush1.bf16.xpose.msra.mxu0 0
        %1448 = vmatprep.subr.bf16.mxu0 0
        %1449 = vmatpush1.bf16.xpose.msra.mxu0 0
        %1450 = vmatprep.subr.bf16.mxu0 0
        %1451 = vmatpush1.bf16.xpose.msra.mxu0 0
        %1452 = vmatprep.subr.bf16.mxu0 0
        %1453 = vmatpush1.bf16.xpose.msra.mxu0 0
        %1454 = vmatprep.subr.bf16.mxu0 0
        %1455 = vmatpush1.bf16.xpose.msra.mxu0 0
        %1456 = vmatprep.subr.bf16.mxu0 0
        %1457 = vmatpush1.bf16.xpose.msra.mxu0 0
        %1458 = vmatprep.subr.bf16.mxu0 0
        %1459 = vmatpush1.bf16.xpose.msra.mxu0 0
        %1460 = vmatprep.subr.bf16.mxu0 0
        %1461 = vmatpush1.bf16.xpose.msra.mxu0 0
        %1462 = vmatprep.subr.bf16.mxu0 0
        %1463 = vmatpush1.bf16.xpose.msra.mxu0 0
        %1464 = vmatprep.subr.bf16.mxu0 0
        %1465 = vmatpush1.bf16.xpose.msra.mxu0 0
        %1466 = vmatprep.subr.bf16.mxu0 0
        %1467 = vmatpush1.bf16.xpose.msra.mxu0 0
        %1468 = vmatprep.subr.bf16.mxu0 0
        %1469 = vmatpush1.bf16.xpose.msra.mxu0 0
        %1470 = vmatprep.subr.bf16.mxu0 0
        %1471 = vmatpush1.bf16.xpose.msra.mxu0 0
        %1472 = vmatprep.subr.bf16.mxu0 0
        %1473 = vmatpush1.bf16.xpose.msra.mxu0 0
        %1474 = vmatprep.subr.bf16.mxu0 0
        %1475 = vmatpush1.bf16.xpose.msra.mxu0 0
        %1476 = vmatprep.mubr.bf16.mxu0 0
        %1477 = vmatmul.mubr.bf16.gmra.mrb[0].mxu0 %v1439
        %v1478 = vpop.f32.mrb[0].mxu0
        %v1479 = vadd.f32 0.0, %v1478
        %v1480 = vpop.f32.mrb[0].mxu0
        %v1481 = vpop.f32.mrb[0].mxu0
        %v1482 = vadd.f32 0.0, %v1481
        %v1483 = vpop.f32.mrb[0].mxu0
        %1484 = vdwg.mxu0
        %v1485 = vmul.f32 %v1479, 0.17677669
        %v1486 = vmul.f32 %v1482, 0.17677669
        %v1487 = vsel %vm1000, %v1485, -1e+30
        %v1488 = vsel %vm1001, %v1486, -1e+30
        %vm1489 = vcmask 130048
        %v1490 = vsel %vm1489, %v1487, -inf
        %1491 = vmax.xlane.f32.xlu0 %v1490
        %v1492 = vpop.xlane.xlu0 %1491
        %v1493 = vsel %vm1489, %v1488, -inf
        %1494 = vmax.xlane.f32.xlu0 %v1493
        %v1495 = vpop.xlane.xlu0 %1494
        %v1496 = vsub.f32 %v1487, %v1492
        %v1497 = vsub.f32 %v1488, %v1495
        %v1498 = vmul.f32 %v1496, 1.442695
        %v1499 = vpow.pop %v1498
        %v1500 = vmul.f32 %v1497, 1.442695
        %v1501 = vpow.pop %v1500
        %v1502 = vsel %vm1489, %v1499, 0.0
        %1503 = vadd.xlane.f32.xlu0 %v1502
        %v1504 = vpop.xlane.xlu0 %1503
        %v1505 = vsel %vm1489, %v1501, 0.0
        %1506 = vadd.xlane.f32.xlu0 %v1505
        %v1507 = vpop.xlane.xlu0 %1506
        %v1508 = vrcp.pop %v1504
        %v1509 = vmul.f32 %v1499, %v1508
        %v1510 = vrcp.pop %v1507
        %v1511 = vmul.f32 %v1501, %v1510
        %v1512 = vpack.c.bf16 %v1511, %v1509
        %v1514 = vsel %vm1489, %v1512, 0
        %1516 = vmatprep.subr.bf16.mxu0 0
        %1517 = vmatpush1.bf16.msra.mxu0 %v1435
        %1518 = vmatprep.subr.bf16.mxu0 0
        %1519 = vmatpush1.bf16.msra.mxu0 0
        %1520 = vmatprep.subr.bf16.mxu0 0
        %1521 = vmatpush1.bf16.msra.mxu0 0
        %1522 = vmatprep.subr.bf16.mxu0 0
        %1523 = vmatpush1.bf16.msra.mxu0 0
        %1524 = vmatprep.subr.bf16.mxu0 0
        %1525 = vmatpush1.bf16.msra.mxu0 0
        %1526 = vmatprep.subr.bf16.mxu0 0
        %1527 = vmatpush1.bf16.msra.mxu0 0
        %1528 = vmatprep.subr.bf16.mxu0 0
        %1529 = vmatpush1.bf16.msra.mxu0 0
        %1530 = vmatprep.subr.bf16.mxu0 0
        %1531 = vmatpush1.bf16.msra.mxu0 0
        %1532 = vmatprep.subr.bf16.mxu0 0
        %1533 = vmatpush1.bf16.msra.mxu0 0
        %1534 = vmatprep.subr.bf16.mxu0 0
        %1535 = vmatpush1.bf16.msra.mxu0 0
        %1536 = vmatprep.subr.bf16.mxu0 0
        %1537 = vmatpush1.bf16.msra.mxu0 0
        %1538 = vmatprep.subr.bf16.mxu0 0
        %1539 = vmatpush1.bf16.msra.mxu0 0
        %1540 = vmatprep.subr.bf16.mxu0 0
        %1541 = vmatpush1.bf16.msra.mxu0 0
        %1542 = vmatprep.subr.bf16.mxu0 0
        %1543 = vmatpush1.bf16.msra.mxu0 0
        %1544 = vmatprep.subr.bf16.mxu0 0
        %1545 = vmatpush1.bf16.msra.mxu0 0
        %1546 = vmatprep.subr.bf16.mxu0 0
        %1547 = vmatpush1.bf16.msra.mxu0 0
        %1548 = vmatprep.mubr.bf16.mxu0 0
        %1549 = vmatmul.mubr.bf16.gmra.mrb[0].mxu0 %v1514
        %v1550 = vpop.f32.mrb[0].mxu0
        %v1551 = vadd.f32 0.0, %v1550
        %v1552 = vpop.f32.mrb[0].mxu0
        %v1553 = vpop.f32.mrb[0].mxu0
        %v1554 = vadd.f32 0.0, %v1553
        %v1555 = vpop.f32.mrb[0].mxu0
        %1556 = vdwg.mxu0
        %1557 = vst.msk [vmem:[#allocation2] sm:$0xff] %vm1437, %v1551
        %1558 = vst.msk [vmem:[#allocation2 + $0x8] sm:$0xff] %vm1437, %v1554
        %1560 = vrot.lane.b32.xlu0 %v1431, 96
        %v1561 = vpop.permute.xlu0 %1560
        %1563 = vrot.lane.b32.xlu0 %v1433, 96
        %v1564 = vpop.permute.xlu0 %1563
        %v1566 = vsel %vm1437, %v1561, 0
        %v1569 = vsel %vm1437, %v1564, 0
        %1571 = vmatprep.subr.bf16.mxu0 0
        %1572 = vmatpush1.bf16.xpose.msra.mxu0 %v1569
        %1573 = vmatprep.subr.bf16.mxu0 0
        %1574 = vmatpush1.bf16.xpose.msra.mxu0 0
        %1575 = vmatprep.subr.bf16.mxu0 0
        %1576 = vmatpush1.bf16.xpose.msra.mxu0 0
        %1577 = vmatprep.subr.bf16.mxu0 0
        %1578 = vmatpush1.bf16.xpose.msra.mxu0 0
        %1579 = vmatprep.subr.bf16.mxu0 0
        %1580 = vmatpush1.bf16.xpose.msra.mxu0 0
        %1581 = vmatprep.subr.bf16.mxu0 0
        %1582 = vmatpush1.bf16.xpose.msra.mxu0 0
        %1583 = vmatprep.subr.bf16.mxu0 0
        %1584 = vmatpush1.bf16.xpose.msra.mxu0 0
        %1585 = vmatprep.subr.bf16.mxu0 0
        %1586 = vmatpush1.bf16.xpose.msra.mxu0 0
        %1587 = vmatprep.subr.bf16.mxu0 0
        %1588 = vmatpush1.bf16.xpose.msra.mxu0 0
        %1589 = vmatprep.subr.bf16.mxu0 0
        %1590 = vmatpush1.bf16.xpose.msra.mxu0 0
        %1591 = vmatprep.subr.bf16.mxu0 0
        %1592 = vmatpush1.bf16.xpose.msra.mxu0 0
        %1593 = vmatprep.subr.bf16.mxu0 0
        %1594 = vmatpush1.bf16.xpose.msra.mxu0 0
        %1595 = vmatprep.subr.bf16.mxu0 0
        %1596 = vmatpush1.bf16.xpose.msra.mxu0 0
        %1597 = vmatprep.subr.bf16.mxu0 0
        %1598 = vmatpush1.bf16.xpose.msra.mxu0 0
        %1599 = vmatprep.subr.bf16.mxu0 0
        %1600 = vmatpush1.bf16.xpose.msra.mxu0 0
        %1601 = vmatprep.subr.bf16.mxu0 0
        %1602 = vmatpush1.bf16.xpose.msra.mxu0 0
        %1603 = vmatprep.mubr.bf16.mxu0 0
        %1604 = vmatmul.mubr.bf16.gmra.mrb[0].mxu0 %v1566
        %v1605 = vpop.f32.mrb[0].mxu0
        %v1606 = vadd.f32 0.0, %v1605
        %v1607 = vpop.f32.mrb[0].mxu0
        %v1608 = vpop.f32.mrb[0].mxu0
        %v1609 = vadd.f32 0.0, %v1608
        %v1610 = vpop.f32.mrb[0].mxu0
        %1611 = vdwg.mxu0
        %v1612 = vmul.f32 %v1606, 0.17677669
        %v1613 = vmul.f32 %v1609, 0.17677669
        %v1614 = vsel %vm1000, %v1612, -1e+30
        %v1615 = vsel %vm1001, %v1613, -1e+30
        %v1616 = vsel %vm1489, %v1614, -inf
        %1617 = vmax.xlane.f32.xlu0 %v1616
        %v1618 = vpop.xlane.xlu0 %1617
        %v1619 = vsel %vm1489, %v1615, -inf
        %1620 = vmax.xlane.f32.xlu0 %v1619
        %v1621 = vpop.xlane.xlu0 %1620
        %v1622 = vsub.f32 %v1614, %v1618
        %v1623 = vsub.f32 %v1615, %v1621
        %v1624 = vmul.f32 %v1622, 1.442695
        %v1625 = vpow.pop %v1624
        %v1626 = vmul.f32 %v1623, 1.442695
        %v1627 = vpow.pop %v1626
        %v1628 = vsel %vm1489, %v1625, 0.0
        %1629 = vadd.xlane.f32.xlu0 %v1628
        %v1630 = vpop.xlane.xlu0 %1629
        %v1631 = vsel %vm1489, %v1627, 0.0
        %1632 = vadd.xlane.f32.xlu0 %v1631
        %v1633 = vpop.xlane.xlu0 %1632
        %v1634 = vrcp.pop %v1630
        %v1635 = vmul.f32 %v1625, %v1634
        %v1636 = vrcp.pop %v1633
        %v1637 = vmul.f32 %v1627, %v1636
        %v1638 = vpack.c.bf16 %v1637, %v1635
        %1640 = vrot.lane.b32.xlu0 %v1435, 96
        %v1641 = vpop.permute.xlu0 %1640
        %v1644 = vsel %vm1489, %v1638, 0
        %1646 = vmatprep.subr.bf16.mxu0 0
        %1647 = vmatpush1.bf16.msra.mxu0 %v1641
        %1648 = vmatprep.subr.bf16.mxu0 0
        %1649 = vmatpush1.bf16.msra.mxu0 0
        %1650 = vmatprep.subr.bf16.mxu0 0
        %1651 = vmatpush1.bf16.msra.mxu0 0
        %1652 = vmatprep.subr.bf16.mxu0 0
        %1653 = vmatpush1.bf16.msra.mxu0 0
        %1654 = vmatprep.subr.bf16.mxu0 0
        %1655 = vmatpush1.bf16.msra.mxu0 0
        %1656 = vmatprep.subr.bf16.mxu0 0
        %1657 = vmatpush1.bf16.msra.mxu0 0
        %1658 = vmatprep.subr.bf16.mxu0 0
        %1659 = vmatpush1.bf16.msra.mxu0 0
        %1660 = vmatprep.subr.bf16.mxu0 0
        %1661 = vmatpush1.bf16.msra.mxu0 0
        %1662 = vmatprep.subr.bf16.mxu0 0
        %1663 = vmatpush1.bf16.msra.mxu0 0
        %1664 = vmatprep.subr.bf16.mxu0 0
        %1665 = vmatpush1.bf16.msra.mxu0 0
        %1666 = vmatprep.subr.bf16.mxu0 0
        %1667 = vmatpush1.bf16.msra.mxu0 0
        %1668 = vmatprep.subr.bf16.mxu0 0
        %1669 = vmatpush1.bf16.msra.mxu0 0
        %1670 = vmatprep.subr.bf16.mxu0 0
        %1671 = vmatpush1.bf16.msra.mxu0 0
        %1672 = vmatprep.subr.bf16.mxu0 0
        %1673 = vmatpush1.bf16.msra.mxu0 0
        %1674 = vmatprep.subr.bf16.mxu0 0
        %1675 = vmatpush1.bf16.msra.mxu0 0
        %1676 = vmatprep.subr.bf16.mxu0 0
        %1677 = vmatpush1.bf16.msra.mxu0 0
        %1678 = vmatprep.mubr.bf16.mxu0 0
        %1679 = vmatmul.mubr.bf16.gmra.mrb[0].mxu0 %v1644
        %v1680 = vpop.f32.mrb[0].mxu0
        %v1681 = vadd.f32 0.0, %v1680
        %v1682 = vpop.f32.mrb[0].mxu0
        %v1683 = vpop.f32.mrb[0].mxu0
        %v1684 = vadd.f32 0.0, %v1683
        %v1685 = vpop.f32.mrb[0].mxu0
        %1686 = vdwg.mxu0
        %1689 = vrot.lane.b32.xlu0 %v1681, 32
        %v1690 = vpop.permute.xlu0 %1689
        %1691 = vrot.lane.b32.xlu0 %v1684, 32
        %v1692 = vpop.permute.xlu0 %1691
        %vm1695 = vcmask 523520
        %1696 = vst.msk [vmem:[#allocation2] sm:$0xff] %vm1695, %v1690
        %1697 = vst.msk [vmem:[#allocation2 + $0x8] sm:$0xff] %vm1695, %v1692
        %1698 = vrot.lane.b32.xlu0 %v1431, 64
        %v1699 = vpop.permute.xlu0 %1698
        %1700 = vrot.lane.b32.xlu0 %v1433, 64
        %v1701 = vpop.permute.xlu0 %1700
        %v1703 = vsel %vm1437, %v1699, 0
        %v1706 = vsel %vm1437, %v1701, 0
        %1708 = vmatprep.subr.bf16.mxu0 0
        %1709 = vmatpush1.bf16.xpose.msra.mxu0 %v1706
        %1710 = vmatprep.subr.bf16.mxu0 0
        %1711 = vmatpush1.bf16.xpose.msra.mxu0 0
        %1712 = vmatprep.subr.bf16.mxu0 0
        %1713 = vmatpush1.bf16.xpose.msra.mxu0 0
        %1714 = vmatprep.subr.bf16.mxu0 0
        %1715 = vmatpush1.bf16.xpose.msra.mxu0 0
        %1716 = vmatprep.subr.bf16.mxu0 0
        %1717 = vmatpush1.bf16.xpose.msra.mxu0 0
        %1718 = vmatprep.subr.bf16.mxu0 0
        %1719 = vmatpush1.bf16.xpose.msra.mxu0 0
        %1720 = vmatprep.subr.bf16.mxu0 0
        %1721 = vmatpush1.bf16.xpose.msra.mxu0 0
        %1722 = vmatprep.subr.bf16.mxu0 0
        %1723 = vmatpush1.bf16.xpose.msra.mxu0 0
        %1724 = vmatprep.subr.bf16.mxu0 0
        %1725 = vmatpush1.bf16.xpose.msra.mxu0 0
        %1726 = vmatprep.subr.bf16.mxu0 0
        %1727 = vmatpush1.bf16.xpose.msra.mxu0 0
        %1728 = vmatprep.subr.bf16.mxu0 0
        %1729 = vmatpush1.bf16.xpose.msra.mxu0 0
        %1730 = vmatprep.subr.bf16.mxu0 0
        %1731 = vmatpush1.bf16.xpose.msra.mxu0 0
        %1732 = vmatprep.subr.bf16.mxu0 0
        %1733 = vmatpush1.bf16.xpose.msra.mxu0 0
        %1734 = vmatprep.subr.bf16.mxu0 0
        %1735 = vmatpush1.bf16.xpose.msra.mxu0 0
        %1736 = vmatprep.subr.bf16.mxu0 0
        %1737 = vmatpush1.bf16.xpose.msra.mxu0 0
        %1738 = vmatprep.subr.bf16.mxu0 0
        %1739 = vmatpush1.bf16.xpose.msra.mxu0 0
        %1740 = vmatprep.mubr.bf16.mxu0 0
        %1741 = vmatmul.mubr.bf16.gmra.mrb[0].mxu0 %v1703
        %v1742 = vpop.f32.mrb[0].mxu0
        %v1743 = vadd.f32 0.0, %v1742
        %v1744 = vpop.f32.mrb[0].mxu0
        %v1745 = vpop.f32.mrb[0].mxu0
        %v1746 = vadd.f32 0.0, %v1745
        %v1747 = vpop.f32.mrb[0].mxu0
        %1748 = vdwg.mxu0
        %v1749 = vmul.f32 %v1743, 0.17677669
        %v1750 = vmul.f32 %v1746, 0.17677669
        %v1751 = vsel %vm1000, %v1749, -1e+30
        %v1752 = vsel %vm1001, %v1750, -1e+30
        %v1753 = vsel %vm1489, %v1751, -inf
        %1754 = vmax.xlane.f32.xlu0 %v1753
        %v1755 = vpop.xlane.xlu0 %1754
        %v1756 = vsel %vm1489, %v1752, -inf
        %1757 = vmax.xlane.f32.xlu0 %v1756
        %v1758 = vpop.xlane.xlu0 %1757
        %v1759 = vsub.f32 %v1751, %v1755
        %v1760 = vsub.f32 %v1752, %v1758
        %v1761 = vmul.f32 %v1759, 1.442695
        %v1762 = vpow.pop %v1761
        %v1763 = vmul.f32 %v1760, 1.442695
        %v1764 = vpow.pop %v1763
        %v1765 = vsel %vm1489, %v1762, 0.0
        %1766 = vadd.xlane.f32.xlu0 %v1765
        %v1767 = vpop.xlane.xlu0 %1766
        %v1768 = vsel %vm1489, %v1764, 0.0
        %1769 = vadd.xlane.f32.xlu0 %v1768
        %v1770 = vpop.xlane.xlu0 %1769
        %v1771 = vrcp.pop %v1767
        %v1772 = vmul.f32 %v1762, %v1771
        %v1773 = vrcp.pop %v1770
        %v1774 = vmul.f32 %v1764, %v1773
        %v1775 = vpack.c.bf16 %v1774, %v1772
        %1776 = vrot.lane.b32.xlu0 %v1435, 64
        %v1777 = vpop.permute.xlu0 %1776
        %v1780 = vsel %vm1489, %v1775, 0
        %1782 = vmatprep.subr.bf16.mxu0 0
        %1783 = vmatpush1.bf16.msra.mxu0 %v1777
        %1784 = vmatprep.subr.bf16.mxu0 0
        %1785 = vmatpush1.bf16.msra.mxu0 0
        %1786 = vmatprep.subr.bf16.mxu0 0
        %1787 = vmatpush1.bf16.msra.mxu0 0
        %1788 = vmatprep.subr.bf16.mxu0 0
        %1789 = vmatpush1.bf16.msra.mxu0 0
        %1790 = vmatprep.subr.bf16.mxu0 0
        %1791 = vmatpush1.bf16.msra.mxu0 0
        %1792 = vmatprep.subr.bf16.mxu0 0
        %1793 = vmatpush1.bf16.msra.mxu0 0
        %1794 = vmatprep.subr.bf16.mxu0 0
        %1795 = vmatpush1.bf16.msra.mxu0 0
        %1796 = vmatprep.subr.bf16.mxu0 0
        %1797 = vmatpush1.bf16.msra.mxu0 0
        %1798 = vmatprep.subr.bf16.mxu0 0
        %1799 = vmatpush1.bf16.msra.mxu0 0
        %1800 = vmatprep.subr.bf16.mxu0 0
        %1801 = vmatpush1.bf16.msra.mxu0 0
        %1802 = vmatprep.subr.bf16.mxu0 0
        %1803 = vmatpush1.bf16.msra.mxu0 0
        %1804 = vmatprep.subr.bf16.mxu0 0
        %1805 = vmatpush1.bf16.msra.mxu0 0
        %1806 = vmatprep.subr.bf16.mxu0 0
        %1807 = vmatpush1.bf16.msra.mxu0 0
        %1808 = vmatprep.subr.bf16.mxu0 0
        %1809 = vmatpush1.bf16.msra.mxu0 0
        %1810 = vmatprep.subr.bf16.mxu0 0
        %1811 = vmatpush1.bf16.msra.mxu0 0
        %1812 = vmatprep.subr.bf16.mxu0 0
        %1813 = vmatpush1.bf16.msra.mxu0 0
        %1814 = vmatprep.mubr.bf16.mxu0 0
        %1815 = vmatmul.mubr.bf16.gmra.mrb[0].mxu0 %v1780
        %v1816 = vpop.f32.mrb[0].mxu0
        %v1817 = vadd.f32 0.0, %v1816
        %v1818 = vpop.f32.mrb[0].mxu0
        %v1819 = vpop.f32.mrb[0].mxu0
        %v1820 = vadd.f32 0.0, %v1819
        %v1821 = vpop.f32.mrb[0].mxu0
        %1822 = vdwg.mxu0
        %1825 = vrot.lane.b32.xlu0 %v1817, 64
        %v1826 = vpop.permute.xlu0 %1825
        %1827 = vrot.lane.b32.xlu0 %v1820, 64
        %v1828 = vpop.permute.xlu0 %1827
        %vm1831 = vcmask 785920
        %1832 = vst.msk [vmem:[#allocation2] sm:$0xff] %vm1831, %v1826
        %1833 = vst.msk [vmem:[#allocation2 + $0x8] sm:$0xff] %vm1831, %v1828
        %1834 = vrot.lane.b32.xlu0 %v1431, 32
        %v1835 = vpop.permute.xlu0 %1834
        %1836 = vrot.lane.b32.xlu0 %v1433, 32
        %v1837 = vpop.permute.xlu0 %1836
        %v1839 = vsel %vm1437, %v1835, 0
        %v1842 = vsel %vm1437, %v1837, 0
        %1844 = vmatprep.subr.bf16.mxu0 0
        %1845 = vmatpush1.bf16.xpose.msra.mxu0 %v1842
        %1846 = vmatprep.subr.bf16.mxu0 0
        %1847 = vmatpush1.bf16.xpose.msra.mxu0 0
        %1848 = vmatprep.subr.bf16.mxu0 0
        %1849 = vmatpush1.bf16.xpose.msra.mxu0 0
        %1850 = vmatprep.subr.bf16.mxu0 0
        %1851 = vmatpush1.bf16.xpose.msra.mxu0 0
        %1852 = vmatprep.subr.bf16.mxu0 0
        %1853 = vmatpush1.bf16.xpose.msra.mxu0 0
        %1854 = vmatprep.subr.bf16.mxu0 0
        %1855 = vmatpush1.bf16.xpose.msra.mxu0 0
        %1856 = vmatprep.subr.bf16.mxu0 0
        %1857 = vmatpush1.bf16.xpose.msra.mxu0 0
        %1858 = vmatprep.subr.bf16.mxu0 0
        %1859 = vmatpush1.bf16.xpose.msra.mxu0 0
        %1860 = vmatprep.subr.bf16.mxu0 0
        %1861 = vmatpush1.bf16.xpose.msra.mxu0 0
        %1862 = vmatprep.subr.bf16.mxu0 0
        %1863 = vmatpush1.bf16.xpose.msra.mxu0 0
        %1864 = vmatprep.subr.bf16.mxu0 0
        %1865 = vmatpush1.bf16.xpose.msra.mxu0 0
        %1866 = vmatprep.subr.bf16.mxu0 0
        %1867 = vmatpush1.bf16.xpose.msra.mxu0 0
        %1868 = vmatprep.subr.bf16.mxu0 0
        %1869 = vmatpush1.bf16.xpose.msra.mxu0 0
        %1870 = vmatprep.subr.bf16.mxu0 0
        %1871 = vmatpush1.bf16.xpose.msra.mxu0 0
        %1872 = vmatprep.subr.bf16.mxu0 0
        %1873 = vmatpush1.bf16.xpose.msra.mxu0 0
        %1874 = vmatprep.subr.bf16.mxu0 0
        %1875 = vmatpush1.bf16.xpose.msra.mxu0 0
        %1876 = vmatprep.mubr.bf16.mxu0 0
        %1877 = vmatmul.mubr.bf16.gmra.mrb[0].mxu0 %v1839
        %v1878 = vpop.f32.mrb[0].mxu0
        %v1879 = vadd.f32 0.0, %v1878
        %v1880 = vpop.f32.mrb[0].mxu0
        %v1881 = vpop.f32.mrb[0].mxu0
        %v1882 = vadd.f32 0.0, %v1881
        %v1883 = vpop.f32.mrb[0].mxu0
        %1884 = vdwg.mxu0
        %v1885 = vmul.f32 %v1879, 0.17677669
        %v1886 = vmul.f32 %v1882, 0.17677669
        %v1887 = vsel %vm1000, %v1885, -1e+30
        %v1888 = vsel %vm1001, %v1886, -1e+30
        %v1889 = vsel %vm1489, %v1887, -inf
        %1890 = vmax.xlane.f32.xlu0 %v1889
        %v1891 = vpop.xlane.xlu0 %1890
        %v1892 = vsel %vm1489, %v1888, -inf
        %1893 = vmax.xlane.f32.xlu0 %v1892
        %v1894 = vpop.xlane.xlu0 %1893
        %v1895 = vsub.f32 %v1887, %v1891
        %v1896 = vsub.f32 %v1888, %v1894
        %v1897 = vmul.f32 %v1895, 1.442695
        %v1898 = vpow.pop %v1897
        %v1899 = vmul.f32 %v1896, 1.442695
        %v1900 = vpow.pop %v1899
        %v1901 = vsel %vm1489, %v1898, 0.0
        %1902 = vadd.xlane.f32.xlu0 %v1901
        %v1903 = vpop.xlane.xlu0 %1902
        %v1904 = vsel %vm1489, %v1900, 0.0
        %1905 = vadd.xlane.f32.xlu0 %v1904
        %v1906 = vpop.xlane.xlu0 %1905
        %v1907 = vrcp.pop %v1903
        %v1908 = vmul.f32 %v1898, %v1907
        %v1909 = vrcp.pop %v1906
        %v1910 = vmul.f32 %v1900, %v1909
        %v1911 = vpack.c.bf16 %v1910, %v1908
        %1912 = vrot.lane.b32.xlu0 %v1435, 32
        %v1913 = vpop.permute.xlu0 %1912
        %v1916 = vsel %vm1489, %v1911, 0
        %1918 = vmatprep.subr.bf16.mxu0 0
        %1919 = vmatpush1.bf16.msra.mxu0 %v1913
        %1920 = vmatprep.subr.bf16.mxu0 0
        %1921 = vmatpush1.bf16.msra.mxu0 0
        %1922 = vmatprep.subr.bf16.mxu0 0
        %1923 = vmatpush1.bf16.msra.mxu0 0
        %1924 = vmatprep.subr.bf16.mxu0 0
        %1925 = vmatpush1.bf16.msra.mxu0 0
        %1926 = vmatprep.subr.bf16.mxu0 0
        %1927 = vmatpush1.bf16.msra.mxu0 0
        %1928 = vmatprep.subr.bf16.mxu0 0
        %1929 = vmatpush1.bf16.msra.mxu0 0
        %1930 = vmatprep.subr.bf16.mxu0 0
        %1931 = vmatpush1.bf16.msra.mxu0 0
        %1932 = vmatprep.subr.bf16.mxu0 0
        %1933 = vmatpush1.bf16.msra.mxu0 0
        %1934 = vmatprep.subr.bf16.mxu0 0
        %1935 = vmatpush1.bf16.msra.mxu0 0
        %1936 = vmatprep.subr.bf16.mxu0 0
        %1937 = vmatpush1.bf16.msra.mxu0 0
        %1938 = vmatprep.subr.bf16.mxu0 0
        %1939 = vmatpush1.bf16.msra.mxu0 0
        %1940 = vmatprep.subr.bf16.mxu0 0
        %1941 = vmatpush1.bf16.msra.mxu0 0
        %1942 = vmatprep.subr.bf16.mxu0 0
        %1943 = vmatpush1.bf16.msra.mxu0 0
        %1944 = vmatprep.subr.bf16.mxu0 0
        %1945 = vmatpush1.bf16.msra.mxu0 0
        %1946 = vmatprep.subr.bf16.mxu0 0
        %1947 = vmatpush1.bf16.msra.mxu0 0
        %1948 = vmatprep.subr.bf16.mxu0 0
        %1949 = vmatpush1.bf16.msra.mxu0 0
        %1950 = vmatprep.mubr.bf16.mxu0 0
        %1951 = vmatmul.mubr.bf16.gmra.mrb[0].mxu0 %v1916
        %v1952 = vpop.f32.mrb[0].mxu0
        %v1953 = vadd.f32 0.0, %v1952
        %v1954 = vpop.f32.mrb[0].mxu0
        %v1955 = vpop.f32.mrb[0].mxu0
        %v1956 = vadd.f32 0.0, %v1955
        %v1957 = vpop.f32.mrb[0].mxu0
        %1958 = vdwg.mxu0
        %1961 = vrot.lane.b32.xlu0 %v1953, 96
        %v1962 = vpop.permute.xlu0 %1961
        %1963 = vrot.lane.b32.xlu0 %v1956, 96
        %v1964 = vpop.permute.xlu0 %1963
        %vm1967 = vcmask 1048320
        %1968 = vst.msk [vmem:[#allocation2] sm:$0xff] %vm1967, %v1962
        %1969 = vst.msk [vmem:[#allocation2 + $0x8] sm:$0xff] %vm1967, %v1964
        %v1971 = vsel %vm1437, %v1432, 0
        %v1974 = vsel %vm1437, %v1434, 0
        %1976 = vmatprep.subr.bf16.mxu0 0
        %1977 = vmatpush1.bf16.xpose.msra.mxu0 %v1974
        %1978 = vmatprep.subr.bf16.mxu0 0
        %1979 = vmatpush1.bf16.xpose.msra.mxu0 0
        %1980 = vmatprep.subr.bf16.mxu0 0
        %1981 = vmatpush1.bf16.xpose.msra.mxu0 0
        %1982 = vmatprep.subr.bf16.mxu0 0
        %1983 = vmatpush1.bf16.xpose.msra.mxu0 0
        %1984 = vmatprep.subr.bf16.mxu0 0
        %1985 = vmatpush1.bf16.xpose.msra.mxu0 0
        %1986 = vmatprep.subr.bf16.mxu0 0
        %1987 = vmatpush1.bf16.xpose.msra.mxu0 0
        %1988 = vmatprep.subr.bf16.mxu0 0
        %1989 = vmatpush1.bf16.xpose.msra.mxu0 0
        %1990 = vmatprep.subr.bf16.mxu0 0
        %1991 = vmatpush1.bf16.xpose.msra.mxu0 0
        %1992 = vmatprep.subr.bf16.mxu0 0
        %1993 = vmatpush1.bf16.xpose.msra.mxu0 0
        %1994 = vmatprep.subr.bf16.mxu0 0
        %1995 = vmatpush1.bf16.xpose.msra.mxu0 0
        %1996 = vmatprep.subr.bf16.mxu0 0
        %1997 = vmatpush1.bf16.xpose.msra.mxu0 0
        %1998 = vmatprep.subr.bf16.mxu0 0
        %1999 = vmatpush1.bf16.xpose.msra.mxu0 0
        %2000 = vmatprep.subr.bf16.mxu0 0
        %2001 = vmatpush1.bf16.xpose.msra.mxu0 0
        %2002 = vmatprep.subr.bf16.mxu0 0
        %2003 = vmatpush1.bf16.xpose.msra.mxu0 0
        %2004 = vmatprep.subr.bf16.mxu0 0
        %2005 = vmatpush1.bf16.xpose.msra.mxu0 0
        %2006 = vmatprep.subr.bf16.mxu0 0
        %2007 = vmatpush1.bf16.xpose.msra.mxu0 0
        %2008 = vmatprep.mubr.bf16.mxu0 0
        %2009 = vmatmul.mubr.bf16.gmra.mrb[0].mxu0 %v1971
        %v2010 = vpop.f32.mrb[0].mxu0
        %v2011 = vadd.f32 0.0, %v2010
        %v2012 = vpop.f32.mrb[0].mxu0
        %v2013 = vpop.f32.mrb[0].mxu0
        %v2014 = vadd.f32 0.0, %v2013
        %v2015 = vpop.f32.mrb[0].mxu0
        %2016 = vdwg.mxu0
        %v2017 = vmul.f32 %v2011, 0.17677669
        %v2018 = vmul.f32 %v2014, 0.17677669
        %v2019 = vsel %vm1000, %v2017, -1e+30
        %v2020 = vsel %vm1001, %v2018, -1e+30
        %v2021 = vsel %vm1489, %v2019, -inf
        %2022 = vmax.xlane.f32.xlu0 %v2021
        %v2023 = vpop.xlane.xlu0 %2022
        %v2024 = vsel %vm1489, %v2020, -inf
        %2025 = vmax.xlane.f32.xlu0 %v2024
        %v2026 = vpop.xlane.xlu0 %2025
        %v2027 = vsub.f32 %v2019, %v2023
        %v2028 = vsub.f32 %v2020, %v2026
        %v2029 = vmul.f32 %v2027, 1.442695
        %v2030 = vpow.pop %v2029
        %v2031 = vmul.f32 %v2028, 1.442695
        %v2032 = vpow.pop %v2031
        %v2033 = vsel %vm1489, %v2030, 0.0
        %2034 = vadd.xlane.f32.xlu0 %v2033
        %v2035 = vpop.xlane.xlu0 %2034
        %v2036 = vsel %vm1489, %v2032, 0.0
        %2037 = vadd.xlane.f32.xlu0 %v2036
        %v2038 = vpop.xlane.xlu0 %2037
        %v2039 = vrcp.pop %v2035
        %v2040 = vmul.f32 %v2030, %v2039
        %v2041 = vrcp.pop %v2038
        %v2042 = vmul.f32 %v2032, %v2041
        %v2043 = vpack.c.bf16 %v2042, %v2040
        %v2045 = vsel %vm1489, %v2043, 0
        %2047 = vmatprep.subr.bf16.mxu0 0
        %2048 = vmatpush1.bf16.msra.mxu0 %v1436
        %2049 = vmatprep.subr.bf16.mxu0 0
        %2050 = vmatpush1.bf16.msra.mxu0 0
        %2051 = vmatprep.subr.bf16.mxu0 0
        %2052 = vmatpush1.bf16.msra.mxu0 0
        %2053 = vmatprep.subr.bf16.mxu0 0
        %2054 = vmatpush1.bf16.msra.mxu0 0
        %2055 = vmatprep.subr.bf16.mxu0 0
        %2056 = vmatpush1.bf16.msra.mxu0 0
        %2057 = vmatprep.subr.bf16.mxu0 0
        %2058 = vmatpush1.bf16.msra.mxu0 0
        %2059 = vmatprep.subr.bf16.mxu0 0
        %2060 = vmatpush1.bf16.msra.mxu0 0
        %2061 = vmatprep.subr.bf16.mxu0 0
        %2062 = vmatpush1.bf16.msra.mxu0 0
        %2063 = vmatprep.subr.bf16.mxu0 0
        %2064 = vmatpush1.bf16.msra.mxu0 0
        %2065 = vmatprep.subr.bf16.mxu0 0
        %2066 = vmatpush1.bf16.msra.mxu0 0
        %2067 = vmatprep.subr.bf16.mxu0 0
        %2068 = vmatpush1.bf16.msra.mxu0 0
        %2069 = vmatprep.subr.bf16.mxu0 0
        %2070 = vmatpush1.bf16.msra.mxu0 0
        %2071 = vmatprep.subr.bf16.mxu0 0
        %2072 = vmatpush1.bf16.msra.mxu0 0
        %2073 = vmatprep.subr.bf16.mxu0 0
        %2074 = vmatpush1.bf16.msra.mxu0 0
        %2075 = vmatprep.subr.bf16.mxu0 0
        %2076 = vmatpush1.bf16.msra.mxu0 0
        %2077 = vmatprep.subr.bf16.mxu0 0
        %2078 = vmatpush1.bf16.msra.mxu0 0
        %2079 = vmatprep.mubr.bf16.mxu0 0
        %2080 = vmatmul.mubr.bf16.gmra.mrb[0].mxu0 %v2045
        %v2081 = vpop.f32.mrb[0].mxu0
        %v2082 = vadd.f32 0.0, %v2081
        %v2083 = vpop.f32.mrb[0].mxu0
        %v2084 = vpop.f32.mrb[0].mxu0
        %v2085 = vadd.f32 0.0, %v2084
        %v2086 = vpop.f32.mrb[0].mxu0
        %2087 = vdwg.mxu0
        %2088 = vst.msk [vmem:[#allocation2 + $0x10] sm:$0xff] %vm1437, %v2082
        %2089 = vst.msk [vmem:[#allocation2 + $0x18] sm:$0xff] %vm1437, %v2085
        %2091 = vrot.lane.b32.xlu0 %v1432, 96
        %v2092 = vpop.permute.xlu0 %2091
        %2094 = vrot.lane.b32.xlu0 %v1434, 96
        %v2095 = vpop.permute.xlu0 %2094
        %v2097 = vsel %vm1437, %v2092, 0
        %v2100 = vsel %vm1437, %v2095, 0
        %2102 = vmatprep.subr.bf16.mxu0 0
        %2103 = vmatpush1.bf16.xpose.msra.mxu0 %v2100
        %2104 = vmatprep.subr.bf16.mxu0 0
        %2105 = vmatpush1.bf16.xpose.msra.mxu0 0
        %2106 = vmatprep.subr.bf16.mxu0 0
        %2107 = vmatpush1.bf16.xpose.msra.mxu0 0
        %2108 = vmatprep.subr.bf16.mxu0 0
        %2109 = vmatpush1.bf16.xpose.msra.mxu0 0
        %2110 = vmatprep.subr.bf16.mxu0 0
        %2111 = vmatpush1.bf16.xpose.msra.mxu0 0
        %2112 = vmatprep.subr.bf16.mxu0 0
        %2113 = vmatpush1.bf16.xpose.msra.mxu0 0
        %2114 = vmatprep.subr.bf16.mxu0 0
        %2115 = vmatpush1.bf16.xpose.msra.mxu0 0
        %2116 = vmatprep.subr.bf16.mxu0 0
        %2117 = vmatpush1.bf16.xpose.msra.mxu0 0
        %2118 = vmatprep.subr.bf16.mxu0 0
        %2119 = vmatpush1.bf16.xpose.msra.mxu0 0
        %2120 = vmatprep.subr.bf16.mxu0 0
        %2121 = vmatpush1.bf16.xpose.msra.mxu0 0
        %2122 = vmatprep.subr.bf16.mxu0 0
        %2123 = vmatpush1.bf16.xpose.msra.mxu0 0
        %2124 = vmatprep.subr.bf16.mxu0 0
        %2125 = vmatpush1.bf16.xpose.msra.mxu0 0
        %2126 = vmatprep.subr.bf16.mxu0 0
        %2127 = vmatpush1.bf16.xpose.msra.mxu0 0
        %2128 = vmatprep.subr.bf16.mxu0 0
        %2129 = vmatpush1.bf16.xpose.msra.mxu0 0
        %2130 = vmatprep.subr.bf16.mxu0 0
        %2131 = vmatpush1.bf16.xpose.msra.mxu0 0
        %2132 = vmatprep.subr.bf16.mxu0 0
        %2133 = vmatpush1.bf16.xpose.msra.mxu0 0
        %2134 = vmatprep.mubr.bf16.mxu0 0
        %2135 = vmatmul.mubr.bf16.gmra.mrb[0].mxu0 %v2097
        %v2136 = vpop.f32.mrb[0].mxu0
        %v2137 = vadd.f32 0.0, %v2136
        %v2138 = vpop.f32.mrb[0].mxu0
        %v2139 = vpop.f32.mrb[0].mxu0
        %v2140 = vadd.f32 0.0, %v2139
        %v2141 = vpop.f32.mrb[0].mxu0
        %2142 = vdwg.mxu0
        %v2143 = vmul.f32 %v2137, 0.17677669
        %v2144 = vmul.f32 %v2140, 0.17677669
        %v2145 = vsel %vm1000, %v2143, -1e+30
        %v2146 = vsel %vm1001, %v2144, -1e+30
        %v2147 = vsel %vm1489, %v2145, -inf
        %2148 = vmax.xlane.f32.xlu0 %v2147
        %v2149 = vpop.xlane.xlu0 %2148
        %v2150 = vsel %vm1489, %v2146, -inf
        %2151 = vmax.xlane.f32.xlu0 %v2150
        %v2152 = vpop.xlane.xlu0 %2151
        %v2153 = vsub.f32 %v2145, %v2149
        %v2154 = vsub.f32 %v2146, %v2152
        %v2155 = vmul.f32 %v2153, 1.442695
        %v2156 = vpow.pop %v2155
        %v2157 = vmul.f32 %v2154, 1.442695
        %v2158 = vpow.pop %v2157
        %v2159 = vsel %vm1489, %v2156, 0.0
        %2160 = vadd.xlane.f32.xlu0 %v2159
        %v2161 = vpop.xlane.xlu0 %2160
        %v2162 = vsel %vm1489, %v2158, 0.0
        %2163 = vadd.xlane.f32.xlu0 %v2162
        %v2164 = vpop.xlane.xlu0 %2163
        %v2165 = vrcp.pop %v2161
        %v2166 = vmul.f32 %v2156, %v2165
        %v2167 = vrcp.pop %v2164
        %v2168 = vmul.f32 %v2158, %v2167
        %v2169 = vpack.c.bf16 %v2168, %v2166
        %2171 = vrot.lane.b32.xlu0 %v1436, 96
        %v2172 = vpop.permute.xlu0 %2171
        %v2175 = vsel %vm1489, %v2169, 0
        %2177 = vmatprep.subr.bf16.mxu0 0
        %2178 = vmatpush1.bf16.msra.mxu0 %v2172
        %2179 = vmatprep.subr.bf16.mxu0 0
        %2180 = vmatpush1.bf16.msra.mxu0 0
        %2181 = vmatprep.subr.bf16.mxu0 0
        %2182 = vmatpush1.bf16.msra.mxu0 0
        %2183 = vmatprep.subr.bf16.mxu0 0
        %2184 = vmatpush1.bf16.msra.mxu0 0
        %2185 = vmatprep.subr.bf16.mxu0 0
        %2186 = vmatpush1.bf16.msra.mxu0 0
        %2187 = vmatprep.subr.bf16.mxu0 0
        %2188 = vmatpush1.bf16.msra.mxu0 0
        %2189 = vmatprep.subr.bf16.mxu0 0
        %2190 = vmatpush1.bf16.msra.mxu0 0
        %2191 = vmatprep.subr.bf16.mxu0 0
        %2192 = vmatpush1.bf16.msra.mxu0 0
        %2193 = vmatprep.subr.bf16.mxu0 0
        %2194 = vmatpush1.bf16.msra.mxu0 0
        %2195 = vmatprep.subr.bf16.mxu0 0
        %2196 = vmatpush1.bf16.msra.mxu0 0
        %2197 = vmatprep.subr.bf16.mxu0 0
        %2198 = vmatpush1.bf16.msra.mxu0 0
        %2199 = vmatprep.subr.bf16.mxu0 0
        %2200 = vmatpush1.bf16.msra.mxu0 0
        %2201 = vmatprep.subr.bf16.mxu0 0
        %2202 = vmatpush1.bf16.msra.mxu0 0
        %2203 = vmatprep.subr.bf16.mxu0 0
        %2204 = vmatpush1.bf16.msra.mxu0 0
        %2205 = vmatprep.subr.bf16.mxu0 0
        %2206 = vmatpush1.bf16.msra.mxu0 0
        %2207 = vmatprep.subr.bf16.mxu0 0
        %2208 = vmatpush1.bf16.msra.mxu0 0
        %2209 = vmatprep.mubr.bf16.mxu0 0
        %2210 = vmatmul.mubr.bf16.gmra.mrb[0].mxu0 %v2175
        %v2211 = vpop.f32.mrb[0].mxu0
        %v2212 = vadd.f32 0.0, %v2211
        %v2213 = vpop.f32.mrb[0].mxu0
        %v2214 = vpop.f32.mrb[0].mxu0
        %v2215 = vadd.f32 0.0, %v2214
        %v2216 = vpop.f32.mrb[0].mxu0
        %2217 = vdwg.mxu0
        %2220 = vrot.lane.b32.xlu0 %v2212, 32
        %v2221 = vpop.permute.xlu0 %2220
        %2222 = vrot.lane.b32.xlu0 %v2215, 32
        %v2223 = vpop.permute.xlu0 %2222
        %2226 = vst.msk [vmem:[#allocation2 + $0x10] sm:$0xff] %vm1695, %v2221
        %2227 = vst.msk [vmem:[#allocation2 + $0x18] sm:$0xff] %vm1695, %v2223
        %2228 = vrot.lane.b32.xlu0 %v1432, 64
        %v2229 = vpop.permute.xlu0 %2228
        %2230 = vrot.lane.b32.xlu0 %v1434, 64
        %v2231 = vpop.permute.xlu0 %2230
        %v2233 = vsel %vm1437, %v2229, 0
        %v2236 = vsel %vm1437, %v2231, 0
        %2238 = vmatprep.subr.bf16.mxu0 0
        %2239 = vmatpush1.bf16.xpose.msra.mxu0 %v2236
        %2240 = vmatprep.subr.bf16.mxu0 0
        %2241 = vmatpush1.bf16.xpose.msra.mxu0 0
        %2242 = vmatprep.subr.bf16.mxu0 0
        %2243 = vmatpush1.bf16.xpose.msra.mxu0 0
        %2244 = vmatprep.subr.bf16.mxu0 0
        %2245 = vmatpush1.bf16.xpose.msra.mxu0 0
        %2246 = vmatprep.subr.bf16.mxu0 0
        %2247 = vmatpush1.bf16.xpose.msra.mxu0 0
        %2248 = vmatprep.subr.bf16.mxu0 0
        %2249 = vmatpush1.bf16.xpose.msra.mxu0 0
        %2250 = vmatprep.subr.bf16.mxu0 0
        %2251 = vmatpush1.bf16.xpose.msra.mxu0 0
        %2252 = vmatprep.subr.bf16.mxu0 0
        %2253 = vmatpush1.bf16.xpose.msra.mxu0 0
        %2254 = vmatprep.subr.bf16.mxu0 0
        %2255 = vmatpush1.bf16.xpose.msra.mxu0 0
        %2256 = vmatprep.subr.bf16.mxu0 0
        %2257 = vmatpush1.bf16.xpose.msra.mxu0 0
        %2258 = vmatprep.subr.bf16.mxu0 0
        %2259 = vmatpush1.bf16.xpose.msra.mxu0 0
        %2260 = vmatprep.subr.bf16.mxu0 0
        %2261 = vmatpush1.bf16.xpose.msra.mxu0 0
        %2262 = vmatprep.subr.bf16.mxu0 0
        %2263 = vmatpush1.bf16.xpose.msra.mxu0 0
        %2264 = vmatprep.subr.bf16.mxu0 0
        %2265 = vmatpush1.bf16.xpose.msra.mxu0 0
        %2266 = vmatprep.subr.bf16.mxu0 0
        %2267 = vmatpush1.bf16.xpose.msra.mxu0 0
        %2268 = vmatprep.subr.bf16.mxu0 0
        %2269 = vmatpush1.bf16.xpose.msra.mxu0 0
        %2270 = vmatprep.mubr.bf16.mxu0 0
        %2271 = vmatmul.mubr.bf16.gmra.mrb[0].mxu0 %v2233
        %v2272 = vpop.f32.mrb[0].mxu0
        %v2273 = vadd.f32 0.0, %v2272
        %v2274 = vpop.f32.mrb[0].mxu0
        %v2275 = vpop.f32.mrb[0].mxu0
        %v2276 = vadd.f32 0.0, %v2275
        %v2277 = vpop.f32.mrb[0].mxu0
        %2278 = vdwg.mxu0
        %v2279 = vmul.f32 %v2273, 0.17677669
        %v2280 = vmul.f32 %v2276, 0.17677669
        %v2281 = vsel %vm1000, %v2279, -1e+30
        %v2282 = vsel %vm1001, %v2280, -1e+30
        %v2283 = vsel %vm1489, %v2281, -inf
        %2284 = vmax.xlane.f32.xlu0 %v2283
        %v2285 = vpop.xlane.xlu0 %2284
        %v2286 = vsel %vm1489, %v2282, -inf
        %2287 = vmax.xlane.f32.xlu0 %v2286
        %v2288 = vpop.xlane.xlu0 %2287
        %v2289 = vsub.f32 %v2281, %v2285
        %v2290 = vsub.f32 %v2282, %v2288
        %v2291 = vmul.f32 %v2289, 1.442695
        %v2292 = vpow.pop %v2291
        %v2293 = vmul.f32 %v2290, 1.442695
        %v2294 = vpow.pop %v2293
        %v2295 = vsel %vm1489, %v2292, 0.0
        %2296 = vadd.xlane.f32.xlu0 %v2295
        %v2297 = vpop.xlane.xlu0 %2296
        %v2298 = vsel %vm1489, %v2294, 0.0
        %2299 = vadd.xlane.f32.xlu0 %v2298
        %v2300 = vpop.xlane.xlu0 %2299
        %v2301 = vrcp.pop %v2297
        %v2302 = vmul.f32 %v2292, %v2301
        %v2303 = vrcp.pop %v2300
        %v2304 = vmul.f32 %v2294, %v2303
        %v2305 = vpack.c.bf16 %v2304, %v2302
        %2306 = vrot.lane.b32.xlu0 %v1436, 64
        %v2307 = vpop.permute.xlu0 %2306
        %v2310 = vsel %vm1489, %v2305, 0
        %2312 = vmatprep.subr.bf16.mxu0 0
        %2313 = vmatpush1.bf16.msra.mxu0 %v2307
        %2314 = vmatprep.subr.bf16.mxu0 0
        %2315 = vmatpush1.bf16.msra.mxu0 0
        %2316 = vmatprep.subr.bf16.mxu0 0
        %2317 = vmatpush1.bf16.msra.mxu0 0
        %2318 = vmatprep.subr.bf16.mxu0 0
        %2319 = vmatpush1.bf16.msra.mxu0 0
        %2320 = vmatprep.subr.bf16.mxu0 0
        %2321 = vmatpush1.bf16.msra.mxu0 0
        %2322 = vmatprep.subr.bf16.mxu0 0
        %2323 = vmatpush1.bf16.msra.mxu0 0
        %2324 = vmatprep.subr.bf16.mxu0 0
        %2325 = vmatpush1.bf16.msra.mxu0 0
        %2326 = vmatprep.subr.bf16.mxu0 0
        %2327 = vmatpush1.bf16.msra.mxu0 0
        %2328 = vmatprep.subr.bf16.mxu0 0
        %2329 = vmatpush1.bf16.msra.mxu0 0
        %2330 = vmatprep.subr.bf16.mxu0 0
        %2331 = vmatpush1.bf16.msra.mxu0 0
        %2332 = vmatprep.subr.bf16.mxu0 0
        %2333 = vmatpush1.bf16.msra.mxu0 0
        %2334 = vmatprep.subr.bf16.mxu0 0
        %2335 = vmatpush1.bf16.msra.mxu0 0
        %2336 = vmatprep.subr.bf16.mxu0 0
        %2337 = vmatpush1.bf16.msra.mxu0 0
        %2338 = vmatprep.subr.bf16.mxu0 0
        %2339 = vmatpush1.bf16.msra.mxu0 0
        %2340 = vmatprep.subr.bf16.mxu0 0
        %2341 = vmatpush1.bf16.msra.mxu0 0
        %2342 = vmatprep.subr.bf16.mxu0 0
        %2343 = vmatpush1.bf16.msra.mxu0 0
        %2344 = vmatprep.mubr.bf16.mxu0 0
        %2345 = vmatmul.mubr.bf16.gmra.mrb[0].mxu0 %v2310
        %v2346 = vpop.f32.mrb[0].mxu0
        %v2347 = vadd.f32 0.0, %v2346
        %v2348 = vpop.f32.mrb[0].mxu0
        %v2349 = vpop.f32.mrb[0].mxu0
        %v2350 = vadd.f32 0.0, %v2349
        %v2351 = vpop.f32.mrb[0].mxu0
        %2352 = vdwg.mxu0
        %2355 = vrot.lane.b32.xlu0 %v2347, 64
        %v2356 = vpop.permute.xlu0 %2355
        %2357 = vrot.lane.b32.xlu0 %v2350, 64
        %v2358 = vpop.permute.xlu0 %2357
        %2361 = vst.msk [vmem:[#allocation2 + $0x10] sm:$0xff] %vm1831, %v2356
        %2362 = vst.msk [vmem:[#allocation2 + $0x18] sm:$0xff] %vm1831, %v2358
        %2363 = vrot.lane.b32.xlu0 %v1432, 32
        %v2364 = vpop.permute.xlu0 %2363
        %2365 = vrot.lane.b32.xlu0 %v1434, 32
        %v2366 = vpop.permute.xlu0 %2365
        %v2368 = vsel %vm1437, %v2364, 0
        %v2371 = vsel %vm1437, %v2366, 0
        %2373 = vmatprep.subr.bf16.mxu0 0
        %2374 = vmatpush1.bf16.xpose.msra.mxu0 %v2371
        %2375 = vmatprep.subr.bf16.mxu0 0
        %2376 = vmatpush1.bf16.xpose.msra.mxu0 0
        %2377 = vmatprep.subr.bf16.mxu0 0
        %2378 = vmatpush1.bf16.xpose.msra.mxu0 0
        %2379 = vmatprep.subr.bf16.mxu0 0
        %2380 = vmatpush1.bf16.xpose.msra.mxu0 0
        %2381 = vmatprep.subr.bf16.mxu0 0
        %2382 = vmatpush1.bf16.xpose.msra.mxu0 0
        %2383 = vmatprep.subr.bf16.mxu0 0
        %2384 = vmatpush1.bf16.xpose.msra.mxu0 0
        %2385 = vmatprep.subr.bf16.mxu0 0
        %2386 = vmatpush1.bf16.xpose.msra.mxu0 0
        %2387 = vmatprep.subr.bf16.mxu0 0
        %2388 = vmatpush1.bf16.xpose.msra.mxu0 0
        %2389 = vmatprep.subr.bf16.mxu0 0
        %2390 = vmatpush1.bf16.xpose.msra.mxu0 0
        %2391 = vmatprep.subr.bf16.mxu0 0
        %2392 = vmatpush1.bf16.xpose.msra.mxu0 0
        %2393 = vmatprep.subr.bf16.mxu0 0
        %2394 = vmatpush1.bf16.xpose.msra.mxu0 0
        %2395 = vmatprep.subr.bf16.mxu0 0
        %2396 = vmatpush1.bf16.xpose.msra.mxu0 0
        %2397 = vmatprep.subr.bf16.mxu0 0
        %2398 = vmatpush1.bf16.xpose.msra.mxu0 0
        %2399 = vmatprep.subr.bf16.mxu0 0
        %2400 = vmatpush1.bf16.xpose.msra.mxu0 0
        %2401 = vmatprep.subr.bf16.mxu0 0
        %2402 = vmatpush1.bf16.xpose.msra.mxu0 0
        %2403 = vmatprep.subr.bf16.mxu0 0
        %2404 = vmatpush1.bf16.xpose.msra.mxu0 0
        %2405 = vmatprep.mubr.bf16.mxu0 0
        %2406 = vmatmul.mubr.bf16.gmra.mrb[0].mxu0 %v2368
        %v2407 = vpop.f32.mrb[0].mxu0
        %v2408 = vadd.f32 0.0, %v2407
        %v2409 = vpop.f32.mrb[0].mxu0
        %v2410 = vpop.f32.mrb[0].mxu0
        %v2411 = vadd.f32 0.0, %v2410
        %v2412 = vpop.f32.mrb[0].mxu0
        %2413 = vdwg.mxu0
        %v2414 = vmul.f32 %v2408, 0.17677669
        %v2415 = vmul.f32 %v2411, 0.17677669
        %v2416 = vsel %vm1000, %v2414, -1e+30
        %v2417 = vsel %vm1001, %v2415, -1e+30
        %v2418 = vsel %vm1489, %v2416, -inf
        %2419 = vmax.xlane.f32.xlu0 %v2418
        %v2420 = vpop.xlane.xlu0 %2419
        %v2421 = vsel %vm1489, %v2417, -inf
        %2422 = vmax.xlane.f32.xlu0 %v2421
        %v2423 = vpop.xlane.xlu0 %2422
        %v2424 = vsub.f32 %v2416, %v2420
        %v2425 = vsub.f32 %v2417, %v2423
        %v2426 = vmul.f32 %v2424, 1.442695
        %v2427 = vpow.pop %v2426
        %v2428 = vmul.f32 %v2425, 1.442695
        %v2429 = vpow.pop %v2428
        %v2430 = vsel %vm1489, %v2427, 0.0
        %2431 = vadd.xlane.f32.xlu0 %v2430
        %v2432 = vpop.xlane.xlu0 %2431
        %v2433 = vsel %vm1489, %v2429, 0.0
        %2434 = vadd.xlane.f32.xlu0 %v2433
        %v2435 = vpop.xlane.xlu0 %2434
        %v2436 = vrcp.pop %v2432
        %v2437 = vmul.f32 %v2427, %v2436
        %v2438 = vrcp.pop %v2435
        %v2439 = vmul.f32 %v2429, %v2438
        %v2440 = vpack.c.bf16 %v2439, %v2437
        %2441 = vrot.lane.b32.xlu0 %v1436, 32
        %v2442 = vpop.permute.xlu0 %2441
        %v2445 = vsel %vm1489, %v2440, 0
        %2447 = vmatprep.subr.bf16.mxu0 0
        %2448 = vmatpush1.bf16.msra.mxu0 %v2442
        %2449 = vmatprep.subr.bf16.mxu0 0
        %2450 = vmatpush1.bf16.msra.mxu0 0
        %2451 = vmatprep.subr.bf16.mxu0 0
        %2452 = vmatpush1.bf16.msra.mxu0 0
        %2453 = vmatprep.subr.bf16.mxu0 0
        %2454 = vmatpush1.bf16.msra.mxu0 0
        %2455 = vmatprep.subr.bf16.mxu0 0
        %2456 = vmatpush1.bf16.msra.mxu0 0
        %2457 = vmatprep.subr.bf16.mxu0 0
        %2458 = vmatpush1.bf16.msra.mxu0 0
        %2459 = vmatprep.subr.bf16.mxu0 0
        %2460 = vmatpush1.bf16.msra.mxu0 0
        %2461 = vmatprep.subr.bf16.mxu0 0
        %2462 = vmatpush1.bf16.msra.mxu0 0
        %2463 = vmatprep.subr.bf16.mxu0 0
        %2464 = vmatpush1.bf16.msra.mxu0 0
        %2465 = vmatprep.subr.bf16.mxu0 0
        %2466 = vmatpush1.bf16.msra.mxu0 0
        %2467 = vmatprep.subr.bf16.mxu0 0
        %2468 = vmatpush1.bf16.msra.mxu0 0
        %2469 = vmatprep.subr.bf16.mxu0 0
        %2470 = vmatpush1.bf16.msra.mxu0 0
        %2471 = vmatprep.subr.bf16.mxu0 0
        %2472 = vmatpush1.bf16.msra.mxu0 0
        %2473 = vmatprep.subr.bf16.mxu0 0
        %2474 = vmatpush1.bf16.msra.mxu0 0
        %2475 = vmatprep.subr.bf16.mxu0 0
        %2476 = vmatpush1.bf16.msra.mxu0 0
        %2477 = vmatprep.subr.bf16.mxu0 0
        %2478 = vmatpush1.bf16.msra.mxu0 0
        %2479 = vmatprep.mubr.bf16.mxu0 0
        %2480 = vmatmul.mubr.bf16.gmra.mrb[0].mxu0 %v2445
        %v2481 = vpop.f32.mrb[0].mxu0
        %v2482 = vadd.f32 0.0, %v2481
        %v2483 = vpop.f32.mrb[0].mxu0
        %v2484 = vpop.f32.mrb[0].mxu0
        %v2485 = vadd.f32 0.0, %v2484
        %v2486 = vpop.f32.mrb[0].mxu0
        %2487 = vdwg.mxu0
        %2490 = vrot.lane.b32.xlu0 %v2482, 96
        %v2491 = vpop.permute.xlu0 %2490
        %2492 = vrot.lane.b32.xlu0 %v2485, 96
        %v2493 = vpop.permute.xlu0 %2492
        %2496 = vst.msk [vmem:[#allocation2 + $0x10] sm:$0xff] %vm1967, %v2491
        %2497 = vst.msk [vmem:[#allocation2 + $0x18] sm:$0xff] %vm1967, %v2493
        %v2498 = vld [vmem:[#allocation2] sm:$0xff]
        %v2499 = vld [vmem:[#allocation2 + $0x8] sm:$0xff]
        %v2500 = vld [vmem:[#allocation2 + $0x10] sm:$0xff]
        %v2501 = vld [vmem:[#allocation2 + $0x18] sm:$0xff]
        %v2502 = vld [vmem:[%s825] sm:$0xf]
        %v2503 = vld [vmem:[%s825 + $0x4] sm:$0xf]
        %v2504 = vld [vmem:[%s825 + $0x8] sm:$0xf]
        %v2505 = vld [vmem:[%s825 + $0xc] sm:$0xf]
        %v2506 = vld [vmem:[%s825 + $0x10] sm:$0xf]
        %v2507 = vld [vmem:[%s825 + $0x14] sm:$0xf]
        %v2508 = vld [vmem:[%s825 + $0x18] sm:$0xf]
        %v2509 = vld [vmem:[%s825 + $0x1c] sm:$0xf]
        %v2510 = vld [vmem:[%s825 + $0x20] sm:$0xf]
        %v2511 = vld [vmem:[%s825 + $0x24] sm:$0xf]
        %v2512 = vld [vmem:[%s825 + $0x28] sm:$0xf]
        %v2513 = vld [vmem:[%s825 + $0x2c] sm:$0xf]
        %v2514 = vld [vmem:[%s825 + $0x30] sm:$0xf]
        %v2515 = vld [vmem:[%s825 + $0x34] sm:$0xf]
        %v2516 = vld [vmem:[%s825 + $0x38] sm:$0xf]
        %v2517 = vld [vmem:[%s825 + $0x3c] sm:$0xf]
        %v2518 = vpack.c.bf16 %v2499, %v2498
        %v2519 = vpack.c.bf16 %v2501, %v2500
        %v2536 = vunpack.c.l.b16 %v2502
        %v2537 = vunpack.c.l.b16 %v2503
        %v2538 = vunpack.c.l.b16 %v2504
        %v2539 = vunpack.c.l.b16 %v2505
        %v2540 = vunpack.c.l.b16 %v2506
        %v2541 = vunpack.c.l.b16 %v2507
        %v2542 = vunpack.c.l.b16 %v2508
        %v2543 = vunpack.c.l.b16 %v2509
        %v2544 = vunpack.c.l.b16 %v2510
        %v2545 = vunpack.c.l.b16 %v2511
        %v2546 = vunpack.c.l.b16 %v2512
        %v2547 = vunpack.c.l.b16 %v2513
        %v2548 = vunpack.c.l.b16 %v2514
        %v2549 = vunpack.c.l.b16 %v2515
        %v2550 = vunpack.c.l.b16 %v2516
        %v2551 = vunpack.c.l.b16 %v2517
        %v2552 = vpack.c.b16 %v2537, %v2536
        %v2553 = vpack.c.b16 %v2539, %v2538
        %v2554 = vpack.c.b16 %v2541, %v2540
        %v2555 = vpack.c.b16 %v2543, %v2542
        %v2556 = vpack.c.b16 %v2545, %v2544
        %v2557 = vpack.c.b16 %v2547, %v2546
        %v2558 = vpack.c.b16 %v2549, %v2548
        %v2559 = vpack.c.b16 %v2551, %v2550
        %2568 = vmatprep.subr.bf16.mxu0 0
        %2569 = vmatpush1.bf16.msra.mxu0 %v2552
        %2570 = vmatprep.subr.bf16.mxu0 0
        %2571 = vmatpush1.bf16.msra.mxu0 %v2553
        %2572 = vmatprep.subr.bf16.mxu0 0
        %2573 = vmatpush1.bf16.msra.mxu0 %v2554
        %2574 = vmatprep.subr.bf16.mxu0 0
        %2575 = vmatpush1.bf16.msra.mxu0 %v2555
        %2576 = vmatprep.subr.bf16.mxu0 0
        %2577 = vmatpush1.bf16.msra.mxu0 %v2556
        %2578 = vmatprep.subr.bf16.mxu0 0
        %2579 = vmatpush1.bf16.msra.mxu0 %v2557
        %2580 = vmatprep.subr.bf16.mxu0 0
        %2581 = vmatpush1.bf16.msra.mxu0 %v2558
        %2582 = vmatprep.subr.bf16.mxu0 0
        %2583 = vmatpush1.bf16.msra.mxu0 %v2559
        %2584 = vmatprep.subr.bf16.mxu0 0
        %2585 = vmatpush1.bf16.msra.mxu0 0
        %2586 = vmatprep.subr.bf16.mxu0 0
        %2587 = vmatpush1.bf16.msra.mxu0 0
        %2588 = vmatprep.subr.bf16.mxu0 0
        %2589 = vmatpush1.bf16.msra.mxu0 0
        %2590 = vmatprep.subr.bf16.mxu0 0
        %2591 = vmatpush1.bf16.msra.mxu0 0
        %2592 = vmatprep.subr.bf16.mxu0 0
        %2593 = vmatpush1.bf16.msra.mxu0 0
        %2594 = vmatprep.subr.bf16.mxu0 0
        %2595 = vmatpush1.bf16.msra.mxu0 0
        %2596 = vmatprep.subr.bf16.mxu0 0
        %2597 = vmatpush1.bf16.msra.mxu0 0
        %2598 = vmatprep.subr.bf16.mxu0 0
        %2599 = vmatpush1.bf16.msra.mxu0 0
        %2600 = vmatprep.mubr.bf16.mxu0 0
        %2601 = vmatmul.mubr.bf16.gmra.mrb[0].mxu0 %v2518
        %v2602 = vpop.f32.mrb[0].mxu0
        %v2603 = vadd.f32 0.0, %v2602
        %v2604 = vpop.f32.mrb[0].mxu0
        %v2605 = vpop.f32.mrb[0].mxu0
        %v2606 = vadd.f32 0.0, %v2605
        %v2607 = vpop.f32.mrb[0].mxu0
        %2608 = vmatprep.mubr.bf16.mxu0 0
        %2609 = vmatmul.mubr.bf16.gmra.mrb[0].mxu0 %v2519
        %v2610 = vpop.f32.mrb[0].mxu0
        %v2611 = vadd.f32 0.0, %v2610
        %v2612 = vpop.f32.mrb[0].mxu0
        %v2613 = vpop.f32.mrb[0].mxu0
        %v2614 = vadd.f32 0.0, %v2613
        %v2615 = vpop.f32.mrb[0].mxu0
        %2616 = vdwg.mxu0
        %v2617 = vadd.f32 %v991, %v2603
        %v2618 = vadd.f32 %v992, %v2606
        %v2619 = vadd.f32 %v993, %v2611
        %v2620 = vadd.f32 %v994, %v2614
        %v2621 = vld [vmem:[%s964] sm:$0x1]
        %v2623 = vlaneseq
        %v2624 = vshrl.u32 %v2623, 7
        %v2625 = vsub.s32 0, %v2624
        %v2626 = vrot.slane %v2621, %v2625
        %v2628 = vadd.f32 %v2617, %v2626
        %v2629 = vadd.f32 %v2618, %v2626
        %v2630 = vadd.f32 %v2619, %v2626
        %v2631 = vadd.f32 %v2620, %v2626
        %v2632 = vld [vmem:[%s967] sm:$0x1]
        %v2633 = vld [vmem:[%s970] sm:$0x1]
        %2634 = vadd.xlane.f32.xlu0 %v2628
        %v2635 = vpop.xlane.xlu0 %2634
        %2636 = vadd.xlane.f32.xlu0 %v2629
        %v2637 = vpop.xlane.xlu0 %2636
        %2638 = vadd.xlane.f32.xlu0 %v2630
        %v2639 = vpop.xlane.xlu0 %2638
        %2640 = vadd.xlane.f32.xlu0 %v2631
        %v2641 = vpop.xlane.xlu0 %2640
        %v2642 = vmul.f32 %v2635, %v1012
        %v2643 = vmul.f32 %v2637, %v1012
        %v2644 = vmul.f32 %v2639, %v1012
        %v2645 = vmul.f32 %v2641, %v1012
        %v2646 = vsub.f32 %v2628, %v2642
        %v2647 = vsub.f32 %v2629, %v2643
        %v2648 = vsub.f32 %v2630, %v2644
        %v2649 = vsub.f32 %v2631, %v2645
        %v2650 = vmul.f32 %v2646, %v2646
        %v2651 = vmul.f32 %v2647, %v2647
        %v2652 = vmul.f32 %v2648, %v2648
        %v2653 = vmul.f32 %v2649, %v2649
        %2654 = vadd.xlane.f32.xlu0 %v2650
        %v2655 = vpop.xlane.xlu0 %2654
        %2656 = vadd.xlane.f32.xlu0 %v2651
        %v2657 = vpop.xlane.xlu0 %2656
        %2658 = vadd.xlane.f32.xlu0 %v2652
        %v2659 = vpop.xlane.xlu0 %2658
        %2660 = vadd.xlane.f32.xlu0 %v2653
        %v2661 = vpop.xlane.xlu0 %2660
        %v2662 = vmul.f32 %v2655, %v1012
        %v2663 = vmul.f32 %v2657, %v1012
        %v2664 = vmul.f32 %v2659, %v1012
        %v2665 = vmul.f32 %v2661, %v1012
        %v2666 = vadd.f32 %v2662, 1e-05
        %v2667 = vadd.f32 %v2663, 1e-05
        %v2668 = vadd.f32 %v2664, 1e-05
        %v2669 = vadd.f32 %v2665, 1e-05
        %v2670 = vrsqrt.pop %v2666
        %v2671 = vrsqrt.pop %v2667
        %v2672 = vrsqrt.pop %v2668
        %v2673 = vrsqrt.pop %v2669
        %v2674 = vmul.f32 %v2646, %v2670
        %v2675 = vmul.f32 %v2647, %v2671
        %v2676 = vmul.f32 %v2648, %v2672
        %v2677 = vmul.f32 %v2649, %v2673
        %v2679 = vlaneseq
        %v2680 = vshrl.u32 %v2679, 7
        %v2681 = vsub.s32 0, %v2680
        %v2682 = vrot.slane %v2632, %v2681
        %v2684 = vmul.f32 %v2674, %v2682
        %v2685 = vmul.f32 %v2675, %v2682
        %v2686 = vmul.f32 %v2676, %v2682
        %v2687 = vmul.f32 %v2677, %v2682
        %v2689 = vlaneseq
        %v2690 = vshrl.u32 %v2689, 7
        %v2691 = vsub.s32 0, %v2690
        %v2692 = vrot.slane %v2633, %v2691
        %v2694 = vadd.f32 %v2684, %v2692
        %v2695 = vadd.f32 %v2685, %v2692
        %v2696 = vadd.f32 %v2686, %v2692
        %v2697 = vadd.f32 %v2687, %v2692
        %v2698 = vpack.c.bf16 %v2695, %v2694
        %v2699 = vpack.c.bf16 %v2697, %v2696
        %v2700 = vld [vmem:[%s834] sm:$0xff]
        %v2701 = vld [vmem:[%s834 + $0x8] sm:$0xff]
        %v2702 = vld [vmem:[%s834 + $0x10] sm:$0xff]
        %v2703 = vld [vmem:[%s834 + $0x18] sm:$0xff]
        %v2704 = vld [vmem:[%s834 + $0x20] sm:$0xff]
        %v2705 = vld [vmem:[%s834 + $0x28] sm:$0xff]
        %v2706 = vld [vmem:[%s834 + $0x30] sm:$0xff]
        %v2707 = vld [vmem:[%s834 + $0x38] sm:$0xff]
        %v2708 = vld [vmem:[%s834 + $0x40] sm:$0xff]
        %v2709 = vld [vmem:[%s834 + $0x48] sm:$0xff]
        %v2710 = vld [vmem:[%s834 + $0x50] sm:$0xff]
        %v2711 = vld [vmem:[%s834 + $0x58] sm:$0xff]
        %v2712 = vld [vmem:[%s834 + $0x60] sm:$0xff]
        %v2713 = vld [vmem:[%s834 + $0x68] sm:$0xff]
        %v2714 = vld [vmem:[%s834 + $0x70] sm:$0xff]
        %v2715 = vld [vmem:[%s834 + $0x78] sm:$0xff]
        %v2716 = vld [vmem:[%s834 + $0x80] sm:$0xff]
        %v2717 = vld [vmem:[%s834 + $0x88] sm:$0xff]
        %v2718 = vld [vmem:[%s834 + $0x90] sm:$0xff]
        %v2719 = vld [vmem:[%s834 + $0x98] sm:$0xff]
        %v2720 = vld [vmem:[%s834 + $0xa0] sm:$0xff]
        %v2721 = vld [vmem:[%s834 + $0xa8] sm:$0xff]
        %v2722 = vld [vmem:[%s834 + $0xb0] sm:$0xff]
        %v2723 = vld [vmem:[%s834 + $0xb8] sm:$0xff]
        %v2724 = vld [vmem:[%s834 + $0xc0] sm:$0xff]
        %v2725 = vld [vmem:[%s834 + $0xc8] sm:$0xff]
        %v2726 = vld [vmem:[%s834 + $0xd0] sm:$0xff]
        %v2727 = vld [vmem:[%s834 + $0xd8] sm:$0xff]
        %v2728 = vld [vmem:[%s834 + $0xe0] sm:$0xff]
        %v2729 = vld [vmem:[%s834 + $0xe8] sm:$0xff]
        %v2730 = vld [vmem:[%s834 + $0xf0] sm:$0xff]
        %v2731 = vld [vmem:[%s834 + $0xf8] sm:$0xff]
        %v2732 = vld [vmem:[%s974] sm:$0xf]
        %v2734 = vlaneseq
        %v2735 = vshrl.u32 %v2734, 7
        %v2736 = vsub.s32 0, %v2735
        %v2737 = vrot.slane %v2732, %v2736
        %v2738 = vlaneseq
        %v2739 = vshrl.u32 %v2738, 7
        %v2740 = vsub.s32 1, %v2739
        %v2741 = vrot.slane %v2732, %v2740
        %v2742 = vlaneseq
        %v2743 = vshrl.u32 %v2742, 7
        %v2744 = vsub.s32 2, %v2743
        %v2745 = vrot.slane %v2732, %v2744
        %v2746 = vlaneseq
        %v2747 = vshrl.u32 %v2746, 7
        %v2748 = vsub.s32 3, %v2747
        %v2749 = vrot.slane %v2732, %v2748
        %v2786 = vunpack.c.l.b16 %v2700
        %v2787 = vunpack.c.h.b16 %v2700
        %v2788 = vunpack.c.l.b16 %v2701
        %v2789 = vunpack.c.h.b16 %v2701
        %v2790 = vunpack.c.l.b16 %v2702
        %v2791 = vunpack.c.h.b16 %v2702
        %v2792 = vunpack.c.l.b16 %v2703
        %v2793 = vunpack.c.h.b16 %v2703
        %v2794 = vunpack.c.l.b16 %v2704
        %v2795 = vunpack.c.h.b16 %v2704
        %v2796 = vunpack.c.l.b16 %v2705
        %v2797 = vunpack.c.h.b16 %v2705
        %v2798 = vunpack.c.l.b16 %v2706
        %v2799 = vunpack.c.h.b16 %v2706
        %v2800 = vunpack.c.l.b16 %v2707
        %v2801 = vunpack.c.h.b16 %v2707
        %v2802 = vunpack.c.l.b16 %v2708
        %v2803 = vunpack.c.h.b16 %v2708
        %v2804 = vunpack.c.l.b16 %v2709
        %v2805 = vunpack.c.h.b16 %v2709
        %v2806 = vunpack.c.l.b16 %v2710
        %v2807 = vunpack.c.h.b16 %v2710
        %v2808 = vunpack.c.l.b16 %v2711
        %v2809 = vunpack.c.h.b16 %v2711
        %v2810 = vunpack.c.l.b16 %v2712
        %v2811 = vunpack.c.h.b16 %v2712
        %v2812 = vunpack.c.l.b16 %v2713
        %v2813 = vunpack.c.h.b16 %v2713
        %v2814 = vunpack.c.l.b16 %v2714
        %v2815 = vunpack.c.h.b16 %v2714
        %v2816 = vunpack.c.l.b16 %v2715
        %v2817 = vunpack.c.h.b16 %v2715
        %v2818 = vunpack.c.l.b16 %v2716
        %v2819 = vunpack.c.h.b16 %v2716
        %v2820 = vunpack.c.l.b16 %v2717
        %v2821 = vunpack.c.h.b16 %v2717
        %v2822 = vunpack.c.l.b16 %v2718
        %v2823 = vunpack.c.h.b16 %v2718
        %v2824 = vunpack.c.l.b16 %v2719
        %v2825 = vunpack.c.h.b16 %v2719
        %v2826 = vunpack.c.l.b16 %v2720
        %v2827 = vunpack.c.h.b16 %v2720
        %v2828 = vunpack.c.l.b16 %v2721
        %v2829 = vunpack.c.h.b16 %v2721
        %v2830 = vunpack.c.l.b16 %v2722
        %v2831 = vunpack.c.h.b16 %v2722
        %v2832 = vunpack.c.l.b16 %v2723
        %v2833 = vunpack.c.h.b16 %v2723
        %v2834 = vunpack.c.l.b16 %v2724
        %v2835 = vunpack.c.h.b16 %v2724
        %v2836 = vunpack.c.l.b16 %v2725
        %v2837 = vunpack.c.h.b16 %v2725
        %v2838 = vunpack.c.l.b16 %v2726
        %v2839 = vunpack.c.h.b16 %v2726
        %v2840 = vunpack.c.l.b16 %v2727
        %v2841 = vunpack.c.h.b16 %v2727
        %v2842 = vunpack.c.l.b16 %v2728
        %v2843 = vunpack.c.h.b16 %v2728
        %v2844 = vunpack.c.l.b16 %v2729
        %v2845 = vunpack.c.h.b16 %v2729
        %v2846 = vunpack.c.l.b16 %v2730
        %v2847 = vunpack.c.h.b16 %v2730
        %v2848 = vunpack.c.l.b16 %v2731
        %v2849 = vunpack.c.h.b16 %v2731
        %v2850 = vpack.c.b16 %v2790, %v2786
        %v2851 = vpack.c.b16 %v2791, %v2787
        %v2852 = vpack.c.b16 %v2792, %v2788
        %v2853 = vpack.c.b16 %v2793, %v2789
        %v2854 = vpack.c.b16 %v2798, %v2794
        %v2855 = vpack.c.b16 %v2799, %v2795
        %v2856 = vpack.c.b16 %v2800, %v2796
        %v2857 = vpack.c.b16 %v2801, %v2797
        %v2858 = vpack.c.b16 %v2806, %v2802
        %v2859 = vpack.c.b16 %v2807, %v2803
        %v2860 = vpack.c.b16 %v2808, %v2804
        %v2861 = vpack.c.b16 %v2809, %v2805
        %v2862 = vpack.c.b16 %v2814, %v2810
        %v2863 = vpack.c.b16 %v2815, %v2811
        %v2864 = vpack.c.b16 %v2816, %v2812
        %v2865 = vpack.c.b16 %v2817, %v2813
        %v2866 = vpack.c.b16 %v2822, %v2818
        %v2867 = vpack.c.b16 %v2823, %v2819
        %v2868 = vpack.c.b16 %v2824, %v2820
        %v2869 = vpack.c.b16 %v2825, %v2821
        %v2870 = vpack.c.b16 %v2830, %v2826
        %v2871 = vpack.c.b16 %v2831, %v2827
        %v2872 = vpack.c.b16 %v2832, %v2828
        %v2873 = vpack.c.b16 %v2833, %v2829
        %v2874 = vpack.c.b16 %v2838, %v2834
        %v2875 = vpack.c.b16 %v2839, %v2835
        %v2876 = vpack.c.b16 %v2840, %v2836
        %v2877 = vpack.c.b16 %v2841, %v2837
        %v2878 = vpack.c.b16 %v2846, %v2842
        %v2879 = vpack.c.b16 %v2847, %v2843
        %v2880 = vpack.c.b16 %v2848, %v2844
        %v2881 = vpack.c.b16 %v2849, %v2845
        %2914 = vmatprep.subr.bf16.mxu0 %v2851
        %2915 = vmatpush1.bf16.msra.mxu0 %v2850
        %2916 = vmatprep.subr.bf16.mxu0 %v2855
        %2917 = vmatpush1.bf16.msra.mxu0 %v2854
        %2918 = vmatprep.subr.bf16.mxu0 %v2859
        %2919 = vmatpush1.bf16.msra.mxu0 %v2858
        %2920 = vmatprep.subr.bf16.mxu0 %v2863
        %2921 = vmatpush1.bf16.msra.mxu0 %v2862
        %2922 = vmatprep.subr.bf16.mxu0 %v2867
        %2923 = vmatpush1.bf16.msra.mxu0 %v2866
        %2924 = vmatprep.subr.bf16.mxu0 %v2871
        %2925 = vmatpush1.bf16.msra.mxu0 %v2870
        %2926 = vmatprep.subr.bf16.mxu0 %v2875
        %2927 = vmatpush1.bf16.msra.mxu0 %v2874
        %2928 = vmatprep.subr.bf16.mxu0 %v2879
        %2929 = vmatpush1.bf16.msra.mxu0 %v2878
        %2930 = vmatprep.subr.bf16.mxu0 0
        %2931 = vmatpush1.bf16.msra.mxu0 0
        %2932 = vmatprep.subr.bf16.mxu0 0
        %2933 = vmatpush1.bf16.msra.mxu0 0
        %2934 = vmatprep.subr.bf16.mxu0 0
        %2935 = vmatpush1.bf16.msra.mxu0 0
        %2936 = vmatprep.subr.bf16.mxu0 0
        %2937 = vmatpush1.bf16.msra.mxu0 0
        %2938 = vmatprep.subr.bf16.mxu0 0
        %2939 = vmatpush1.bf16.msra.mxu0 0
        %2940 = vmatprep.subr.bf16.mxu0 0
        %2941 = vmatpush1.bf16.msra.mxu0 0
        %2942 = vmatprep.subr.bf16.mxu0 0
        %2943 = vmatpush1.bf16.msra.mxu0 0
        %2944 = vmatprep.subr.bf16.mxu0 0
        %2945 = vmatpush1.bf16.msra.mxu0 0
        %2946 = vmatprep.mubr.bf16.mxu0 0
        %2947 = vmatmul.mubr.bf16.gmra.mrb[0].mxu0 %v2698
        %v2948 = vpop.f32.mrb[0].mxu0
        %v2949 = vadd.f32 %v2737, %v2948
        %v2950 = vpop.f32.mrb[0].mxu0
        %v2951 = vadd.f32 %v2741, %v2950
        %v2952 = vpop.f32.mrb[0].mxu0
        %v2953 = vadd.f32 %v2737, %v2952
        %v2954 = vpop.f32.mrb[0].mxu0
        %v2955 = vadd.f32 %v2741, %v2954
        %2956 = vmatprep.mubr.bf16.mxu0 0
        %2957 = vmatmul.mubr.bf16.gmra.mrb[0].mxu0 %v2699
        %v2958 = vpop.f32.mrb[0].mxu0
        %v2959 = vadd.f32 %v2737, %v2958
        %v2960 = vpop.f32.mrb[0].mxu0
        %v2961 = vadd.f32 %v2741, %v2960
        %v2962 = vpop.f32.mrb[0].mxu0
        %v2963 = vadd.f32 %v2737, %v2962
        %v2964 = vpop.f32.mrb[0].mxu0
        %v2965 = vadd.f32 %v2741, %v2964
        %2966 = vdwg.mxu0
        %2967 = vmatprep.subr.bf16.mxu0 %v2853
        %2968 = vmatpush1.bf16.msra.mxu0 %v2852
        %2969 = vmatprep.subr.bf16.mxu0 %v2857
        %2970 = vmatpush1.bf16.msra.mxu0 %v2856
        %2971 = vmatprep.subr.bf16.mxu0 %v2861
        %2972 = vmatpush1.bf16.msra.mxu0 %v2860
        %2973 = vmatprep.subr.bf16.mxu0 %v2865
        %2974 = vmatpush1.bf16.msra.mxu0 %v2864
        %2975 = vmatprep.subr.bf16.mxu0 %v2869
        %2976 = vmatpush1.bf16.msra.mxu0 %v2868
        %2977 = vmatprep.subr.bf16.mxu0 %v2873
        %2978 = vmatpush1.bf16.msra.mxu0 %v2872
        %2979 = vmatprep.subr.bf16.mxu0 %v2877
        %2980 = vmatpush1.bf16.msra.mxu0 %v2876
        %2981 = vmatprep.subr.bf16.mxu0 %v2881
        %2982 = vmatpush1.bf16.msra.mxu0 %v2880
        %2983 = vmatprep.subr.bf16.mxu0 0
        %2984 = vmatpush1.bf16.msra.mxu0 0
        %2985 = vmatprep.subr.bf16.mxu0 0
        %2986 = vmatpush1.bf16.msra.mxu0 0
        %2987 = vmatprep.subr.bf16.mxu0 0
        %2988 = vmatpush1.bf16.msra.mxu0 0
        %2989 = vmatprep.subr.bf16.mxu0 0
        %2990 = vmatpush1.bf16.msra.mxu0 0
        %2991 = vmatprep.subr.bf16.mxu0 0
        %2992 = vmatpush1.bf16.msra.mxu0 0
        %2993 = vmatprep.subr.bf16.mxu0 0
        %2994 = vmatpush1.bf16.msra.mxu0 0
        %2995 = vmatprep.subr.bf16.mxu0 0
        %2996 = vmatpush1.bf16.msra.mxu0 0
        %2997 = vmatprep.subr.bf16.mxu0 0
        %2998 = vmatpush1.bf16.msra.mxu0 0
        %2999 = vmatprep.mubr.bf16.mxu0 0
        %3000 = vmatmul.mubr.bf16.gmra.mrb[0].mxu0 %v2698
        %v3001 = vpop.f32.mrb[0].mxu0
        %v3002 = vadd.f32 %v2745, %v3001
        %v3003 = vpop.f32.mrb[0].mxu0
        %v3004 = vadd.f32 %v2749, %v3003
        %v3005 = vpop.f32.mrb[0].mxu0
        %v3006 = vadd.f32 %v2745, %v3005
        %v3007 = vpop.f32.mrb[0].mxu0
        %v3008 = vadd.f32 %v2749, %v3007
        %3009 = vmatprep.mubr.bf16.mxu0 0
        %3010 = vmatmul.mubr.bf16.gmra.mrb[0].mxu0 %v2699
        %v3011 = vpop.f32.mrb[0].mxu0
        %v3012 = vadd.f32 %v2745, %v3011
        %v3013 = vpop.f32.mrb[0].mxu0
        %v3014 = vadd.f32 %v2749, %v3013
        %v3015 = vpop.f32.mrb[0].mxu0
        %v3016 = vadd.f32 %v2745, %v3015
        %v3017 = vpop.f32.mrb[0].mxu0
        %v3018 = vadd.f32 %v2749, %v3017
        %3019 = vdwg.mxu0
        %v3020 = vmul.f32 %v2949, -1.702
        %v3021 = vmul.f32 %v2951, -1.702
        %v3022 = vmul.f32 %v3002, -1.702
        %v3023 = vmul.f32 %v3004, -1.702
        %v3024 = vmul.f32 %v2953, -1.702
        %v3025 = vmul.f32 %v2955, -1.702
        %v3026 = vmul.f32 %v3006, -1.702
        %v3027 = vmul.f32 %v3008, -1.702
        %v3028 = vmul.f32 %v2959, -1.702
        %v3029 = vmul.f32 %v2961, -1.702
        %v3030 = vmul.f32 %v3012, -1.702
        %v3031 = vmul.f32 %v3014, -1.702
        %v3032 = vmul.f32 %v2963, -1.702
        %v3033 = vmul.f32 %v2965, -1.702
        %v3034 = vmul.f32 %v3016, -1.702
        %v3035 = vmul.f32 %v3018, -1.702
        %v3036 = vmul.f32 %v3020, 1.442695
        %v3037 = vpow.pop %v3036
        %v3038 = vmul.f32 %v3021, 1.442695
        %v3039 = vpow.pop %v3038
        %v3040 = vmul.f32 %v3022, 1.442695
        %v3041 = vpow.pop %v3040
        %v3042 = vmul.f32 %v3023, 1.442695
        %v3043 = vpow.pop %v3042
        %v3044 = vmul.f32 %v3024, 1.442695
        %v3045 = vpow.pop %v3044
        %v3046 = vmul.f32 %v3025, 1.442695
        %v3047 = vpow.pop %v3046
        %v3048 = vmul.f32 %v3026, 1.442695
        %v3049 = vpow.pop %v3048
        %v3050 = vmul.f32 %v3027, 1.442695
        %v3051 = vpow.pop %v3050
        %v3052 = vmul.f32 %v3028, 1.442695
        %v3053 = vpow.pop %v3052
        %v3054 = vmul.f32 %v3029, 1.442695
        %v3055 = vpow.pop %v3054
        %v3056 = vmul.f32 %v3030, 1.442695
        %v3057 = vpow.pop %v3056
        %v3058 = vmul.f32 %v3031, 1.442695
        %v3059 = vpow.pop %v3058
        %v3060 = vmul.f32 %v3032, 1.442695
        %v3061 = vpow.pop %v3060
        %v3062 = vmul.f32 %v3033, 1.442695
        %v3063 = vpow.pop %v3062
        %v3064 = vmul.f32 %v3034, 1.442695
        %v3065 = vpow.pop %v3064
        %v3066 = vmul.f32 %v3035, 1.442695
        %v3067 = vpow.pop %v3066
        %v3068 = vadd.f32 %v3037, 1.0
        %v3069 = vadd.f32 %v3039, 1.0
        %v3070 = vadd.f32 %v3041, 1.0
        %v3071 = vadd.f32 %v3043, 1.0
        %v3072 = vadd.f32 %v3045, 1.0
        %v3073 = vadd.f32 %v3047, 1.0
        %v3074 = vadd.f32 %v3049, 1.0
        %v3075 = vadd.f32 %v3051, 1.0
        %v3076 = vadd.f32 %v3053, 1.0
        %v3077 = vadd.f32 %v3055, 1.0
        %v3078 = vadd.f32 %v3057, 1.0
        %v3079 = vadd.f32 %v3059, 1.0
        %v3080 = vadd.f32 %v3061, 1.0
        %v3081 = vadd.f32 %v3063, 1.0
        %v3082 = vadd.f32 %v3065, 1.0
        %v3083 = vadd.f32 %v3067, 1.0
        %v3084 = vrcp.pop %v3068
        %v3085 = vmul.f32 1.0, %v3084
        %v3086 = vrcp.pop %v3069
        %v3087 = vmul.f32 1.0, %v3086
        %v3088 = vrcp.pop %v3070
        %v3089 = vmul.f32 1.0, %v3088
        %v3090 = vrcp.pop %v3071
        %v3091 = vmul.f32 1.0, %v3090
        %v3092 = vrcp.pop %v3072
        %v3093 = vmul.f32 1.0, %v3092
        %v3094 = vrcp.pop %v3073
        %v3095 = vmul.f32 1.0, %v3094
        %v3096 = vrcp.pop %v3074
        %v3097 = vmul.f32 1.0, %v3096
        %v3098 = vrcp.pop %v3075
        %v3099 = vmul.f32 1.0, %v3098
        %v3100 = vrcp.pop %v3076
        %v3101 = vmul.f32 1.0, %v3100
        %v3102 = vrcp.pop %v3077
        %v3103 = vmul.f32 1.0, %v3102
        %v3104 = vrcp.pop %v3078
        %v3105 = vmul.f32 1.0, %v3104
        %v3106 = vrcp.pop %v3079
        %v3107 = vmul.f32 1.0, %v3106
        %v3108 = vrcp.pop %v3080
        %v3109 = vmul.f32 1.0, %v3108
        %v3110 = vrcp.pop %v3081
        %v3111 = vmul.f32 1.0, %v3110
        %v3112 = vrcp.pop %v3082
        %v3113 = vmul.f32 1.0, %v3112
        %v3114 = vrcp.pop %v3083
        %v3115 = vmul.f32 1.0, %v3114
        %v3116 = vmul.f32 %v2949, %v3085
        %v3117 = vmul.f32 %v2951, %v3087
        %v3118 = vmul.f32 %v3002, %v3089
        %v3119 = vmul.f32 %v3004, %v3091
        %v3120 = vmul.f32 %v2953, %v3093
        %v3121 = vmul.f32 %v2955, %v3095
        %v3122 = vmul.f32 %v3006, %v3097
        %v3123 = vmul.f32 %v3008, %v3099
        %v3124 = vmul.f32 %v2959, %v3101
        %v3125 = vmul.f32 %v2961, %v3103
        %v3126 = vmul.f32 %v3012, %v3105
        %v3127 = vmul.f32 %v3014, %v3107
        %v3128 = vmul.f32 %v2963, %v3109
        %v3129 = vmul.f32 %v2965, %v3111
        %v3130 = vmul.f32 %v3016, %v3113
        %v3131 = vmul.f32 %v3018, %v3115
        %v3132 = vld [vmem:[%s843] sm:$0xf]
        %v3133 = vld [vmem:[%s843 + $0x4] sm:$0xf]
        %v3134 = vld [vmem:[%s843 + $0x8] sm:$0xf]
        %v3135 = vld [vmem:[%s843 + $0xc] sm:$0xf]
        %v3136 = vld [vmem:[%s843 + $0x10] sm:$0xf]
        %v3137 = vld [vmem:[%s843 + $0x14] sm:$0xf]
        %v3138 = vld [vmem:[%s843 + $0x18] sm:$0xf]
        %v3139 = vld [vmem:[%s843 + $0x1c] sm:$0xf]
        %v3140 = vld [vmem:[%s843 + $0x20] sm:$0xf]
        %v3141 = vld [vmem:[%s843 + $0x24] sm:$0xf]
        %v3142 = vld [vmem:[%s843 + $0x28] sm:$0xf]
        %v3143 = vld [vmem:[%s843 + $0x2c] sm:$0xf]
        %v3144 = vld [vmem:[%s843 + $0x30] sm:$0xf]
        %v3145 = vld [vmem:[%s843 + $0x34] sm:$0xf]
        %v3146 = vld [vmem:[%s843 + $0x38] sm:$0xf]
        %v3147 = vld [vmem:[%s843 + $0x3c] sm:$0xf]
        %v3148 = vld [vmem:[%s843 + $0x40] sm:$0xf]
        %v3149 = vld [vmem:[%s843 + $0x44] sm:$0xf]
        %v3150 = vld [vmem:[%s843 + $0x48] sm:$0xf]
        %v3151 = vld [vmem:[%s843 + $0x4c] sm:$0xf]
        %v3152 = vld [vmem:[%s843 + $0x50] sm:$0xf]
        %v3153 = vld [vmem:[%s843 + $0x54] sm:$0xf]
        %v3154 = vld [vmem:[%s843 + $0x58] sm:$0xf]
        %v3155 = vld [vmem:[%s843 + $0x5c] sm:$0xf]
        %v3156 = vld [vmem:[%s843 + $0x60] sm:$0xf]
        %v3157 = vld [vmem:[%s843 + $0x64] sm:$0xf]
        %v3158 = vld [vmem:[%s843 + $0x68] sm:$0xf]
        %v3159 = vld [vmem:[%s843 + $0x6c] sm:$0xf]
        %v3160 = vld [vmem:[%s843 + $0x70] sm:$0xf]
        %v3161 = vld [vmem:[%s843 + $0x74] sm:$0xf]
        %v3162 = vld [vmem:[%s843 + $0x78] sm:$0xf]
        %v3163 = vld [vmem:[%s843 + $0x7c] sm:$0xf]
        %v3164 = vld [vmem:[%s843 + $0x80] sm:$0xf]
        %v3165 = vld [vmem:[%s843 + $0x84] sm:$0xf]
        %v3166 = vld [vmem:[%s843 + $0x88] sm:$0xf]
        %v3167 = vld [vmem:[%s843 + $0x8c] sm:$0xf]
        %v3168 = vld [vmem:[%s843 + $0x90] sm:$0xf]
        %v3169 = vld [vmem:[%s843 + $0x94] sm:$0xf]
        %v3170 = vld [vmem:[%s843 + $0x98] sm:$0xf]
        %v3171 = vld [vmem:[%s843 + $0x9c] sm:$0xf]
        %v3172 = vld [vmem:[%s843 + $0xa0] sm:$0xf]
        %v3173 = vld [vmem:[%s843 + $0xa4] sm:$0xf]
        %v3174 = vld [vmem:[%s843 + $0xa8] sm:$0xf]
        %v3175 = vld [vmem:[%s843 + $0xac] sm:$0xf]
        %v3176 = vld [vmem:[%s843 + $0xb0] sm:$0xf]
        %v3177 = vld [vmem:[%s843 + $0xb4] sm:$0xf]
        %v3178 = vld [vmem:[%s843 + $0xb8] sm:$0xf]
        %v3179 = vld [vmem:[%s843 + $0xbc] sm:$0xf]
        %v3180 = vld [vmem:[%s843 + $0xc0] sm:$0xf]
        %v3181 = vld [vmem:[%s843 + $0xc4] sm:$0xf]
        %v3182 = vld [vmem:[%s843 + $0xc8] sm:$0xf]
        %v3183 = vld [vmem:[%s843 + $0xcc] sm:$0xf]
        %v3184 = vld [vmem:[%s843 + $0xd0] sm:$0xf]
        %v3185 = vld [vmem:[%s843 + $0xd4] sm:$0xf]
        %v3186 = vld [vmem:[%s843 + $0xd8] sm:$0xf]
        %v3187 = vld [vmem:[%s843 + $0xdc] sm:$0xf]
        %v3188 = vld [vmem:[%s843 + $0xe0] sm:$0xf]
        %v3189 = vld [vmem:[%s843 + $0xe4] sm:$0xf]
        %v3190 = vld [vmem:[%s843 + $0xe8] sm:$0xf]
        %v3191 = vld [vmem:[%s843 + $0xec] sm:$0xf]
        %v3192 = vld [vmem:[%s843 + $0xf0] sm:$0xf]
        %v3193 = vld [vmem:[%s843 + $0xf4] sm:$0xf]
        %v3194 = vld [vmem:[%s843 + $0xf8] sm:$0xf]
        %v3195 = vld [vmem:[%s843 + $0xfc] sm:$0xf]
        %v3196 = vpack.c.bf16 %v3120, %v3116
        %v3197 = vpack.c.bf16 %v3121, %v3117
        %v3198 = vpack.c.bf16 %v3122, %v3118
        %v3199 = vpack.c.bf16 %v3123, %v3119
        %v3200 = vpack.c.bf16 %v3128, %v3124
        %v3201 = vpack.c.bf16 %v3129, %v3125
        %v3202 = vpack.c.bf16 %v3130, %v3126
        %v3203 = vpack.c.bf16 %v3131, %v3127
        %v3268 = vunpack.c.l.b16 %v3132
        %v3269 = vunpack.c.l.b16 %v3133
        %v3270 = vunpack.c.l.b16 %v3134
        %v3271 = vunpack.c.l.b16 %v3135
        %v3272 = vunpack.c.l.b16 %v3136
        %v3273 = vunpack.c.l.b16 %v3137
        %v3274 = vunpack.c.l.b16 %v3138
        %v3275 = vunpack.c.l.b16 %v3139
        %v3276 = vunpack.c.l.b16 %v3140
        %v3277 = vunpack.c.l.b16 %v3141
        %v3278 = vunpack.c.l.b16 %v3142
        %v3279 = vunpack.c.l.b16 %v3143
        %v3280 = vunpack.c.l.b16 %v3144
        %v3281 = vunpack.c.l.b16 %v3145
        %v3282 = vunpack.c.l.b16 %v3146
        %v3283 = vunpack.c.l.b16 %v3147
        %v3284 = vunpack.c.l.b16 %v3148
        %v3285 = vunpack.c.l.b16 %v3149
        %v3286 = vunpack.c.l.b16 %v3150
        %v3287 = vunpack.c.l.b16 %v3151
        %v3288 = vunpack.c.l.b16 %v3152
        %v3289 = vunpack.c.l.b16 %v3153
        %v3290 = vunpack.c.l.b16 %v3154
        %v3291 = vunpack.c.l.b16 %v3155
        %v3292 = vunpack.c.l.b16 %v3156
        %v3293 = vunpack.c.l.b16 %v3157
        %v3294 = vunpack.c.l.b16 %v3158
        %v3295 = vunpack.c.l.b16 %v3159
        %v3296 = vunpack.c.l.b16 %v3160
        %v3297 = vunpack.c.l.b16 %v3161
        %v3298 = vunpack.c.l.b16 %v3162
        %v3299 = vunpack.c.l.b16 %v3163
        %v3300 = vunpack.c.l.b16 %v3164
        %v3301 = vunpack.c.l.b16 %v3165
        %v3302 = vunpack.c.l.b16 %v3166
        %v3303 = vunpack.c.l.b16 %v3167
        %v3304 = vunpack.c.l.b16 %v3168
        %v3305 = vunpack.c.l.b16 %v3169
        %v3306 = vunpack.c.l.b16 %v3170
        %v3307 = vunpack.c.l.b16 %v3171
        %v3308 = vunpack.c.l.b16 %v3172
        %v3309 = vunpack.c.l.b16 %v3173
        %v3310 = vunpack.c.l.b16 %v3174
        %v3311 = vunpack.c.l.b16 %v3175
        %v3312 = vunpack.c.l.b16 %v3176
        %v3313 = vunpack.c.l.b16 %v3177
        %v3314 = vunpack.c.l.b16 %v3178
        %v3315 = vunpack.c.l.b16 %v3179
        %v3316 = vunpack.c.l.b16 %v3180
        %v3317 = vunpack.c.l.b16 %v3181
        %v3318 = vunpack.c.l.b16 %v3182
        %v3319 = vunpack.c.l.b16 %v3183
        %v3320 = vunpack.c.l.b16 %v3184
        %v3321 = vunpack.c.l.b16 %v3185
        %v3322 = vunpack.c.l.b16 %v3186
        %v3323 = vunpack.c.l.b16 %v3187
        %v3324 = vunpack.c.l.b16 %v3188
        %v3325 = vunpack.c.l.b16 %v3189
        %v3326 = vunpack.c.l.b16 %v3190
        %v3327 = vunpack.c.l.b16 %v3191
        %v3328 = vunpack.c.l.b16 %v3192
        %v3329 = vunpack.c.l.b16 %v3193
        %v3330 = vunpack.c.l.b16 %v3194
        %v3331 = vunpack.c.l.b16 %v3195
        %v3332 = vpack.c.b16 %v3269, %v3268
        %v3333 = vpack.c.b16 %v3271, %v3270
        %v3334 = vpack.c.b16 %v3273, %v3272
        %v3335 = vpack.c.b16 %v3275, %v3274
        %v3336 = vpack.c.b16 %v3277, %v3276
        %v3337 = vpack.c.b16 %v3279, %v3278
        %v3338 = vpack.c.b16 %v3281, %v3280
        %v3339 = vpack.c.b16 %v3283, %v3282
        %v3340 = vpack.c.b16 %v3285, %v3284
        %v3341 = vpack.c.b16 %v3287, %v3286
        %v3342 = vpack.c.b16 %v3289, %v3288
        %v3343 = vpack.c.b16 %v3291, %v3290
        %v3344 = vpack.c.b16 %v3293, %v3292
        %v3345 = vpack.c.b16 %v3295, %v3294
        %v3346 = vpack.c.b16 %v3297, %v3296
        %v3347 = vpack.c.b16 %v3299, %v3298
        %v3348 = vpack.c.b16 %v3301, %v3300
        %v3349 = vpack.c.b16 %v3303, %v3302
        %v3350 = vpack.c.b16 %v3305, %v3304
        %v3351 = vpack.c.b16 %v3307, %v3306
        %v3352 = vpack.c.b16 %v3309, %v3308
        %v3353 = vpack.c.b16 %v3311, %v3310
        %v3354 = vpack.c.b16 %v3313, %v3312
        %v3355 = vpack.c.b16 %v3315, %v3314
        %v3356 = vpack.c.b16 %v3317, %v3316
        %v3357 = vpack.c.b16 %v3319, %v3318
        %v3358 = vpack.c.b16 %v3321, %v3320
        %v3359 = vpack.c.b16 %v3323, %v3322
        %v3360 = vpack.c.b16 %v3325, %v3324
        %v3361 = vpack.c.b16 %v3327, %v3326
        %v3362 = vpack.c.b16 %v3329, %v3328
        %v3363 = vpack.c.b16 %v3331, %v3330
        %3396 = vmatprep.subr.bf16.mxu0 0
        %3397 = vmatpush1.bf16.msra.mxu0 %v3332
        %3398 = vmatprep.subr.bf16.mxu0 0
        %3399 = vmatpush1.bf16.msra.mxu0 %v3333
        %3400 = vmatprep.subr.bf16.mxu0 0
        %3401 = vmatpush1.bf16.msra.mxu0 %v3334
        %3402 = vmatprep.subr.bf16.mxu0 0
        %3403 = vmatpush1.bf16.msra.mxu0 %v3335
        %3404 = vmatprep.subr.bf16.mxu0 0
        %3405 = vmatpush1.bf16.msra.mxu0 %v3336
        %3406 = vmatprep.subr.bf16.mxu0 0
        %3407 = vmatpush1.bf16.msra.mxu0 %v3337
        %3408 = vmatprep.subr.bf16.mxu0 0
        %3409 = vmatpush1.bf16.msra.mxu0 %v3338
        %3410 = vmatprep.subr.bf16.mxu0 0
        %3411 = vmatpush1.bf16.msra.mxu0 %v3339
        %3412 = vmatprep.subr.bf16.mxu0 0
        %3413 = vmatpush1.bf16.msra.mxu0 %v3340
        %3414 = vmatprep.subr.bf16.mxu0 0
        %3415 = vmatpush1.bf16.msra.mxu0 %v3341
        %3416 = vmatprep.subr.bf16.mxu0 0
        %3417 = vmatpush1.bf16.msra.mxu0 %v3342
        %3418 = vmatprep.subr.bf16.mxu0 0
        %3419 = vmatpush1.bf16.msra.mxu0 %v3343
        %3420 = vmatprep.subr.bf16.mxu0 0
        %3421 = vmatpush1.bf16.msra.mxu0 %v3344
        %3422 = vmatprep.subr.bf16.mxu0 0
        %3423 = vmatpush1.bf16.msra.mxu0 %v3345
        %3424 = vmatprep.subr.bf16.mxu0 0
        %3425 = vmatpush1.bf16.msra.mxu0 %v3346
        %3426 = vmatprep.subr.bf16.mxu0 0
        %3427 = vmatpush1.bf16.msra.mxu0 %v3347
        %3428 = vmatprep.mubr.bf16.mxu0 %v3197
        %3429 = vmatmul.mubr.bf16.gmra.mrb[0].mxu0 %v3196
        %v3430 = vpop.f32.mrb[0].mxu0
        %v3431 = vadd.f32 0.0, %v3430
        %v3432 = vpop.f32.mrb[0].mxu0
        %v3433 = vpop.f32.mrb[0].mxu0
        %v3434 = vadd.f32 0.0, %v3433
        %v3435 = vpop.f32.mrb[0].mxu0
        %3436 = vmatprep.mubr.bf16.mxu0 %v3201
        %3437 = vmatmul.mubr.bf16.gmra.mrb[0].mxu0 %v3200
        %v3438 = vpop.f32.mrb[0].mxu0
        %v3439 = vadd.f32 0.0, %v3438
        %v3440 = vpop.f32.mrb[0].mxu0
        %v3441 = vpop.f32.mrb[0].mxu0
        %v3442 = vadd.f32 0.0, %v3441
        %v3443 = vpop.f32.mrb[0].mxu0
        %3444 = vdwg.mxu0
        %3445 = vmatprep.subr.bf16.mxu0 0
        %3446 = vmatpush1.bf16.msra.mxu0 %v3348
        %3447 = vmatprep.subr.bf16.mxu0 0
        %3448 = vmatpush1.bf16.msra.mxu0 %v3349
        %3449 = vmatprep.subr.bf16.mxu0 0
        %3450 = vmatpush1.bf16.msra.mxu0 %v3350
        %3451 = vmatprep.subr.bf16.mxu0 0
        %3452 = vmatpush1.bf16.msra.mxu0 %v3351
        %3453 = vmatprep.subr.bf16.mxu0 0
        %3454 = vmatpush1.bf16.msra.mxu0 %v3352
        %3455 = vmatprep.subr.bf16.mxu0 0
        %3456 = vmatpush1.bf16.msra.mxu0 %v3353
        %3457 = vmatprep.subr.bf16.mxu0 0
        %3458 = vmatpush1.bf16.msra.mxu0 %v3354
        %3459 = vmatprep.subr.bf16.mxu0 0
        %3460 = vmatpush1.bf16.msra.mxu0 %v3355
        %3461 = vmatprep.subr.bf16.mxu0 0
        %3462 = vmatpush1.bf16.msra.mxu0 %v3356
        %3463 = vmatprep.subr.bf16.mxu0 0
        %3464 = vmatpush1.bf16.msra.mxu0 %v3357
        %3465 = vmatprep.subr.bf16.mxu0 0
        %3466 = vmatpush1.bf16.msra.mxu0 %v3358
        %3467 = vmatprep.subr.bf16.mxu0 0
        %3468 = vmatpush1.bf16.msra.mxu0 %v3359
        %3469 = vmatprep.subr.bf16.mxu0 0
        %3470 = vmatpush1.bf16.msra.mxu0 %v3360
        %3471 = vmatprep.subr.bf16.mxu0 0
        %3472 = vmatpush1.bf16.msra.mxu0 %v3361
        %3473 = vmatprep.subr.bf16.mxu0 0
        %3474 = vmatpush1.bf16.msra.mxu0 %v3362
        %3475 = vmatprep.subr.bf16.mxu0 0
        %3476 = vmatpush1.bf16.msra.mxu0 %v3363
        %3477 = vmatprep.mubr.bf16.mxu0 %v3199
        %3478 = vmatmul.mubr.bf16.gmra.mrb[0].mxu0 %v3198
        %v3479 = vpop.f32.mrb[0].mxu0
        %v3480 = vadd.f32 %v3431, %v3479
        %v3481 = vpop.f32.mrb[0].mxu0
        %v3482 = vpop.f32.mrb[0].mxu0
        %v3483 = vadd.f32 %v3434, %v3482
        %v3484 = vpop.f32.mrb[0].mxu0
        %3485 = vmatprep.mubr.bf16.mxu0 %v3203
        %3486 = vmatmul.mubr.bf16.gmra.mrb[0].mxu0 %v3202
        %v3487 = vpop.f32.mrb[0].mxu0
        %v3488 = vadd.f32 %v3439, %v3487
        %v3489 = vpop.f32.mrb[0].mxu0
        %v3490 = vpop.f32.mrb[0].mxu0
        %v3491 = vadd.f32 %v3442, %v3490
        %v3492 = vpop.f32.mrb[0].mxu0
        %3493 = vdwg.mxu0
        %v3494 = vadd.f32 %v2628, %v3480
        %v3495 = vadd.f32 %v2629, %v3483
        %v3496 = vadd.f32 %v2630, %v3488
        %v3497 = vadd.f32 %v2631, %v3491
        %v3498 = vld [vmem:[%s977] sm:$0x1]
        %v3500 = vlaneseq
        %v3501 = vshrl.u32 %v3500, 7
        %v3502 = vsub.s32 0, %v3501
        %v3503 = vrot.slane %v3498, %v3502
        %v3505 = vadd.f32 %v3494, %v3503
        %v3506 = vadd.f32 %v3495, %v3503
        %v3507 = vadd.f32 %v3496, %v3503
        %v3508 = vadd.f32 %v3497, %v3503
        %3509 = vst [vmem:[#allocation17] sm:$0xff] %v3505
        %3510 = vst [vmem:[#allocation17 + $0x8] sm:$0xff] %v3506
        %3511 = vst [vmem:[#allocation17 + $0x10] sm:$0xff] %v3507
        %3512 = vst [vmem:[#allocation17 + $0x18] sm:$0xff] %v3508
        %p3513 = scmp.eq.s32.totalorder %s44, 2
        // Predicated region
        $region133: #{tpu_custom_call.1} parent=95 // pred_check
          %p3514 = pneg %p3513
        $region134: #{tpu_custom_call.1} parent=95 // pred_check_branch
          %3516 = sbr.rel (%p3514) target = $region136
        $region135: #{tpu_custom_call.1} parent=95 // pred_region
          %v3517 = vld [vmem:[%s17] sm:$0x1]
          %v3518 = vld [vmem:[%s18] sm:$0x1]
          %3519 = vadd.xlane.f32.xlu0 %v3505
          %v3520 = vpop.xlane.xlu0 %3519
          %3521 = vadd.xlane.f32.xlu0 %v3506
          %v3522 = vpop.xlane.xlu0 %3521
          %3523 = vadd.xlane.f32.xlu0 %v3507
          %v3524 = vpop.xlane.xlu0 %3523
          %3525 = vadd.xlane.f32.xlu0 %v3508
          %v3526 = vpop.xlane.xlu0 %3525
          %v3527 = vmul.f32 %v3520, %v1012
          %v3528 = vmul.f32 %v3522, %v1012
          %v3529 = vmul.f32 %v3524, %v1012
          %v3530 = vmul.f32 %v3526, %v1012
          %v3531 = vsub.f32 %v3505, %v3527
          %v3532 = vsub.f32 %v3506, %v3528
          %v3533 = vsub.f32 %v3507, %v3529
          %v3534 = vsub.f32 %v3508, %v3530
          %v3535 = vmul.f32 %v3531, %v3531
          %v3536 = vmul.f32 %v3532, %v3532
          %v3537 = vmul.f32 %v3533, %v3533
          %v3538 = vmul.f32 %v3534, %v3534
          %3539 = vadd.xlane.f32.xlu0 %v3535
          %v3540 = vpop.xlane.xlu0 %3539
          %3541 = vadd.xlane.f32.xlu0 %v3536
          %v3542 = vpop.xlane.xlu0 %3541
          %3543 = vadd.xlane.f32.xlu0 %v3537
          %v3544 = vpop.xlane.xlu0 %3543
          %3545 = vadd.xlane.f32.xlu0 %v3538
          %v3546 = vpop.xlane.xlu0 %3545
          %v3547 = vmul.f32 %v3540, %v1012
          %v3548 = vmul.f32 %v3542, %v1012
          %v3549 = vmul.f32 %v3544, %v1012
          %v3550 = vmul.f32 %v3546, %v1012
          %v3551 = vadd.f32 %v3547, 1e-05
          %v3552 = vadd.f32 %v3548, 1e-05
          %v3553 = vadd.f32 %v3549, 1e-05
          %v3554 = vadd.f32 %v3550, 1e-05
          %v3555 = vrsqrt.pop %v3551
          %v3556 = vrsqrt.pop %v3552
          %v3557 = vrsqrt.pop %v3553
          %v3558 = vrsqrt.pop %v3554
          %v3559 = vmul.f32 %v3531, %v3555
          %v3560 = vmul.f32 %v3532, %v3556
          %v3561 = vmul.f32 %v3533, %v3557
          %v3562 = vmul.f32 %v3534, %v3558
          %v3564 = vlaneseq
          %v3565 = vshrl.u32 %v3564, 7
          %v3566 = vsub.s32 0, %v3565
          %v3567 = vrot.slane %v3517, %v3566
          %v3569 = vmul.f32 %v3559, %v3567
          %v3570 = vmul.f32 %v3560, %v3567
          %v3571 = vmul.f32 %v3561, %v3567
          %v3572 = vmul.f32 %v3562, %v3567
          %v3574 = vlaneseq
          %v3575 = vshrl.u32 %v3574, 7
          %v3576 = vsub.s32 0, %v3575
          %v3577 = vrot.slane %v3518, %v3576
          %v3579 = vadd.f32 %v3569, %v3577
          %v3580 = vadd.f32 %v3570, %v3577
          %v3581 = vadd.f32 %v3571, %v3577
          %v3582 = vadd.f32 %v3572, %v3577
          %3583 = vst [vmem:[#allocation17] sm:$0xff] %v3579
          %3584 = vst [vmem:[#allocation17 + $0x8] sm:$0xff] %v3580
          %3585 = vst [vmem:[#allocation17 + $0x10] sm:$0xff] %v3581
          %3586 = vst [vmem:[#allocation17 + $0x18] sm:$0xff] %v3582
        $region136: #{tpu_custom_call.1} parent=95 // pred_fallthru
          _
        // Predicated region
        $region137: #{tpu_custom_call.1} parent=95 // pred_check
          %p3587 = pneg %p536
        $region138: #{tpu_custom_call.1} parent=95 // pred_check_branch
          %3589 = sbr.rel (%p3587) target = $region140
        $region139: #{tpu_custom_call.1} parent=95 // pred_region
          %s3591 = ssub.s32 512, 512
          %3592 = vsyncadd [#allocation5], %s3591
          %s3593 = sshll.u32 [#allocation17], 4
          %s3594 = int_to_ptr.vmem [resolvable:$true] %s3593
          %3599 = dma.vmem_to_hbm [thread:$0]  %s3594, 512, %s19, [#allocation5], 128, 128, 8
        $region140: #{tpu_custom_call.1} parent=95 // pred_fallthru
          _
        // Predicated region
        $region141: #{tpu_custom_call.1} parent=95 // pred_check
          %p3600 = pneg %p536
        $region142: #{tpu_custom_call.1} parent=95 // pred_check_branch
          %3602 = sbr.rel (%p3600) target = $region144
        $region143: #{tpu_custom_call.1} parent=95 // pred_region
          %3603 = dma.done [#allocation5], 512
        $region144: #{tpu_custom_call.1} parent=95 // pred_fallthru
          _
      $region96: #{tpu_custom_call.1} parent=5 // pred_fallthru
        _
      %p3604 = scmp.le.s32.totalorder 2, %s39
      // Predicated region
      $region145: #{tpu_custom_call.1} parent=5 // pred_check
        %p3605 = pneg %p3604
      $region146: #{tpu_custom_call.1} parent=5 // pred_check_branch
        %3607 = sbr.rel (%p3605) target = $region148
      $region147: #{tpu_custom_call.1} parent=5 // pred_region
        %s3608 = ssub.s32 %s39, 2
      $region148: #{tpu_custom_call.1} parent=5 // pred_fallthru
        _
    $region6: #{tpu_custom_call.1} parent=1 // loop_footer
      %s43 = sadd.s32 1, %s39
    $region7: #{tpu_custom_call.1} parent=1 // loop_footer_branch
      %38 = sbr.rel target = $region3
    $region8: #{tpu_custom_call.1} parent=1 // loop_exit
      _
    %3609 = vsyncpa [#allocation4], 1
    %s3610 = scalar_lea.sflag [#allocation4], 1
    %3611 = vsyncpa %s3610, 1
    %3612 = vsyncpa [#allocation7], 1
    %s3613 = scalar_lea.sflag [#allocation7], 1
    %3614 = vsyncpa %s3613, 1
    %3615 = vsyncpa [#allocation10], 1
    %s3616 = scalar_lea.sflag [#allocation10], 1
    %3617 = vsyncpa %s3616, 1
    %3618 = vsyncpa [#allocation13], 1
    %s3619 = scalar_lea.sflag [#allocation13], 1
    %3620 = vsyncpa %s3619, 1
    %3621 = vsyncpa [#allocation16], 1
    %s3622 = scalar_lea.sflag [#allocation16], 1
    %3623 = vsyncpa %s3622, 1
    %3624 = vsyncpa [#allocation5], 1
    %s3625 = scalar_lea.sflag [#allocation5], 1
    %3626 = vsyncpa %s3625, 1

</llo_original>
